<compile_context>
chip_gen: v7x
topology: tpu7x:2x2x1
jax: 0.10.0
libtpu: 0.0.40
codegen_flags: <defaults>
</compile_context>

<pallas_src>
import jax
import jax.numpy as jnp
from jax.experimental import pallas as pl
from jax.experimental.pallas import tpu as pltpu

SEQ = 5  # Project_GRU views the 5*C ASPP channels as a length-5 sequence

# Remember whether single-buffering constant operands (pl.Buffered(1)) works
# with the installed Pallas; fall back to default double-buffering otherwise.
_SINGLE_BUFFER_OK = [True]


def _round_up(x, m):
    return (x + m - 1) // m * m


def _sigmoid(x):
    # sigmoid(x) == 0.5*tanh(0.5*x) + 0.5 : one EUP op (tanh) + cheap VPU ops
    # instead of exp + divide, so the transcendental path stays off the
    # critical slot once the MXU runs at bf16 rate.
    return 0.5 * jnp.tanh(0.5 * x) + 0.5


def _gru_head_kernel(x_ref, wih_ref, whh_ref, wcls_ref, bias_ref,
                     feat_ref, logits_ref):
    """One (batch image, HW tile) per grid step.

    x_ref:      (1, SEQ, C, T)   GRU inputs (5 channel groups), channels on sublanes
    wih_ref:    (3C, C)          torch weight_ih_l0, rows ordered [r|z|n]
    whh_ref:    (3C, C)          torch weight_hh_l0
    wcls_ref:   (NC, C)          1x1 classifier conv weight
    bias_ref:   (6C+NC, 1)       packed: [b_ir+b_hr | b_iz+b_hz | b_in | b_hn |
                                          bn_scale | bn_shift | b_cls]
    feat_ref:   (1, C, T)        project_gru output after BN+ReLU (NCHW slab)
    logits_ref: (1, NC, T)       classifier logits (NCHW slab)
    """
    C = feat_ref.shape[1]
    T = feat_ref.shape[2]
    NC = logits_ref.shape[1]

    w_ih = wih_ref[...]            # (3C, C)   possibly bf16
    w_hh = whh_ref[...]            # (3C, C)
    w_cls = wcls_ref[...]          # (NC, C)

    # Hoisted lane-broadcasts (done once, not once per unrolled timestep).
    b_i3 = jnp.broadcast_to(bias_ref[0:3 * C], (3 * C, T))      # r/z hidden biases folded in
    b_hn = jnp.broadcast_to(bias_ref[3 * C:4 * C], (C, T))      # r-gated hidden bias of n
    bn_s = bias_ref[4 * C:5 * C]                                 # (C, 1)
    bn_b = bias_ref[5 * C:6 * C]                                 # (C, 1)
    b_cls = bias_ref[6 * C:6 * C + NC]                           # (NC, 1)

    h = None
    for t in range(SEQ):                                         # static unroll (SEQ = 5)
        x_t = x_ref[0, t]                                        # (C, T)
        # gi^T = W_ih @ x_t^T  (single fused (3C,C)x(C,T) MXU op), bias pre-added.
        gi = jnp.dot(w_ih, x_t, preferred_element_type=jnp.float32) + b_i3
        if t == 0:
            # h == 0: skip the hidden-side matmul and the z*h blend term.
            r = _sigmoid(gi[0:C])
            z = _sigmoid(gi[C:2 * C])
            n = jnp.tanh(gi[2 * C:3 * C] + r * b_hn)
            h = (1.0 - z) * n
        else:
            gh = jnp.dot(w_hh, h.astype(w_hh.dtype),
                         preferred_element_type=jnp.float32)     # (3C, T)
            r = _sigmoid(gi[0:C] + gh[0:C])
            z = _sigmoid(gi[C:2 * C] + gh[C:2 * C])
            n = jnp.tanh(gi[2 * C:3 * C] + r * (gh[2 * C:3 * C] + b_hn))
            h = (1.0 - z) * n + z * h

    # BatchNorm2d (eval: running stats) + ReLU; Dropout(0.5) is identity in eval.
    feat = jnp.maximum(h * bn_s + bn_b, 0.0)                     # (C, T), f32
    feat_ref[0] = feat.astype(feat_ref.dtype)
    # 1x1 conv classifier (dl.classifier[4]) == (NC, C) @ (C, T) matmul; lane
    # dim stays T (multiple of 128) so the store is a full-width vst.
    logits_ref[0] = (jnp.dot(w_cls, feat.astype(w_cls.dtype),
                             preferred_element_type=jnp.float32)
                     + b_cls).astype(logits_ref.dtype)


def _vmem_capacity_bytes():
    """Physical-VMEM-aware cap for vmem_limit_bytes (safe fallback: 64 MiB)."""
    try:
        cap = int(pltpu.get_tpu_info().vmem_capacity_bytes)
        return max(32 << 20, cap - (8 << 20))          # leave headroom
    except Exception:
        return 64 << 20                                # == v7x physical; safe on all chips


def _vmem_budget_bytes(C, NC, T, x_item, w_item, out_item):
    """Conservative per-grid-step VMEM budget (double-buffered I/O + temps)."""
    x_blk = SEQ * C * T * x_item * 2                   # input tile, 2 buffers
    out_blk = (C + NC) * T * out_item * 2              # both outputs, 2 buffers
    w_blk = (6 * C * C + NC * C) * w_item * 2          # weights (assume 2 buffers)
    bias_blk = _round_up(6 * C + NC, 8) * 128 * 4 * 2  # lane-padded (N,1) column
    temps = 16 * C * T * 4                             # gi/gh/bias-broadcast/gates/h/feat
    return x_blk + out_blk + w_blk + bias_blk + temps + (2 << 20)


def _choose_tiling(HW, C, NC, max_tile_hw, x_item, w_item, out_item,
                   vmem_cap, even_tile_count):
    """Smallest multiple-of-128 tile that splits round_up(HW,128) into the
    chosen number of tiles (minimizes padding), shrunk until it fits VMEM."""
    hw128 = _round_up(HW, 128)
    max_tile_hw = max(128, _round_up(max_tile_hw, 128))
    n_tiles = max(1, pl.cdiv(hw128, max_tile_hw))
    if even_tile_count and n_tiles % 2:
        n_tiles += 1
    while True:
        tile = _round_up(pl.cdiv(hw128, n_tiles), 128)
        budget = _vmem_budget_bytes(C, NC, tile, x_item, w_item, out_item)
        if budget <= vmem_cap or tile <= 128:
            return tile, n_tiles, budget
        n_tiles += 2 if even_tile_count else 1


def deeplab_gru_head(x_nchw, params, *, max_tile_hw=1024,
                     mxu_dtype=jnp.bfloat16, out_dtype=jnp.float32,
                     even_tile_count=False):
    """x_nchw: (B, 5*C, H, W) — the concatenated ASPP features.

    max_tile_hw:      spatial tile cap (lane dim).  1024 is safe on all chips;
                      v6e/v5e can raise it (128 MiB physical VMEM), keep <=1024 on v7x.
    mxu_dtype:        MXU-input dtype (default bf16; recurrence / gate math stay f32).
    out_dtype:        output dtype (f32 default; bf16 halves writeback traffic).
    even_tile_count:  force an even number of HW tiles per image (v7x, small batch).
    """
    B, CH, H, W = x_nchw.shape
    C = CH // SEQ
    HW = H * W
    NC = params["w_cls"].shape[0]
    eps = 1e-5

    vmem_cap = _vmem_capacity_bytes()
    x_item = jnp.dtype(mxu_dtype).itemsize
    out_item = jnp.dtype(out_dtype).itemsize
    tile_hw, n_hw_tiles, budget = _choose_tiling(
        HW, C, NC, max_tile_hw, x_item, x_item, out_item, vmem_cap, even_tile_count)
    hw_pad = tile_hw * n_hw_tiles
    vmem_limit = int(min(vmem_cap, max(budget, 32 << 20)))

    # NCHW -> (B, SEQ, C, HW): pure reshape, no transpose (channels stay on the
    # sublane axis, spatial positions on lanes, i.e. NCHW-native end to end).
    x_seq = x_nchw.reshape(B, SEQ, C, HW)
    if hw_pad != HW:
        x_seq = jnp.pad(x_seq, ((0, 0), (0, 0), (0, 0), (0, hw_pad - HW)))
    x_seq = x_seq.astype(mxu_dtype)

    # Torch GRU weights are (3C, C) with rows [r|z|n]; in this layout we
    # left-multiply, so they are used untransposed.
    w_ih = params["w_ih"].astype(mxu_dtype)
    w_hh = params["w_hh"].astype(mxu_dtype)
    w_cls = params["w_cls"].astype(mxu_dtype)          # (NC, C)

    b_ih = params["b_ih"].astype(jnp.float32)
    b_hh = params["b_hh"].astype(jnp.float32)
    bn_scale = params["gamma"] / jnp.sqrt(params["running_var"] + eps)
    bn_shift = params["beta"] - params["running_mean"] * bn_scale
    # Pack every per-channel vector into one column vector (one small DMA).
    packed_bias = jnp.concatenate([
        b_ih[0:C] + b_hh[0:C],            # r-gate bias (input + hidden folded)
        b_ih[C:2 * C] + b_hh[C:2 * C],    # z-gate bias (folded)
        b_ih[2 * C:3 * C],                # n-gate input bias
        b_hh[2 * C:3 * C],                # n-gate hidden bias (r-gated, separate)
        bn_scale, bn_shift,
        params["b_cls"],
    ]).astype(jnp.float32).reshape(-1, 1)               # (6C + NC, 1)

    def _const_spec(shape, single_buffer):
        zeros = (0,) * len(shape)
        if single_buffer:
            # Grid-invariant operand: DMA'd once, no need for a second buffer.
            return pl.BlockSpec(shape, lambda b, t: zeros,
                                pipeline_mode=pl.Buffered(1))
        return pl.BlockSpec(shape, lambda b, t: zeros)

    def _run(single_buffer):
        return pl.pallas_call(
            _gru_head_kernel,
            out_shape=(jax.ShapeDtypeStruct((B, C, hw_pad), out_dtype),
                       jax.ShapeDtypeStruct((B, NC, hw_pad), out_dtype)),
            grid=(B, n_hw_tiles),
            in_specs=[
                pl.BlockSpec((1, SEQ, C, tile_hw), lambda b, t: (b, 0, 0, t)),
                _const_spec((3 * C, C), single_buffer),
                _const_spec((3 * C, C), single_buffer),
                _const_spec((NC, C), single_buffer),
                _const_spec((6 * C + NC, 1), single_buffer),
            ],
            out_specs=(
                pl.BlockSpec((1, C, tile_hw), lambda b, t: (b, 0, t)),
                pl.BlockSpec((1, NC, tile_hw), lambda b, t: (b, 0, t)),
            ),
            compiler_params=pltpu.CompilerParams(
                dimension_semantics=("parallel", "parallel"),
                vmem_limit_bytes=vmem_limit),
        )(x_seq, w_ih, w_hh, w_cls, packed_bias)

    if _SINGLE_BUFFER_OK[0]:
        try:
            feat, logits = _run(True)
        except Exception:
            _SINGLE_BUFFER_OK[0] = False
            feat, logits = _run(False)
    else:
        feat, logits = _run(False)

    # Outputs are already NCHW slabs: drop the HW padding and reshape.
    feat = feat[:, :, :HW].reshape(B, C, H, W)
    logits = logits[:, :, :HW].reshape(B, NC, H, W)
    return feat, logits


def _reference(x_nchw, params):
    """Pure-JAX mirror of Project_GRU -> BN(eval) -> ReLU -> Dropout(eval) -> 1x1 conv."""
    B, CH, H, W = x_nchw.shape
    C = CH // SEQ
    HW = H * W
    eps = 1e-5
    w_ih, w_hh = params["w_ih"], params["w_hh"]
    b_ih, b_hh = params["b_ih"], params["b_hh"]

    feats = []
    for b in range(B):
        img = x_nchw[b].reshape(SEQ, C, HW).transpose(0, 2, 1)  # (5, HW, C)
        h = jnp.zeros((HW, C), jnp.float32)
        for t in range(SEQ):
            gi = img[t] @ w_ih.T + b_ih
            gh = h @ w_hh.T + b_hh
            i_r, i_z, i_n = jnp.split(gi, 3, axis=1)
            h_r, h_z, h_n = jnp.split(gh, 3, axis=1)
            r = jax.nn.sigmoid(i_r + h_r)
            z = jax.nn.sigmoid(i_z + h_z)
            n = jnp.tanh(i_n + r * h_n)
            h = (1.0 - z) * n + z * h
        feats.append(h.T.reshape(C, H, W))
    feat = jnp.stack(feats)  # (B, C, H, W)

    scale = params["gamma"] / jnp.sqrt(params["running_var"] + eps)
    shift = params["beta"] - params["running_mean"] * scale
    feat = jnp.maximum(feat * scale[None, :, None, None] + shift[None, :, None, None], 0.0)
    logits = jnp.einsum("bchw,nc->bnhw", feat, params["w_cls"]) \
        + params["b_cls"][None, :, None, None]
    return feat, logits


if __name__ == "__main__":
    B, C, NUM_CLASSES = 2, 32, 4      # C = ASPP project out_channels (small test size)
    key = jax.random.PRNGKey(0)
    ks = jax.random.split(key, 9)
    k = 1.0 / (C ** 0.5)

    params = {
        "w_ih": jax.random.uniform(ks[1], (3 * C, C), jnp.float32, -k, k),
        "w_hh": jax.random.uniform(ks[2], (3 * C, C), jnp.float32, -k, k),
        "b_ih": jax.random.uniform(ks[3], (3 * C,), jnp.float32, -k, k),
        "b_hh": jax.random.uniform(ks[4], (3 * C,), jnp.float32, -k, k),
        "gamma": jax.random.uniform(ks[5], (C,), jnp.float32, 0.5, 1.5),
        "beta": jax.random.uniform(ks[6], (C,), jnp.float32, -0.5, 0.5),
        "running_mean": jnp.zeros((C,), jnp.float32),
        "running_var": jnp.ones((C,), jnp.float32),
        "w_cls": jax.random.uniform(ks[7], (NUM_CLASSES, C), jnp.float32, -k, k),
        "b_cls": jnp.zeros((NUM_CLASSES,), jnp.float32),
    }

    # 1) f32 MXU path, HW a multiple of 128 — tight tolerance vs reference.
    H = W = 16
    x = jax.random.normal(ks[0], (B, SEQ * C, H, W), jnp.float32)
    feat, logits = jax.block_until_ready(
        deeplab_gru_head(x, params, mxu_dtype=jnp.float32))
    feat_ref, logits_ref = _reference(x, params)
    assert feat.shape == (B, C, H, W) and logits.shape == (B, NUM_CLASSES, H, W)
    assert jnp.allclose(feat, feat_ref, rtol=1e-3, atol=1e-3)
    assert jnp.allclose(logits, logits_ref, rtol=1e-3, atol=1e-3)

    # 2) f32 path, ragged HW (169 -> padded to 256) exercises the padding path.
    H2 = W2 = 13
    x2 = jax.random.normal(ks[8], (B, SEQ * C, H2, W2), jnp.float32)
    feat2, logits2 = jax.block_until_ready(
        deeplab_gru_head(x2, params, mxu_dtype=jnp.float32))
    feat2_ref, logits2_ref = _reference(x2, params)
    assert jnp.allclose(feat2, feat2_ref, rtol=1e-3, atol=1e-3)
    assert jnp.allclose(logits2, logits2_ref, rtol=1e-3, atol=1e-3)

    # 3) Default (bf16 MXU-input) production path; recurrence stays f32 ->
    #    loose smoke tolerance.  Also exercises even_tile_count (v7x hint).
    feat_bf, logits_bf = jax.block_until_ready(
        deeplab_gru_head(x, params, even_tile_count=True))
    assert jnp.allclose(feat_bf, feat_ref, rtol=1e-1, atol=1e-1)
    assert jnp.allclose(logits_bf, logits_ref, rtol=1e-1, atol=1e-1)

    print("KERNEL_OK")
</pallas_src>

<mosaic_0001>
module attributes {stable_mosaic.version = 11 : i64} {
  func.func @_gru_head_kernel(%arg0: i32, %arg1: i32, %arg2: memref<1x5x32x256xf32, #tpu.memory_space<vmem>>, %arg3: memref<96x32xf32, #tpu.memory_space<vmem>>, %arg4: memref<96x32xf32, #tpu.memory_space<vmem>>, %arg5: memref<4x32xf32, #tpu.memory_space<vmem>>, %arg6: memref<196x1xf32, #tpu.memory_space<vmem>>, %arg7: memref<1x32x256xf32, #tpu.memory_space<vmem>>, %arg8: memref<1x4x256xf32, #tpu.memory_space<vmem>>) attributes {dimension_semantics = [#tpu.dimension_semantics<parallel>, #tpu.dimension_semantics<parallel>], iteration_bounds = array<i64: 2, 1>, scalar_prefetch = 0 : i64, scratch_operands = 0 : i64, tpu.core_type = #tpu.core_type<tc>, window_params = [{transform_indices = @transform_0, window_bounds = array<i64: 1, 5, 32, 256>}, {pipeline_mode = #tpu.pipeline_mode<synchronous>, transform_indices = @transform_1, window_bounds = array<i64: 96, 32>}, {pipeline_mode = #tpu.pipeline_mode<synchronous>, transform_indices = @transform_2, window_bounds = array<i64: 96, 32>}, {pipeline_mode = #tpu.pipeline_mode<synchronous>, transform_indices = @transform_3, window_bounds = array<i64: 4, 32>}, {pipeline_mode = #tpu.pipeline_mode<synchronous>, transform_indices = @transform_4, window_bounds = array<i64: 196, 1>}, {transform_indices = @transform_5, window_bounds = array<i64: 1, 32, 256>}, {transform_indices = @transform_6, window_bounds = array<i64: 1, 4, 256>}]} {
    %c0 = arith.constant 0 : index
    %c0_0 = arith.constant 0 : index
    %0 = vector.load %arg3[%c0, %c0_0] : memref<96x32xf32, #tpu.memory_space<vmem>>, vector<96x32xf32>
    %c0_1 = arith.constant 0 : index
    %c0_2 = arith.constant 0 : index
    %1 = vector.load %arg4[%c0_1, %c0_2] : memref<96x32xf32, #tpu.memory_space<vmem>>, vector<96x32xf32>
    %c0_3 = arith.constant 0 : index
    %c0_4 = arith.constant 0 : index
    %2 = vector.load %arg5[%c0_3, %c0_4] : memref<4x32xf32, #tpu.memory_space<vmem>>, vector<4x32xf32>
    %c0_5 = arith.constant 0 : index
    %c0_6 = arith.constant 0 : index
    %3 = vector.load %arg6[%c0_5, %c0_6] : memref<196x1xf32, #tpu.memory_space<vmem>>, vector<96x1xf32>
    %4 = vector.shape_cast %3 : vector<96x1xf32> to vector<96x1xf32>
    %5 = vector.broadcast %4 : vector<96x1xf32> to vector<96x256xf32>
    %c96 = arith.constant 96 : index
    %c0_7 = arith.constant 0 : index
    %6 = vector.load %arg6[%c96, %c0_7] : memref<196x1xf32, #tpu.memory_space<vmem>>, vector<32x1xf32>
    %7 = vector.shape_cast %6 : vector<32x1xf32> to vector<32x1xf32>
    %8 = vector.broadcast %7 : vector<32x1xf32> to vector<32x256xf32>
    %c128 = arith.constant 128 : index
    %c0_8 = arith.constant 0 : index
    %9 = vector.load %arg6[%c128, %c0_8] : memref<196x1xf32, #tpu.memory_space<vmem>>, vector<32x1xf32>
    %c160 = arith.constant 160 : index
    %c0_9 = arith.constant 0 : index
    %10 = vector.load %arg6[%c160, %c0_9] : memref<196x1xf32, #tpu.memory_space<vmem>>, vector<32x1xf32>
    %c192 = arith.constant 192 : index
    %c0_10 = arith.constant 0 : index
    %11 = vector.load %arg6[%c192, %c0_10] : memref<196x1xf32, #tpu.memory_space<vmem>>, vector<4x1xf32>
    %c0_11 = arith.constant 0 : index
    %c0_12 = arith.constant 0 : index
    %c0_13 = arith.constant 0 : index
    %c0_14 = arith.constant 0 : index
    %12 = vector.load %arg2[%c0_11, %c0_12, %c0_13, %c0_14] : memref<1x5x32x256xf32, #tpu.memory_space<vmem>>, vector<1x1x32x256xf32>
    %13 = vector.shape_cast %12 : vector<1x1x32x256xf32> to vector<32x256xf32>
    %cst = arith.constant dense<0.000000e+00> : vector<96x256xf32>
    %14 = tpu.matmul %0, %13, %cst {dimension_numbers = #tpu.dot_dimension_numbers<[1], [0], [0], [1], [0, 0, 1, 1], [], []>} : vector<96x32xf32>, vector<32x256xf32>, vector<96x256xf32> -> vector<96x256xf32>
    %15 = arith.addf %14, %5 : vector<96x256xf32>
    %16 = vector.extract_strided_slice %15 {offsets = [0, 0], sizes = [32, 256], strides = [1, 1]} : vector<96x256xf32> to vector<32x256xf32>
    %cst_15 = arith.constant 5.000000e-01 : f32
    %17 = vector.broadcast %cst_15 : f32 to vector<32x256xf32>
    %18 = arith.mulf %17, %16 : vector<32x256xf32>
    %19 = math.tanh %18 : vector<32x256xf32>
    %cst_16 = arith.constant 5.000000e-01 : f32
    %20 = vector.broadcast %cst_16 : f32 to vector<32x256xf32>
    %21 = arith.mulf %20, %19 : vector<32x256xf32>
    %cst_17 = arith.constant 5.000000e-01 : f32
    %22 = vector.broadcast %cst_17 : f32 to vector<32x256xf32>
    %23 = arith.addf %21, %22 : vector<32x256xf32>
    %24 = vector.extract_strided_slice %15 {offsets = [32, 0], sizes = [32, 256], strides = [1, 1]} : vector<96x256xf32> to vector<32x256xf32>
    %cst_18 = arith.constant 5.000000e-01 : f32
    %25 = vector.broadcast %cst_18 : f32 to vector<32x256xf32>
    %26 = arith.mulf %25, %24 : vector<32x256xf32>
    %27 = math.tanh %26 : vector<32x256xf32>
    %cst_19 = arith.constant 5.000000e-01 : f32
    %28 = vector.broadcast %cst_19 : f32 to vector<32x256xf32>
    %29 = arith.mulf %28, %27 : vector<32x256xf32>
    %cst_20 = arith.constant 5.000000e-01 : f32
    %30 = vector.broadcast %cst_20 : f32 to vector<32x256xf32>
    %31 = arith.addf %29, %30 : vector<32x256xf32>
    %32 = vector.extract_strided_slice %15 {offsets = [64, 0], sizes = [32, 256], strides = [1, 1]} : vector<96x256xf32> to vector<32x256xf32>
    %33 = arith.mulf %23, %8 : vector<32x256xf32>
    %34 = arith.addf %32, %33 : vector<32x256xf32>
    %35 = math.tanh %34 : vector<32x256xf32>
    %cst_21 = arith.constant 1.000000e+00 : f32
    %36 = vector.broadcast %cst_21 : f32 to vector<32x256xf32>
    %37 = arith.subf %36, %31 : vector<32x256xf32>
    %38 = arith.mulf %37, %35 : vector<32x256xf32>
    %c0_22 = arith.constant 0 : index
    %c1 = arith.constant 1 : index
    %c0_23 = arith.constant 0 : index
    %c0_24 = arith.constant 0 : index
    %39 = vector.load %arg2[%c0_22, %c1, %c0_23, %c0_24] : memref<1x5x32x256xf32, #tpu.memory_space<vmem>>, vector<1x1x32x256xf32>
    %40 = vector.shape_cast %39 : vector<1x1x32x256xf32> to vector<32x256xf32>
    %cst_25 = arith.constant dense<0.000000e+00> : vector<96x256xf32>
    %41 = tpu.matmul %0, %40, %cst_25 {dimension_numbers = #tpu.dot_dimension_numbers<[1], [0], [0], [1], [0, 0, 1, 1], [], []>} : vector<96x32xf32>, vector<32x256xf32>, vector<96x256xf32> -> vector<96x256xf32>
    %42 = arith.addf %41, %5 : vector<96x256xf32>
    %cst_26 = arith.constant dense<0.000000e+00> : vector<96x256xf32>
    %43 = tpu.matmul %1, %38, %cst_26 {dimension_numbers = #tpu.dot_dimension_numbers<[1], [0], [0], [1], [0, 0, 1, 1], [], []>} : vector<96x32xf32>, vector<32x256xf32>, vector<96x256xf32> -> vector<96x256xf32>
    %44 = vector.extract_strided_slice %42 {offsets = [0, 0], sizes = [32, 256], strides = [1, 1]} : vector<96x256xf32> to vector<32x256xf32>
    %45 = vector.extract_strided_slice %43 {offsets = [0, 0], sizes = [32, 256], strides = [1, 1]} : vector<96x256xf32> to vector<32x256xf32>
    %46 = arith.addf %44, %45 : vector<32x256xf32>
    %cst_27 = arith.constant 5.000000e-01 : f32
    %47 = vector.broadcast %cst_27 : f32 to vector<32x256xf32>
    %48 = arith.mulf %47, %46 : vector<32x256xf32>
    %49 = math.tanh %48 : vector<32x256xf32>
    %cst_28 = arith.constant 5.000000e-01 : f32
    %50 = vector.broadcast %cst_28 : f32 to vector<32x256xf32>
    %51 = arith.mulf %50, %49 : vector<32x256xf32>
    %cst_29 = arith.constant 5.000000e-01 : f32
    %52 = vector.broadcast %cst_29 : f32 to vector<32x256xf32>
    %53 = arith.addf %51, %52 : vector<32x256xf32>
    %54 = vector.extract_strided_slice %42 {offsets = [32, 0], sizes = [32, 256], strides = [1, 1]} : vector<96x256xf32> to vector<32x256xf32>
    %55 = vector.extract_strided_slice %43 {offsets = [32, 0], sizes = [32, 256], strides = [1, 1]} : vector<96x256xf32> to vector<32x256xf32>
    %56 = arith.addf %54, %55 : vector<32x256xf32>
    %cst_30 = arith.constant 5.000000e-01 : f32
    %57 = vector.broadcast %cst_30 : f32 to vector<32x256xf32>
    %58 = arith.mulf %57, %56 : vector<32x256xf32>
    %59 = math.tanh %58 : vector<32x256xf32>
    %cst_31 = arith.constant 5.000000e-01 : f32
    %60 = vector.broadcast %cst_31 : f32 to vector<32x256xf32>
    %61 = arith.mulf %60, %59 : vector<32x256xf32>
    %cst_32 = arith.constant 5.000000e-01 : f32
    %62 = vector.broadcast %cst_32 : f32 to vector<32x256xf32>
    %63 = arith.addf %61, %62 : vector<32x256xf32>
    %64 = vector.extract_strided_slice %42 {offsets = [64, 0], sizes = [32, 256], strides = [1, 1]} : vector<96x256xf32> to vector<32x256xf32>
    %65 = vector.extract_strided_slice %43 {offsets = [64, 0], sizes = [32, 256], strides = [1, 1]} : vector<96x256xf32> to vector<32x256xf32>
    %66 = arith.addf %65, %8 : vector<32x256xf32>
    %67 = arith.mulf %53, %66 : vector<32x256xf32>
    %68 = arith.addf %64, %67 : vector<32x256xf32>
    %69 = math.tanh %68 : vector<32x256xf32>
    %cst_33 = arith.constant 1.000000e+00 : f32
    %70 = vector.broadcast %cst_33 : f32 to vector<32x256xf32>
    %71 = arith.subf %70, %63 : vector<32x256xf32>
    %72 = arith.mulf %71, %69 : vector<32x256xf32>
    %73 = arith.mulf %63, %38 : vector<32x256xf32>
    %74 = arith.addf %72, %73 : vector<32x256xf32>
    %c0_34 = arith.constant 0 : index
    %c2 = arith.constant 2 : index
    %c0_35 = arith.constant 0 : index
    %c0_36 = arith.constant 0 : index
    %75 = vector.load %arg2[%c0_34, %c2, %c0_35, %c0_36] : memref<1x5x32x256xf32, #tpu.memory_space<vmem>>, vector<1x1x32x256xf32>
    %76 = vector.shape_cast %75 : vector<1x1x32x256xf32> to vector<32x256xf32>
    %cst_37 = arith.constant dense<0.000000e+00> : vector<96x256xf32>
    %77 = tpu.matmul %0, %76, %cst_37 {dimension_numbers = #tpu.dot_dimension_numbers<[1], [0], [0], [1], [0, 0, 1, 1], [], []>} : vector<96x32xf32>, vector<32x256xf32>, vector<96x256xf32> -> vector<96x256xf32>
    %78 = arith.addf %77, %5 : vector<96x256xf32>
    %cst_38 = arith.constant dense<0.000000e+00> : vector<96x256xf32>
    %79 = tpu.matmul %1, %74, %cst_38 {dimension_numbers = #tpu.dot_dimension_numbers<[1], [0], [0], [1], [0, 0, 1, 1], [], []>} : vector<96x32xf32>, vector<32x256xf32>, vector<96x256xf32> -> vector<96x256xf32>
    %80 = vector.extract_strided_slice %78 {offsets = [0, 0], sizes = [32, 256], strides = [1, 1]} : vector<96x256xf32> to vector<32x256xf32>
    %81 = vector.extract_strided_slice %79 {offsets = [0, 0], sizes = [32, 256], strides = [1, 1]} : vector<96x256xf32> to vector<32x256xf32>
    %82 = arith.addf %80, %81 : vector<32x256xf32>
    %cst_39 = arith.constant 5.000000e-01 : f32
    %83 = vector.broadcast %cst_39 : f32 to vector<32x256xf32>
    %84 = arith.mulf %83, %82 : vector<32x256xf32>
    %85 = math.tanh %84 : vector<32x256xf32>
    %cst_40 = arith.constant 5.000000e-01 : f32
    %86 = vector.broadcast %cst_40 : f32 to vector<32x256xf32>
    %87 = arith.mulf %86, %85 : vector<32x256xf32>
    %cst_41 = arith.constant 5.000000e-01 : f32
    %88 = vector.broadcast %cst_41 : f32 to vector<32x256xf32>
    %89 = arith.addf %87, %88 : vector<32x256xf32>
    %90 = vector.extract_strided_slice %78 {offsets = [32, 0], sizes = [32, 256], strides = [1, 1]} : vector<96x256xf32> to vector<32x256xf32>
    %91 = vector.extract_strided_slice %79 {offsets = [32, 0], sizes = [32, 256], strides = [1, 1]} : vector<96x256xf32> to vector<32x256xf32>
    %92 = arith.addf %90, %91 : vector<32x256xf32>
    %cst_42 = arith.constant 5.000000e-01 : f32
    %93 = vector.broadcast %cst_42 : f32 to vector<32x256xf32>
    %94 = arith.mulf %93, %92 : vector<32x256xf32>
    %95 = math.tanh %94 : vector<32x256xf32>
    %cst_43 = arith.constant 5.000000e-01 : f32
    %96 = vector.broadcast %cst_43 : f32 to vector<32x256xf32>
    %97 = arith.mulf %96, %95 : vector<32x256xf32>
    %cst_44 = arith.constant 5.000000e-01 : f32
    %98 = vector.broadcast %cst_44 : f32 to vector<32x256xf32>
    %99 = arith.addf %97, %98 : vector<32x256xf32>
    %100 = vector.extract_strided_slice %78 {offsets = [64, 0], sizes = [32, 256], strides = [1, 1]} : vector<96x256xf32> to vector<32x256xf32>
    %101 = vector.extract_strided_slice %79 {offsets = [64, 0], sizes = [32, 256], strides = [1, 1]} : vector<96x256xf32> to vector<32x256xf32>
    %102 = arith.addf %101, %8 : vector<32x256xf32>
    %103 = arith.mulf %89, %102 : vector<32x256xf32>
    %104 = arith.addf %100, %103 : vector<32x256xf32>
    %105 = math.tanh %104 : vector<32x256xf32>
    %cst_45 = arith.constant 1.000000e+00 : f32
    %106 = vector.broadcast %cst_45 : f32 to vector<32x256xf32>
    %107 = arith.subf %106, %99 : vector<32x256xf32>
    %108 = arith.mulf %107, %105 : vector<32x256xf32>
    %109 = arith.mulf %99, %74 : vector<32x256xf32>
    %110 = arith.addf %108, %109 : vector<32x256xf32>
    %c0_46 = arith.constant 0 : index
    %c3 = arith.constant 3 : index
    %c0_47 = arith.constant 0 : index
    %c0_48 = arith.constant 0 : index
    %111 = vector.load %arg2[%c0_46, %c3, %c0_47, %c0_48] : memref<1x5x32x256xf32, #tpu.memory_space<vmem>>, vector<1x1x32x256xf32>
    %112 = vector.shape_cast %111 : vector<1x1x32x256xf32> to vector<32x256xf32>
    %cst_49 = arith.constant dense<0.000000e+00> : vector<96x256xf32>
    %113 = tpu.matmul %0, %112, %cst_49 {dimension_numbers = #tpu.dot_dimension_numbers<[1], [0], [0], [1], [0, 0, 1, 1], [], []>} : vector<96x32xf32>, vector<32x256xf32>, vector<96x256xf32> -> vector<96x256xf32>
    %114 = arith.addf %113, %5 : vector<96x256xf32>
    %cst_50 = arith.constant dense<0.000000e+00> : vector<96x256xf32>
    %115 = tpu.matmul %1, %110, %cst_50 {dimension_numbers = #tpu.dot_dimension_numbers<[1], [0], [0], [1], [0, 0, 1, 1], [], []>} : vector<96x32xf32>, vector<32x256xf32>, vector<96x256xf32> -> vector<96x256xf32>
    %116 = vector.extract_strided_slice %114 {offsets = [0, 0], sizes = [32, 256], strides = [1, 1]} : vector<96x256xf32> to vector<32x256xf32>
    %117 = vector.extract_strided_slice %115 {offsets = [0, 0], sizes = [32, 256], strides = [1, 1]} : vector<96x256xf32> to vector<32x256xf32>
    %118 = arith.addf %116, %117 : vector<32x256xf32>
    %cst_51 = arith.constant 5.000000e-01 : f32
    %119 = vector.broadcast %cst_51 : f32 to vector<32x256xf32>
    %120 = arith.mulf %119, %118 : vector<32x256xf32>
    %121 = math.tanh %120 : vector<32x256xf32>
    %cst_52 = arith.constant 5.000000e-01 : f32
    %122 = vector.broadcast %cst_52 : f32 to vector<32x256xf32>
    %123 = arith.mulf %122, %121 : vector<32x256xf32>
    %cst_53 = arith.constant 5.000000e-01 : f32
    %124 = vector.broadcast %cst_53 : f32 to vector<32x256xf32>
    %125 = arith.addf %123, %124 : vector<32x256xf32>
    %126 = vector.extract_strided_slice %114 {offsets = [32, 0], sizes = [32, 256], strides = [1, 1]} : vector<96x256xf32> to vector<32x256xf32>
    %127 = vector.extract_strided_slice %115 {offsets = [32, 0], sizes = [32, 256], strides = [1, 1]} : vector<96x256xf32> to vector<32x256xf32>
    %128 = arith.addf %126, %127 : vector<32x256xf32>
    %cst_54 = arith.constant 5.000000e-01 : f32
    %129 = vector.broadcast %cst_54 : f32 to vector<32x256xf32>
    %130 = arith.mulf %129, %128 : vector<32x256xf32>
    %131 = math.tanh %130 : vector<32x256xf32>
    %cst_55 = arith.constant 5.000000e-01 : f32
    %132 = vector.broadcast %cst_55 : f32 to vector<32x256xf32>
    %133 = arith.mulf %132, %131 : vector<32x256xf32>
    %cst_56 = arith.constant 5.000000e-01 : f32
    %134 = vector.broadcast %cst_56 : f32 to vector<32x256xf32>
    %135 = arith.addf %133, %134 : vector<32x256xf32>
    %136 = vector.extract_strided_slice %114 {offsets = [64, 0], sizes = [32, 256], strides = [1, 1]} : vector<96x256xf32> to vector<32x256xf32>
    %137 = vector.extract_strided_slice %115 {offsets = [64, 0], sizes = [32, 256], strides = [1, 1]} : vector<96x256xf32> to vector<32x256xf32>
    %138 = arith.addf %137, %8 : vector<32x256xf32>
    %139 = arith.mulf %125, %138 : vector<32x256xf32>
    %140 = arith.addf %136, %139 : vector<32x256xf32>
    %141 = math.tanh %140 : vector<32x256xf32>
    %cst_57 = arith.constant 1.000000e+00 : f32
    %142 = vector.broadcast %cst_57 : f32 to vector<32x256xf32>
    %143 = arith.subf %142, %135 : vector<32x256xf32>
    %144 = arith.mulf %143, %141 : vector<32x256xf32>
    %145 = arith.mulf %135, %110 : vector<32x256xf32>
    %146 = arith.addf %144, %145 : vector<32x256xf32>
    %c0_58 = arith.constant 0 : index
    %c4 = arith.constant 4 : index
    %c0_59 = arith.constant 0 : index
    %c0_60 = arith.constant 0 : index
    %147 = vector.load %arg2[%c0_58, %c4, %c0_59, %c0_60] : memref<1x5x32x256xf32, #tpu.memory_space<vmem>>, vector<1x1x32x256xf32>
    %148 = vector.shape_cast %147 : vector<1x1x32x256xf32> to vector<32x256xf32>
    %cst_61 = arith.constant dense<0.000000e+00> : vector<96x256xf32>
    %149 = tpu.matmul %0, %148, %cst_61 {dimension_numbers = #tpu.dot_dimension_numbers<[1], [0], [0], [1], [0, 0, 1, 1], [], []>} : vector<96x32xf32>, vector<32x256xf32>, vector<96x256xf32> -> vector<96x256xf32>
    %150 = arith.addf %149, %5 : vector<96x256xf32>
    %cst_62 = arith.constant dense<0.000000e+00> : vector<96x256xf32>
    %151 = tpu.matmul %1, %146, %cst_62 {dimension_numbers = #tpu.dot_dimension_numbers<[1], [0], [0], [1], [0, 0, 1, 1], [], []>} : vector<96x32xf32>, vector<32x256xf32>, vector<96x256xf32> -> vector<96x256xf32>
    %152 = vector.extract_strided_slice %150 {offsets = [0, 0], sizes = [32, 256], strides = [1, 1]} : vector<96x256xf32> to vector<32x256xf32>
    %153 = vector.extract_strided_slice %151 {offsets = [0, 0], sizes = [32, 256], strides = [1, 1]} : vector<96x256xf32> to vector<32x256xf32>
    %154 = arith.addf %152, %153 : vector<32x256xf32>
    %cst_63 = arith.constant 5.000000e-01 : f32
    %155 = vector.broadcast %cst_63 : f32 to vector<32x256xf32>
    %156 = arith.mulf %155, %154 : vector<32x256xf32>
    %157 = math.tanh %156 : vector<32x256xf32>
    %cst_64 = arith.constant 5.000000e-01 : f32
    %158 = vector.broadcast %cst_64 : f32 to vector<32x256xf32>
    %159 = arith.mulf %158, %157 : vector<32x256xf32>
    %cst_65 = arith.constant 5.000000e-01 : f32
    %160 = vector.broadcast %cst_65 : f32 to vector<32x256xf32>
    %161 = arith.addf %159, %160 : vector<32x256xf32>
    %162 = vector.extract_strided_slice %150 {offsets = [32, 0], sizes = [32, 256], strides = [1, 1]} : vector<96x256xf32> to vector<32x256xf32>
    %163 = vector.extract_strided_slice %151 {offsets = [32, 0], sizes = [32, 256], strides = [1, 1]} : vector<96x256xf32> to vector<32x256xf32>
    %164 = arith.addf %162, %163 : vector<32x256xf32>
    %cst_66 = arith.constant 5.000000e-01 : f32
    %165 = vector.broadcast %cst_66 : f32 to vector<32x256xf32>
    %166 = arith.mulf %165, %164 : vector<32x256xf32>
    %167 = math.tanh %166 : vector<32x256xf32>
    %cst_67 = arith.constant 5.000000e-01 : f32
    %168 = vector.broadcast %cst_67 : f32 to vector<32x256xf32>
    %169 = arith.mulf %168, %167 : vector<32x256xf32>
    %cst_68 = arith.constant 5.000000e-01 : f32
    %170 = vector.broadcast %cst_68 : f32 to vector<32x256xf32>
    %171 = arith.addf %169, %170 : vector<32x256xf32>
    %172 = vector.extract_strided_slice %150 {offsets = [64, 0], sizes = [32, 256], strides = [1, 1]} : vector<96x256xf32> to vector<32x256xf32>
    %173 = vector.extract_strided_slice %151 {offsets = [64, 0], sizes = [32, 256], strides = [1, 1]} : vector<96x256xf32> to vector<32x256xf32>
    %174 = arith.addf %173, %8 : vector<32x256xf32>
    %175 = arith.mulf %161, %174 : vector<32x256xf32>
    %176 = arith.addf %172, %175 : vector<32x256xf32>
    %177 = math.tanh %176 : vector<32x256xf32>
    %cst_69 = arith.constant 1.000000e+00 : f32
    %178 = vector.broadcast %cst_69 : f32 to vector<32x256xf32>
    %179 = arith.subf %178, %171 : vector<32x256xf32>
    %180 = arith.mulf %179, %177 : vector<32x256xf32>
    %181 = arith.mulf %171, %146 : vector<32x256xf32>
    %182 = arith.addf %180, %181 : vector<32x256xf32>
    %183 = vector.broadcast %9 : vector<32x1xf32> to vector<32x256xf32>
    %184 = arith.mulf %182, %183 : vector<32x256xf32>
    %185 = vector.broadcast %10 : vector<32x1xf32> to vector<32x256xf32>
    %186 = arith.addf %184, %185 : vector<32x256xf32>
    %cst_70 = arith.constant 0.000000e+00 : f32
    %187 = vector.broadcast %cst_70 : f32 to vector<32x256xf32>
    %188 = arith.maximumf %186, %187 : vector<32x256xf32>
    %c0_71 = arith.constant 0 : index
    %c0_72 = arith.constant 0 : index
    %c0_73 = arith.constant 0 : index
    %189 = vector.load %arg7[%c0_71, %c0_72, %c0_73] : memref<1x32x256xf32, #tpu.memory_space<vmem>>, vector<1x32x256xf32>
    %190 = vector.shape_cast %189 : vector<1x32x256xf32> to vector<32x256xf32>
    %191 = vector.shape_cast %188 : vector<32x256xf32> to vector<1x32x256xf32>
    tpu.vector_store %arg7[%c0_71, %c0_72, %c0_73], %191 {strides = array<i32>} : memref<1x32x256xf32, #tpu.memory_space<vmem>>, vector<1x32x256xf32>,
    %cst_74 = arith.constant dense<0.000000e+00> : vector<4x256xf32>
    %192 = tpu.matmul %2, %188, %cst_74 {dimension_numbers = #tpu.dot_dimension_numbers<[1], [0], [0], [1], [0, 0, 1, 1], [], []>} : vector<4x32xf32>, vector<32x256xf32>, vector<4x256xf32> -> vector<4x256xf32>
    %193 = vector.broadcast %11 : vector<4x1xf32> to vector<4x256xf32>
    %194 = arith.addf %192, %193 : vector<4x256xf32>
    %c0_75 = arith.constant 0 : index
    %c0_76 = arith.constant 0 : index
    %c0_77 = arith.constant 0 : index
    %195 = vector.load %arg8[%c0_75, %c0_76, %c0_77] : memref<1x4x256xf32, #tpu.memory_space<vmem>>, vector<1x4x256xf32>
    %196 = vector.shape_cast %195 : vector<1x4x256xf32> to vector<4x256xf32>
    %197 = vector.shape_cast %194 : vector<4x256xf32> to vector<1x4x256xf32>
    tpu.vector_store %arg8[%c0_75, %c0_76, %c0_77], %197 {strides = array<i32>} : memref<1x4x256xf32, #tpu.memory_space<vmem>>, vector<1x4x256xf32>,
    return
  }
  func.func @transform_0(%arg0: i32, %arg1: i32) -> (i32, i32, i32, i32) {
    %c0_i32 = arith.constant 0 : i32
    %c0_i32_0 = arith.constant 0 : i32
    %c0_i32_1 = arith.constant 0 : i32
    return %arg0, %c0_i32, %c0_i32_0, %arg1 : i32, i32, i32, i32
  }
  func.func @transform_1(%arg0: i32, %arg1: i32) -> (i32, i32) {
    %c0_i32 = arith.constant 0 : i32
    %c0_i32_0 = arith.constant 0 : i32
    %c0_i32_1 = arith.constant 0 : i32
    return %c0_i32, %c0_i32_0 : i32, i32
  }
  func.func @transform_2(%arg0: i32, %arg1: i32) -> (i32, i32) {
    %c0_i32 = arith.constant 0 : i32
    %c0_i32_0 = arith.constant 0 : i32
    %c0_i32_1 = arith.constant 0 : i32
    return %c0_i32, %c0_i32_0 : i32, i32
  }
  func.func @transform_3(%arg0: i32, %arg1: i32) -> (i32, i32) {
    %c0_i32 = arith.constant 0 : i32
    %c0_i32_0 = arith.constant 0 : i32
    %c0_i32_1 = arith.constant 0 : i32
    return %c0_i32, %c0_i32_0 : i32, i32
  }
  func.func @transform_4(%arg0: i32, %arg1: i32) -> (i32, i32) {
    %c0_i32 = arith.constant 0 : i32
    %c0_i32_0 = arith.constant 0 : i32
    %c0_i32_1 = arith.constant 0 : i32
    return %c0_i32, %c0_i32_0 : i32, i32
  }
  func.func @transform_5(%arg0: i32, %arg1: i32) -> (i32, i32, i32) {
    %c0_i32 = arith.constant 0 : i32
    %c0_i32_0 = arith.constant 0 : i32
    return %arg0, %c0_i32, %arg1 : i32, i32, i32
  }
  func.func @transform_6(%arg0: i32, %arg1: i32) -> (i32, i32, i32) {
    %c0_i32 = arith.constant 0 : i32
    %c0_i32_0 = arith.constant 0 : i32
    return %arg0, %c0_i32, %arg1 : i32, i32, i32
  }
}

module attributes {stable_mosaic.version = 11 : i64} {
  func.func @_gru_head_kernel(%arg0: i32, %arg1: i32, %arg2: memref<1x5x32x256xf32, #tpu.memory_space<vmem>>, %arg3: memref<96x32xf32, #tpu.memory_space<vmem>>, %arg4: memref<96x32xf32, #tpu.memory_space<vmem>>, %arg5: memref<4x32xf32, #tpu.memory_space<vmem>>, %arg6: memref<196x1xf32, #tpu.memory_space<vmem>>, %arg7: memref<1x32x256xf32, #tpu.memory_space<vmem>>, %arg8: memref<1x4x256xf32, #tpu.memory_space<vmem>>) attributes {dimension_semantics = [#tpu.dimension_semantics<parallel>, #tpu.dimension_semantics<parallel>], iteration_bounds = array<i64: 2, 1>, scalar_prefetch = 0 : i64, scratch_operands = 0 : i64, tpu.core_type = #tpu.core_type<tc>, window_params = [{transform_indices = @transform_0, window_bounds = array<i64: 1, 5, 32, 256>}, {pipeline_mode = #tpu.pipeline_mode<synchronous>, transform_indices = @transform_1, window_bounds = array<i64: 96, 32>}, {pipeline_mode = #tpu.pipeline_mode<synchronous>, transform_indices = @transform_2, window_bounds = array<i64: 96, 32>}, {pipeline_mode = #tpu.pipeline_mode<synchronous>, transform_indices = @transform_3, window_bounds = array<i64: 4, 32>}, {pipeline_mode = #tpu.pipeline_mode<synchronous>, transform_indices = @transform_4, window_bounds = array<i64: 196, 1>}, {transform_indices = @transform_5, window_bounds = array<i64: 1, 32, 256>}, {transform_indices = @transform_6, window_bounds = array<i64: 1, 4, 256>}]} {
    %c0 = arith.constant 0 : index
    %c0_0 = arith.constant 0 : index
    %0 = vector.load %arg3[%c0, %c0_0] : memref<96x32xf32, #tpu.memory_space<vmem>>, vector<96x32xf32>
    %c0_1 = arith.constant 0 : index
    %c0_2 = arith.constant 0 : index
    %1 = vector.load %arg4[%c0_1, %c0_2] : memref<96x32xf32, #tpu.memory_space<vmem>>, vector<96x32xf32>
    %c0_3 = arith.constant 0 : index
    %c0_4 = arith.constant 0 : index
    %2 = vector.load %arg5[%c0_3, %c0_4] : memref<4x32xf32, #tpu.memory_space<vmem>>, vector<4x32xf32>
    %c0_5 = arith.constant 0 : index
    %c0_6 = arith.constant 0 : index
    %3 = vector.load %arg6[%c0_5, %c0_6] : memref<196x1xf32, #tpu.memory_space<vmem>>, vector<96x1xf32>
    %4 = vector.shape_cast %3 : vector<96x1xf32> to vector<96x1xf32>
    %5 = vector.broadcast %4 : vector<96x1xf32> to vector<96x256xf32>
    %c96 = arith.constant 96 : index
    %c0_7 = arith.constant 0 : index
    %6 = vector.load %arg6[%c96, %c0_7] : memref<196x1xf32, #tpu.memory_space<vmem>>, vector<32x1xf32>
    %7 = vector.shape_cast %6 : vector<32x1xf32> to vector<32x1xf32>
    %8 = vector.broadcast %7 : vector<32x1xf32> to vector<32x256xf32>
    %c128 = arith.constant 128 : index
    %c0_8 = arith.constant 0 : index
    %9 = vector.load %arg6[%c128, %c0_8] : memref<196x1xf32, #tpu.memory_space<vmem>>, vector<32x1xf32>
    %c160 = arith.constant 160 : index
    %c0_9 = arith.constant 0 : index
    %10 = vector.load %arg6[%c160, %c0_9] : memref<196x1xf32, #tpu.memory_space<vmem>>, vector<32x1xf32>
    %c192 = arith.constant 192 : index
    %c0_10 = arith.constant 0 : index
    %11 = vector.load %arg6[%c192, %c0_10] : memref<196x1xf32, #tpu.memory_space<vmem>>, vector<4x1xf32>
    %c0_11 = arith.constant 0 : index
    %c0_12 = arith.constant 0 : index
    %c0_13 = arith.constant 0 : index
    %c0_14 = arith.constant 0 : index
    %12 = vector.load %arg2[%c0_11, %c0_12, %c0_13, %c0_14] : memref<1x5x32x256xf32, #tpu.memory_space<vmem>>, vector<1x1x32x256xf32>
    %13 = vector.shape_cast %12 : vector<1x1x32x256xf32> to vector<32x256xf32>
    %cst = arith.constant dense<0.000000e+00> : vector<96x256xf32>
    %14 = tpu.matmul %0, %13, %cst {dimension_numbers = #tpu.dot_dimension_numbers<[1], [0], [0], [1], [0, 0, 1, 1], [], []>} : vector<96x32xf32>, vector<32x256xf32>, vector<96x256xf32> -> vector<96x256xf32>
    %15 = arith.addf %14, %5 : vector<96x256xf32>
    %16 = vector.extract_strided_slice %15 {offsets = [0, 0], sizes = [32, 256], strides = [1, 1]} : vector<96x256xf32> to vector<32x256xf32>
    %cst_15 = arith.constant 5.000000e-01 : f32
    %17 = vector.broadcast %cst_15 : f32 to vector<32x256xf32>
    %18 = arith.mulf %17, %16 : vector<32x256xf32>
    %19 = math.tanh %18 : vector<32x256xf32>
    %cst_16 = arith.constant 5.000000e-01 : f32
    %20 = vector.broadcast %cst_16 : f32 to vector<32x256xf32>
    %21 = arith.mulf %20, %19 : vector<32x256xf32>
    %cst_17 = arith.constant 5.000000e-01 : f32
    %22 = vector.broadcast %cst_17 : f32 to vector<32x256xf32>
    %23 = arith.addf %21, %22 : vector<32x256xf32>
    %24 = vector.extract_strided_slice %15 {offsets = [32, 0], sizes = [32, 256], strides = [1, 1]} : vector<96x256xf32> to vector<32x256xf32>
    %cst_18 = arith.constant 5.000000e-01 : f32
    %25 = vector.broadcast %cst_18 : f32 to vector<32x256xf32>
    %26 = arith.mulf %25, %24 : vector<32x256xf32>
    %27 = math.tanh %26 : vector<32x256xf32>
    %cst_19 = arith.constant 5.000000e-01 : f32
    %28 = vector.broadcast %cst_19 : f32 to vector<32x256xf32>
    %29 = arith.mulf %28, %27 : vector<32x256xf32>
    %cst_20 = arith.constant 5.000000e-01 : f32
    %30 = vector.broadcast %cst_20 : f32 to vector<32x256xf32>
    %31 = arith.addf %29, %30 : vector<32x256xf32>
    %32 = vector.extract_strided_slice %15 {offsets = [64, 0], sizes = [32, 256], strides = [1, 1]} : vector<96x256xf32> to vector<32x256xf32>
    %33 = arith.mulf %23, %8 : vector<32x256xf32>
    %34 = arith.addf %32, %33 : vector<32x256xf32>
    %35 = math.tanh %34 : vector<32x256xf32>
    %cst_21 = arith.constant 1.000000e+00 : f32
    %36 = vector.broadcast %cst_21 : f32 to vector<32x256xf32>
    %37 = arith.subf %36, %31 : vector<32x256xf32>
    %38 = arith.mulf %37, %35 : vector<32x256xf32>
    %c0_22 = arith.constant 0 : index
    %c1 = arith.constant 1 : index
    %c0_23 = arith.constant 0 : index
    %c0_24 = arith.constant 0 : index
    %39 = vector.load %arg2[%c0_22, %c1, %c0_23, %c0_24] : memref<1x5x32x256xf32, #tpu.memory_space<vmem>>, vector<1x1x32x256xf32>
    %40 = vector.shape_cast %39 : vector<1x1x32x256xf32> to vector<32x256xf32>
    %cst_25 = arith.constant dense<0.000000e+00> : vector<96x256xf32>
    %41 = tpu.matmul %0, %40, %cst_25 {dimension_numbers = #tpu.dot_dimension_numbers<[1], [0], [0], [1], [0, 0, 1, 1], [], []>} : vector<96x32xf32>, vector<32x256xf32>, vector<96x256xf32> -> vector<96x256xf32>
    %42 = arith.addf %41, %5 : vector<96x256xf32>
    %cst_26 = arith.constant dense<0.000000e+00> : vector<96x256xf32>
    %43 = tpu.matmul %1, %38, %cst_26 {dimension_numbers = #tpu.dot_dimension_numbers<[1], [0], [0], [1], [0, 0, 1, 1], [], []>} : vector<96x32xf32>, vector<32x256xf32>, vector<96x256xf32> -> vector<96x256xf32>
    %44 = vector.extract_strided_slice %42 {offsets = [0, 0], sizes = [32, 256], strides = [1, 1]} : vector<96x256xf32> to vector<32x256xf32>
    %45 = vector.extract_strided_slice %43 {offsets = [0, 0], sizes = [32, 256], strides = [1, 1]} : vector<96x256xf32> to vector<32x256xf32>
    %46 = arith.addf %44, %45 : vector<32x256xf32>
    %cst_27 = arith.constant 5.000000e-01 : f32
    %47 = vector.broadcast %cst_27 : f32 to vector<32x256xf32>
    %48 = arith.mulf %47, %46 : vector<32x256xf32>
    %49 = math.tanh %48 : vector<32x256xf32>
    %cst_28 = arith.constant 5.000000e-01 : f32
    %50 = vector.broadcast %cst_28 : f32 to vector<32x256xf32>
    %51 = arith.mulf %50, %49 : vector<32x256xf32>
    %cst_29 = arith.constant 5.000000e-01 : f32
    %52 = vector.broadcast %cst_29 : f32 to vector<32x256xf32>
    %53 = arith.addf %51, %52 : vector<32x256xf32>
    %54 = vector.extract_strided_slice %42 {offsets = [32, 0], sizes = [32, 256], strides = [1, 1]} : vector<96x256xf32> to vector<32x256xf32>
    %55 = vector.extract_strided_slice %43 {offsets = [32, 0], sizes = [32, 256], strides = [1, 1]} : vector<96x256xf32> to vector<32x256xf32>
    %56 = arith.addf %54, %55 : vector<32x256xf32>
    %cst_30 = arith.constant 5.000000e-01 : f32
    %57 = vector.broadcast %cst_30 : f32 to vector<32x256xf32>
    %58 = arith.mulf %57, %56 : vector<32x256xf32>
    %59 = math.tanh %58 : vector<32x256xf32>
    %cst_31 = arith.constant 5.000000e-01 : f32
    %60 = vector.broadcast %cst_31 : f32 to vector<32x256xf32>
    %61 = arith.mulf %60, %59 : vector<32x256xf32>
    %cst_32 = arith.constant 5.000000e-01 : f32
    %62 = vector.broadcast %cst_32 : f32 to vector<32x256xf32>
    %63 = arith.addf %61, %62 : vector<32x256xf32>
    %64 = vector.extract_strided_slice %42 {offsets = [64, 0], sizes = [32, 256], strides = [1, 1]} : vector<96x256xf32> to vector<32x256xf32>
    %65 = vector.extract_strided_slice %43 {offsets = [64, 0], sizes = [32, 256], strides = [1, 1]} : vector<96x256xf32> to vector<32x256xf32>
    %66 = arith.addf %65, %8 : vector<32x256xf32>
    %67 = arith.mulf %53, %66 : vector<32x256xf32>
    %68 = arith.addf %64, %67 : vector<32x256xf32>
    %69 = math.tanh %68 : vector<32x256xf32>
    %cst_33 = arith.constant 1.000000e+00 : f32
    %70 = vector.broadcast %cst_33 : f32 to vector<32x256xf32>
    %71 = arith.subf %70, %63 : vector<32x256xf32>
    %72 = arith.mulf %71, %69 : vector<32x256xf32>
    %73 = arith.mulf %63, %38 : vector<32x256xf32>
    %74 = arith.addf %72, %73 : vector<32x256xf32>
    %c0_34 = arith.constant 0 : index
    %c2 = arith.constant 2 : index
    %c0_35 = arith.constant 0 : index
    %c0_36 = arith.constant 0 : index
    %75 = vector.load %arg2[%c0_34, %c2, %c0_35, %c0_36] : memref<1x5x32x256xf32, #tpu.memory_space<vmem>>, vector<1x1x32x256xf32>
    %76 = vector.shape_cast %75 : vector<1x1x32x256xf32> to vector<32x256xf32>
    %cst_37 = arith.constant dense<0.000000e+00> : vector<96x256xf32>
    %77 = tpu.matmul %0, %76, %cst_37 {dimension_numbers = #tpu.dot_dimension_numbers<[1], [0], [0], [1], [0, 0, 1, 1], [], []>} : vector<96x32xf32>, vector<32x256xf32>, vector<96x256xf32> -> vector<96x256xf32>
    %78 = arith.addf %77, %5 : vector<96x256xf32>
    %cst_38 = arith.constant dense<0.000000e+00> : vector<96x256xf32>
    %79 = tpu.matmul %1, %74, %cst_38 {dimension_numbers = #tpu.dot_dimension_numbers<[1], [0], [0], [1], [0, 0, 1, 1], [], []>} : vector<96x32xf32>, vector<32x256xf32>, vector<96x256xf32> -> vector<96x256xf32>
    %80 = vector.extract_strided_slice %78 {offsets = [0, 0], sizes = [32, 256], strides = [1, 1]} : vector<96x256xf32> to vector<32x256xf32>
    %81 = vector.extract_strided_slice %79 {offsets = [0, 0], sizes = [32, 256], strides = [1, 1]} : vector<96x256xf32> to vector<32x256xf32>
    %82 = arith.addf %80, %81 : vector<32x256xf32>
    %cst_39 = arith.constant 5.000000e-01 : f32
    %83 = vector.broadcast %cst_39 : f32 to vector<32x256xf32>
    %84 = arith.mulf %83, %82 : vector<32x256xf32>
    %85 = math.tanh %84 : vector<32x256xf32>
    %cst_40 = arith.constant 5.000000e-01 : f32
    %86 = vector.broadcast %cst_40 : f32 to vector<32x256xf32>
    %87 = arith.mulf %86, %85 : vector<32x256xf32>
    %cst_41 = arith.constant 5.000000e-01 : f32
    %88 = vector.broadcast %cst_41 : f32 to vector<32x256xf32>
    %89 = arith.addf %87, %88 : vector<32x256xf32>
    %90 = vector.extract_strided_slice %78 {offsets = [32, 0], sizes = [32, 256], strides = [1, 1]} : vector<96x256xf32> to vector<32x256xf32>
    %91 = vector.extract_strided_slice %79 {offsets = [32, 0], sizes = [32, 256], strides = [1, 1]} : vector<96x256xf32> to vector<32x256xf32>
    %92 = arith.addf %90, %91 : vector<32x256xf32>
    %cst_42 = arith.constant 5.000000e-01 : f32
    %93 = vector.broadcast %cst_42 : f32 to vector<32x256xf32>
    %94 = arith.mulf %93, %92 : vector<32x256xf32>
    %95 = math.tanh %94 : vector<32x256xf32>
    %cst_43 = arith.constant 5.000000e-01 : f32
    %96 = vector.broadcast %cst_43 : f32 to vector<32x256xf32>
    %97 = arith.mulf %96, %95 : vector<32x256xf32>
    %cst_44 = arith.constant 5.000000e-01 : f32
    %98 = vector.broadcast %cst_44 : f32 to vector<32x256xf32>
    %99 = arith.addf %97, %98 : vector<32x256xf32>
    %100 = vector.extract_strided_slice %78 {offsets = [64, 0], sizes = [32, 256], strides = [1, 1]} : vector<96x256xf32> to vector<32x256xf32>
    %101 = vector.extract_strided_slice %79 {offsets = [64, 0], sizes = [32, 256], strides = [1, 1]} : vector<96x256xf32> to vector<32x256xf32>
    %102 = arith.addf %101, %8 : vector<32x256xf32>
    %103 = arith.mulf %89, %102 : vector<32x256xf32>
    %104 = arith.addf %100, %103 : vector<32x256xf32>
    %105 = math.tanh %104 : vector<32x256xf32>
    %cst_45 = arith.constant 1.000000e+00 : f32
    %106 = vector.broadcast %cst_45 : f32 to vector<32x256xf32>
    %107 = arith.subf %106, %99 : vector<32x256xf32>
    %108 = arith.mulf %107, %105 : vector<32x256xf32>
    %109 = arith.mulf %99, %74 : vector<32x256xf32>
    %110 = arith.addf %108, %109 : vector<32x256xf32>
    %c0_46 = arith.constant 0 : index
    %c3 = arith.constant 3 : index
    %c0_47 = arith.constant 0 : index
    %c0_48 = arith.constant 0 : index
    %111 = vector.load %arg2[%c0_46, %c3, %c0_47, %c0_48] : memref<1x5x32x256xf32, #tpu.memory_space<vmem>>, vector<1x1x32x256xf32>
    %112 = vector.shape_cast %111 : vector<1x1x32x256xf32> to vector<32x256xf32>
    %cst_49 = arith.constant dense<0.000000e+00> : vector<96x256xf32>
    %113 = tpu.matmul %0, %112, %cst_49 {dimension_numbers = #tpu.dot_dimension_numbers<[1], [0], [0], [1], [0, 0, 1, 1], [], []>} : vector<96x32xf32>, vector<32x256xf32>, vector<96x256xf32> -> vector<96x256xf32>
    %114 = arith.addf %113, %5 : vector<96x256xf32>
    %cst_50 = arith.constant dense<0.000000e+00> : vector<96x256xf32>
    %115 = tpu.matmul %1, %110, %cst_50 {dimension_numbers = #tpu.dot_dimension_numbers<[1], [0], [0], [1], [0, 0, 1, 1], [], []>} : vector<96x32xf32>, vector<32x256xf32>, vector<96x256xf32> -> vector<96x256xf32>
    %116 = vector.extract_strided_slice %114 {offsets = [0, 0], sizes = [32, 256], strides = [1, 1]} : vector<96x256xf32> to vector<32x256xf32>
    %117 = vector.extract_strided_slice %115 {offsets = [0, 0], sizes = [32, 256], strides = [1, 1]} : vector<96x256xf32> to vector<32x256xf32>
    %118 = arith.addf %116, %117 : vector<32x256xf32>
    %cst_51 = arith.constant 5.000000e-01 : f32
    %119 = vector.broadcast %cst_51 : f32 to vector<32x256xf32>
    %120 = arith.mulf %119, %118 : vector<32x256xf32>
    %121 = math.tanh %120 : vector<32x256xf32>
    %cst_52 = arith.constant 5.000000e-01 : f32
    %122 = vector.broadcast %cst_52 : f32 to vector<32x256xf32>
    %123 = arith.mulf %122, %121 : vector<32x256xf32>
    %cst_53 = arith.constant 5.000000e-01 : f32
    %124 = vector.broadcast %cst_53 : f32 to vector<32x256xf32>
    %125 = arith.addf %123, %124 : vector<32x256xf32>
    %126 = vector.extract_strided_slice %114 {offsets = [32, 0], sizes = [32, 256], strides = [1, 1]} : vector<96x256xf32> to vector<32x256xf32>
    %127 = vector.extract_strided_slice %115 {offsets = [32, 0], sizes = [32, 256], strides = [1, 1]} : vector<96x256xf32> to vector<32x256xf32>
    %128 = arith.addf %126, %127 : vector<32x256xf32>
    %cst_54 = arith.constant 5.000000e-01 : f32
    %129 = vector.broadcast %cst_54 : f32 to vector<32x256xf32>
    %130 = arith.mulf %129, %128 : vector<32x256xf32>
    %131 = math.tanh %130 : vector<32x256xf32>
    %cst_55 = arith.constant 5.000000e-01 : f32
    %132 = vector.broadcast %cst_55 : f32 to vector<32x256xf32>
    %133 = arith.mulf %132, %131 : vector<32x256xf32>
    %cst_56 = arith.constant 5.000000e-01 : f32
    %134 = vector.broadcast %cst_56 : f32 to vector<32x256xf32>
    %135 = arith.addf %133, %134 : vector<32x256xf32>
    %136 = vector.extract_strided_slice %114 {offsets = [64, 0], sizes = [32, 256], strides = [1, 1]} : vector<96x256xf32> to vector<32x256xf32>
    %137 = vector.extract_strided_slice %115 {offsets = [64, 0], sizes = [32, 256], strides = [1, 1]} : vector<96x256xf32> to vector<32x256xf32>
    %138 = arith.addf %137, %8 : vector<32x256xf32>
    %139 = arith.mulf %125, %138 : vector<32x256xf32>
    %140 = arith.addf %136, %139 : vector<32x256xf32>
    %141 = math.tanh %140 : vector<32x256xf32>
    %cst_57 = arith.constant 1.000000e+00 : f32
    %142 = vector.broadcast %cst_57 : f32 to vector<32x256xf32>
    %143 = arith.subf %142, %135 : vector<32x256xf32>
    %144 = arith.mulf %143, %141 : vector<32x256xf32>
    %145 = arith.mulf %135, %110 : vector<32x256xf32>
    %146 = arith.addf %144, %145 : vector<32x256xf32>
    %c0_58 = arith.constant 0 : index
    %c4 = arith.constant 4 : index
    %c0_59 = arith.constant 0 : index
    %c0_60 = arith.constant 0 : index
    %147 = vector.load %arg2[%c0_58, %c4, %c0_59, %c0_60] : memref<1x5x32x256xf32, #tpu.memory_space<vmem>>, vector<1x1x32x256xf32>
    %148 = vector.shape_cast %147 : vector<1x1x32x256xf32> to vector<32x256xf32>
    %cst_61 = arith.constant dense<0.000000e+00> : vector<96x256xf32>
    %149 = tpu.matmul %0, %148, %cst_61 {dimension_numbers = #tpu.dot_dimension_numbers<[1], [0], [0], [1], [0, 0, 1, 1], [], []>} : vector<96x32xf32>, vector<32x256xf32>, vector<96x256xf32> -> vector<96x256xf32>
    %150 = arith.addf %149, %5 : vector<96x256xf32>
    %cst_62 = arith.constant dense<0.000000e+00> : vector<96x256xf32>
    %151 = tpu.matmul %1, %146, %cst_62 {dimension_numbers = #tpu.dot_dimension_numbers<[1], [0], [0], [1], [0, 0, 1, 1], [], []>} : vector<96x32xf32>, vector<32x256xf32>, vector<96x256xf32> -> vector<96x256xf32>
    %152 = vector.extract_strided_slice %150 {offsets = [0, 0], sizes = [32, 256], strides = [1, 1]} : vector<96x256xf32> to vector<32x256xf32>
    %153 = vector.extract_strided_slice %151 {offsets = [0, 0], sizes = [32, 256], strides = [1, 1]} : vector<96x256xf32> to vector<32x256xf32>
    %154 = arith.addf %152, %153 : vector<32x256xf32>
    %cst_63 = arith.constant 5.000000e-01 : f32
    %155 = vector.broadcast %cst_63 : f32 to vector<32x256xf32>
    %156 = arith.mulf %155, %154 : vector<32x256xf32>
    %157 = math.tanh %156 : vector<32x256xf32>
    %cst_64 = arith.constant 5.000000e-01 : f32
    %158 = vector.broadcast %cst_64 : f32 to vector<32x256xf32>
    %159 = arith.mulf %158, %157 : vector<32x256xf32>
    %cst_65 = arith.constant 5.000000e-01 : f32
    %160 = vector.broadcast %cst_65 : f32 to vector<32x256xf32>
    %161 = arith.addf %159, %160 : vector<32x256xf32>
    %162 = vector.extract_strided_slice %150 {offsets = [32, 0], sizes = [32, 256], strides = [1, 1]} : vector<96x256xf32> to vector<32x256xf32>
    %163 = vector.extract_strided_slice %151 {offsets = [32, 0], sizes = [32, 256], strides = [1, 1]} : vector<96x256xf32> to vector<32x256xf32>
    %164 = arith.addf %162, %163 : vector<32x256xf32>
    %cst_66 = arith.constant 5.000000e-01 : f32
    %165 = vector.broadcast %cst_66 : f32 to vector<32x256xf32>
    %166 = arith.mulf %165, %164 : vector<32x256xf32>
    %167 = math.tanh %166 : vector<32x256xf32>
    %cst_67 = arith.constant 5.000000e-01 : f32
    %168 = vector.broadcast %cst_67 : f32 to vector<32x256xf32>
    %169 = arith.mulf %168, %167 : vector<32x256xf32>
    %cst_68 = arith.constant 5.000000e-01 : f32
    %170 = vector.broadcast %cst_68 : f32 to vector<32x256xf32>
    %171 = arith.addf %169, %170 : vector<32x256xf32>
    %172 = vector.extract_strided_slice %150 {offsets = [64, 0], sizes = [32, 256], strides = [1, 1]} : vector<96x256xf32> to vector<32x256xf32>
    %173 = vector.extract_strided_slice %151 {offsets = [64, 0], sizes = [32, 256], strides = [1, 1]} : vector<96x256xf32> to vector<32x256xf32>
    %174 = arith.addf %173, %8 : vector<32x256xf32>
    %175 = arith.mulf %161, %174 : vector<32x256xf32>
    %176 = arith.addf %172, %175 : vector<32x256xf32>
    %177 = math.tanh %176 : vector<32x256xf32>
    %cst_69 = arith.constant 1.000000e+00 : f32
    %178 = vector.broadcast %cst_69 : f32 to vector<32x256xf32>
    %179 = arith.subf %178, %171 : vector<32x256xf32>
    %180 = arith.mulf %179, %177 : vector<32x256xf32>
    %181 = arith.mulf %171, %146 : vector<32x256xf32>
    %182 = arith.addf %180, %181 : vector<32x256xf32>
    %183 = vector.broadcast %9 : vector<32x1xf32> to vector<32x256xf32>
    %184 = arith.mulf %182, %183 : vector<32x256xf32>
    %185 = vector.broadcast %10 : vector<32x1xf32> to vector<32x256xf32>
    %186 = arith.addf %184, %185 : vector<32x256xf32>
    %cst_70 = arith.constant 0.000000e+00 : f32
    %187 = vector.broadcast %cst_70 : f32 to vector<32x256xf32>
    %188 = arith.maximumf %186, %187 : vector<32x256xf32>
    %c0_71 = arith.constant 0 : index
    %c0_72 = arith.constant 0 : index
    %c0_73 = arith.constant 0 : index
    %189 = vector.load %arg7[%c0_71, %c0_72, %c0_73] : memref<1x32x256xf32, #tpu.memory_space<vmem>>, vector<1x32x256xf32>
    %190 = vector.shape_cast %189 : vector<1x32x256xf32> to vector<32x256xf32>
    %191 = vector.shape_cast %188 : vector<32x256xf32> to vector<1x32x256xf32>
    tpu.vector_store %arg7[%c0_71, %c0_72, %c0_73], %191 {strides = array<i32>} : memref<1x32x256xf32, #tpu.memory_space<vmem>>, vector<1x32x256xf32>,
    %cst_74 = arith.constant dense<0.000000e+00> : vector<4x256xf32>
    %192 = tpu.matmul %2, %188, %cst_74 {dimension_numbers = #tpu.dot_dimension_numbers<[1], [0], [0], [1], [0, 0, 1, 1], [], []>} : vector<4x32xf32>, vector<32x256xf32>, vector<4x256xf32> -> vector<4x256xf32>
    %193 = vector.broadcast %11 : vector<4x1xf32> to vector<4x256xf32>
    %194 = arith.addf %192, %193 : vector<4x256xf32>
    %c0_75 = arith.constant 0 : index
    %c0_76 = arith.constant 0 : index
    %c0_77 = arith.constant 0 : index
    %195 = vector.load %arg8[%c0_75, %c0_76, %c0_77] : memref<1x4x256xf32, #tpu.memory_space<vmem>>, vector<1x4x256xf32>
    %196 = vector.shape_cast %195 : vector<1x4x256xf32> to vector<4x256xf32>
    %197 = vector.shape_cast %194 : vector<4x256xf32> to vector<1x4x256xf32>
    tpu.vector_store %arg8[%c0_75, %c0_76, %c0_77], %197 {strides = array<i32>} : memref<1x4x256xf32, #tpu.memory_space<vmem>>, vector<1x4x256xf32>,
    return
  }
  func.func @transform_0(%arg0: i32, %arg1: i32) -> (i32, i32, i32, i32) {
    %c0_i32 = arith.constant 0 : i32
    %c0_i32_0 = arith.constant 0 : i32
    %c0_i32_1 = arith.constant 0 : i32
    return %arg0, %c0_i32, %c0_i32_0, %arg1 : i32, i32, i32, i32
  }
  func.func @transform_1(%arg0: i32, %arg1: i32) -> (i32, i32) {
    %c0_i32 = arith.constant 0 : i32
    %c0_i32_0 = arith.constant 0 : i32
    %c0_i32_1 = arith.constant 0 : i32
    return %c0_i32, %c0_i32_0 : i32, i32
  }
  func.func @transform_2(%arg0: i32, %arg1: i32) -> (i32, i32) {
    %c0_i32 = arith.constant 0 : i32
    %c0_i32_0 = arith.constant 0 : i32
    %c0_i32_1 = arith.constant 0 : i32
    return %c0_i32, %c0_i32_0 : i32, i32
  }
  func.func @transform_3(%arg0: i32, %arg1: i32) -> (i32, i32) {
    %c0_i32 = arith.constant 0 : i32
    %c0_i32_0 = arith.constant 0 : i32
    %c0_i32_1 = arith.constant 0 : i32
    return %c0_i32, %c0_i32_0 : i32, i32
  }
  func.func @transform_4(%arg0: i32, %arg1: i32) -> (i32, i32) {
    %c0_i32 = arith.constant 0 : i32
    %c0_i32_0 = arith.constant 0 : i32
    %c0_i32_1 = arith.constant 0 : i32
    return %c0_i32, %c0_i32_0 : i32, i32
  }
  func.func @transform_5(%arg0: i32, %arg1: i32) -> (i32, i32, i32) {
    %c0_i32 = arith.constant 0 : i32
    %c0_i32_0 = arith.constant 0 : i32
    return %arg0, %c0_i32, %arg1 : i32, i32, i32
  }
  func.func @transform_6(%arg0: i32, %arg1: i32) -> (i32, i32, i32) {
    %c0_i32 = arith.constant 0 : i32
    %c0_i32_0 = arith.constant 0 : i32
    return %arg0, %c0_i32, %arg1 : i32, i32, i32
  }
}

</mosaic_0001>

<llo_original>
// kernel: tpu_custom_call.1
$region0: #{tpu_custom_call.1}
  #allocation0 [shape = 'u32[]', space=smem, size = 0x4, offset = 0x4, fixed_abs, tag = 'smem constant byte address 0x4 - core index']
  #allocation1 [shape = 'u32[144,128]{1,0:T(1,128)}', space=vmem, size = 0x12000, scoped, tag = 'internal scratch']
  %s0 = inlined_call_operand.hbm [shape: f32[2,5,32,256], index: 0, kind: input, shape index: {}]
  %s1 = inlined_call_operand.vmem [shape: f32[96,32], index: 1, kind: input, shape index: {}]
  %s2 = inlined_call_operand.vmem [shape: f32[96,32], index: 2, kind: input, shape index: {}]
  %s3 = inlined_call_operand.vmem [shape: f32[4,32], index: 3, kind: input, shape index: {}]
  %s4 = inlined_call_operand.vmem [shape: f32[196,1], index: 4, kind: input, shape index: {}]
  %s5 = inlined_call_operand.hbm [shape: f32[2,32,256], index: 5, kind: output, shape index: {0}]
  %s6 = inlined_call_operand.hbm [shape: f32[2,4,256], index: 6, kind: output, shape index: {1}]
  %7 = xla_tuple %s5, %s6
  %s8 = sld [smem:[#allocation0]]
  $region65: #{tpu_custom_call.1} parent=0
    _
  %s10 = ssub.s32 1, %s8
  %s11 = scalar_select 0, %s10, %s8
  $region1: #{tpu_custom_call.1} parent=0
    #allocation2 [shape = 'u8[327680]{0}', space=vmem, size = 0x50000, scoped, tag = 'input window, operand 0']
    #allocation3 [shape = 's32[2]{0}', space=sflag, size = 0x8, scoped, tag = 'scoped memory for tpu_custom_call.1']
    #allocation4 [shape = 's32[2]{0}', space=sflag, size = 0x8, scoped, tag = 'scoped memory for tpu_custom_call.1']
    #allocation5 [shape = 'u8[65536]{0}', space=vmem, size = 0x10000, scoped, tag = 'output window, operand 0']
    #allocation6 [shape = 'u8[8192]{0}', space=vmem, size = 0x2000, scoped, tag = 'output window, operand 1']
    #allocation7 [shape = 's32[2]{0}', space=sflag, size = 0x8, scoped, tag = 'scoped memory for tpu_custom_call.1']
    %12 = vsyncpa [#allocation3], 0
    %s13 = scalar_lea.sflag [#allocation3], 1
    %14 = vsyncpa %s13, 0
    %15 = vsyncpa [#allocation4], 0
    %s16 = scalar_lea.sflag [#allocation4], 1
    %17 = vsyncpa %s16, 0
    %18 = vsyncpa [#allocation7], 0
    %s19 = scalar_lea.sflag [#allocation7], 1
    %20 = vsyncpa %s19, 0
    loop: start=0, step=1, limit=4
    $region2: #{tpu_custom_call.1} parent=1 // loop_pre_header
      _
    $region3: #{tpu_custom_call.1} parent=1 // loop_header
      %s22 = sphi 0, %s26
      %p23 = scmp.ge.s32.totalorder %s22, 4
      %s29 = sphi 0, %s41
      %s30 = sphi 0, %s37
      %s31 = sphi 0, %s29
      %s32 = sphi 0, %s30
      %s33 = sphi 0, %s31
      %s34 = sphi 0, %s32
      %s46 = sphi 0, %s48
      %s49 = sphi 0, %s46
      %s50 = sphi 0, %s49
      %s66 = sphi 0, %s50
      %s70 = sphi 0, %s70
      %s72 = sphi 0, %s70
      %s73 = sphi 0, %s72
      %s87 = sphi 0, %s73
      %s91 = sphi 0, %s91
      %s93 = sphi 0, %s91
      %s94 = sphi 0, %s93
      %s108 = sphi 0, %s94
      %s112 = sphi 0, %s112
      %s114 = sphi 0, %s112
      %s115 = sphi 0, %s114
      %s129 = sphi 0, %s115
      %s133 = sphi 0, %s133
      %s135 = sphi 0, %s133
      %s136 = sphi 0, %s135
      %s150 = sphi 0, %s136
      %s158 = sphi 0, %s160
      %s161 = sphi 0, %s158
      %s162 = sphi 0, %s161
      %s178 = sphi 0, %s162
      %s186 = sphi 0, %s188
      %s189 = sphi 0, %s186
      %s190 = sphi 0, %s189
      %s206 = sphi 0, %s190
    $region4: #{tpu_custom_call.1} parent=1 // loop_header_branch
      %25 = sbr.rel (%p23) target = $region8
    $region5: #{tpu_custom_call.1} parent=1 // loop_body
      %s27 = ssub.s32 %s22, 1
      %s28 = ssub.s32 %s22, 2
      %s35 = sadd.s32 1, %s30
      %p36 = scmp.ge.s32.totalorder %s35, 1
      %s37 = scalar_select %p36, 0, %s35
      %s38 = sadd.s32 1, %s29
      %s39 = scalar_select %p36, %s38, %s29
      %p40 = scmp.ge.s32.totalorder %s39, 2
      %s41 = scalar_select %p40, 0, %s39
      %s42 = ssub.s32 %s29, %s41
      %s43 = ssub.s32 %s30, %s37
      %s44 = sor.u32 %s42, %s43
      %p45 = scmp.eq.s32.totalorder %s44, 0
      %s47 = sadd.s32 %s46, 1
      %s48 = scalar_select %p45, %s46, %s47
      %p51 = pneg %p45
      %p52 = scmp.eq.s32.totalorder %s22, 1
      %p53 = por %p51, %p52
      %p54 = scmp.ne.s32.totalorder %s46, %s49
      %p55 = scmp.eq.s32.totalorder %s22, 0
      %p56 = por %p54, %p55
      %p57 = scmp.ne.s32.totalorder %s46, %s49
      %p58 = scmp.eq.s32.totalorder %s27, 1
      %p59 = por %p57, %p58
      %p60 = scmp.ne.s32.totalorder %s49, %s50
      %p61 = scmp.eq.s32.totalorder %s27, 0
      %p62 = por %p60, %p61
      %p63 = scmp.ne.s32.totalorder %s49, %s50
      %p64 = scmp.eq.s32.totalorder %s28, 1
      %p65 = por %p63, %p64
      %p67 = scmp.ne.s32.totalorder %s50, %s66
      %p68 = scmp.eq.s32.totalorder %s28, 0
      %p69 = por %p67, %p68
      %s71 = sadd.s32 %s70, 1
      %p74 = scmp.eq.s32.totalorder %s22, 1
      %p75 = scmp.ne.s32.totalorder %s70, %s72
      %p76 = scmp.eq.s32.totalorder %s22, 0
      %p77 = por %p75, %p76
      %p78 = scmp.ne.s32.totalorder %s70, %s72
      %p79 = scmp.eq.s32.totalorder %s27, 1
      %p80 = por %p78, %p79
      %p81 = scmp.ne.s32.totalorder %s72, %s73
      %p82 = scmp.eq.s32.totalorder %s27, 0
      %p83 = por %p81, %p82
      %p84 = scmp.ne.s32.totalorder %s72, %s73
      %p85 = scmp.eq.s32.totalorder %s28, 1
      %p86 = por %p84, %p85
      %p88 = scmp.ne.s32.totalorder %s73, %s87
      %p89 = scmp.eq.s32.totalorder %s28, 0
      %p90 = por %p88, %p89
      %s92 = sadd.s32 %s91, 1
      %p95 = scmp.eq.s32.totalorder %s22, 1
      %p96 = scmp.ne.s32.totalorder %s91, %s93
      %p97 = scmp.eq.s32.totalorder %s22, 0
      %p98 = por %p96, %p97
      %p99 = scmp.ne.s32.totalorder %s91, %s93
      %p100 = scmp.eq.s32.totalorder %s27, 1
      %p101 = por %p99, %p100
      %p102 = scmp.ne.s32.totalorder %s93, %s94
      %p103 = scmp.eq.s32.totalorder %s27, 0
      %p104 = por %p102, %p103
      %p105 = scmp.ne.s32.totalorder %s93, %s94
      %p106 = scmp.eq.s32.totalorder %s28, 1
      %p107 = por %p105, %p106
      %p109 = scmp.ne.s32.totalorder %s94, %s108
      %p110 = scmp.eq.s32.totalorder %s28, 0
      %p111 = por %p109, %p110
      %s113 = sadd.s32 %s112, 1
      %p116 = scmp.eq.s32.totalorder %s22, 1
      %p117 = scmp.ne.s32.totalorder %s112, %s114
      %p118 = scmp.eq.s32.totalorder %s22, 0
      %p119 = por %p117, %p118
      %p120 = scmp.ne.s32.totalorder %s112, %s114
      %p121 = scmp.eq.s32.totalorder %s27, 1
      %p122 = por %p120, %p121
      %p123 = scmp.ne.s32.totalorder %s114, %s115
      %p124 = scmp.eq.s32.totalorder %s27, 0
      %p125 = por %p123, %p124
      %p126 = scmp.ne.s32.totalorder %s114, %s115
      %p127 = scmp.eq.s32.totalorder %s28, 1
      %p128 = por %p126, %p127
      %p130 = scmp.ne.s32.totalorder %s115, %s129
      %p131 = scmp.eq.s32.totalorder %s28, 0
      %p132 = por %p130, %p131
      %s134 = sadd.s32 %s133, 1
      %p137 = scmp.eq.s32.totalorder %s22, 1
      %p138 = scmp.ne.s32.totalorder %s133, %s135
      %p139 = scmp.eq.s32.totalorder %s22, 0
      %p140 = por %p138, %p139
      %p141 = scmp.ne.s32.totalorder %s133, %s135
      %p142 = scmp.eq.s32.totalorder %s27, 1
      %p143 = por %p141, %p142
      %p144 = scmp.ne.s32.totalorder %s135, %s136
      %p145 = scmp.eq.s32.totalorder %s27, 0
      %p146 = por %p144, %p145
      %p147 = scmp.ne.s32.totalorder %s135, %s136
      %p148 = scmp.eq.s32.totalorder %s28, 1
      %p149 = por %p147, %p148
      %p151 = scmp.ne.s32.totalorder %s136, %s150
      %p152 = scmp.eq.s32.totalorder %s28, 0
      %p153 = por %p151, %p152
      %s154 = ssub.s32 %s29, %s41
      %s155 = ssub.s32 %s30, %s37
      %s156 = sor.u32 %s154, %s155
      %p157 = scmp.eq.s32.totalorder %s156, 0
      %s159 = sadd.s32 %s158, 1
      %s160 = scalar_select %p157, %s158, %s159
      %p163 = pneg %p157
      %p164 = scmp.eq.s32.totalorder %s22, 1
      %p165 = por %p163, %p164
      %p166 = scmp.ne.s32.totalorder %s158, %s161
      %p167 = scmp.eq.s32.totalorder %s22, 0
      %p168 = por %p166, %p167
      %p169 = scmp.ne.s32.totalorder %s158, %s161
      %p170 = scmp.eq.s32.totalorder %s27, 1
      %p171 = por %p169, %p170
      %p172 = scmp.ne.s32.totalorder %s161, %s162
      %p173 = scmp.eq.s32.totalorder %s27, 0
      %p174 = por %p172, %p173
      %p175 = scmp.ne.s32.totalorder %s161, %s162
      %p176 = scmp.eq.s32.totalorder %s28, 1
      %p177 = por %p175, %p176
      %p179 = scmp.ne.s32.totalorder %s162, %s178
      %p180 = scmp.eq.s32.totalorder %s28, 0
      %p181 = por %p179, %p180
      %s182 = ssub.s32 %s29, %s41
      %s183 = ssub.s32 %s30, %s37
      %s184 = sor.u32 %s182, %s183
      %p185 = scmp.eq.s32.totalorder %s184, 0
      %s187 = sadd.s32 %s186, 1
      %s188 = scalar_select %p185, %s186, %s187
      %p191 = pneg %p185
      %p192 = scmp.eq.s32.totalorder %s22, 1
      %p193 = por %p191, %p192
      %p194 = scmp.ne.s32.totalorder %s186, %s189
      %p195 = scmp.eq.s32.totalorder %s22, 0
      %p196 = por %p194, %p195
      %p197 = scmp.ne.s32.totalorder %s186, %s189
      %p198 = scmp.eq.s32.totalorder %s27, 1
      %p199 = por %p197, %p198
      %p200 = scmp.ne.s32.totalorder %s189, %s190
      %p201 = scmp.eq.s32.totalorder %s27, 0
      %p202 = por %p200, %p201
      %p203 = scmp.ne.s32.totalorder %s189, %s190
      %p204 = scmp.eq.s32.totalorder %s28, 1
      %p205 = por %p203, %p204
      %p207 = scmp.ne.s32.totalorder %s190, %s206
      %p208 = scmp.eq.s32.totalorder %s28, 0
      %p209 = por %p207, %p208
      %p210 = scmp.le.s32.totalorder 1, %s22
      %p211 = scmp.lt.s32.totalorder %s22, 3
      %p212 = pnand %p210, %p211
      %p213 = pneg %p212
      // Predicated region
      $region9: #{tpu_custom_call.1} parent=5 // pred_check
        _
      $region10: #{tpu_custom_call.1} parent=5 // pred_check_branch
        %215 = sbr.rel (%p212) target = $region12
      $region11: #{tpu_custom_call.1} parent=5 // pred_region
        %s216 = ssub.s32 %s22, 1
        // Predicated region
        $region13: #{tpu_custom_call.1} parent=11 // pred_check
          %p217 = pneg %p83
        $region14: #{tpu_custom_call.1} parent=11 // pred_check_branch
          %219 = sbr.rel (%p217) target = $region16
        $region15: #{tpu_custom_call.1} parent=11 // pred_region
          _
        $region16: #{tpu_custom_call.1} parent=11 // pred_fallthru
          _
        // Predicated region
        $region17: #{tpu_custom_call.1} parent=11 // pred_check
          %p220 = pneg %p104
        $region18: #{tpu_custom_call.1} parent=11 // pred_check_branch
          %222 = sbr.rel (%p220) target = $region20
        $region19: #{tpu_custom_call.1} parent=11 // pred_region
          _
        $region20: #{tpu_custom_call.1} parent=11 // pred_fallthru
          _
        // Predicated region
        $region21: #{tpu_custom_call.1} parent=11 // pred_check
          %p223 = pneg %p125
        $region22: #{tpu_custom_call.1} parent=11 // pred_check_branch
          %225 = sbr.rel (%p223) target = $region24
        $region23: #{tpu_custom_call.1} parent=11 // pred_region
          _
        $region24: #{tpu_custom_call.1} parent=11 // pred_fallthru
          _
        // Predicated region
        $region25: #{tpu_custom_call.1} parent=11 // pred_check
          %p226 = pneg %p146
        $region26: #{tpu_custom_call.1} parent=11 // pred_check_branch
          %228 = sbr.rel (%p226) target = $region28
        $region27: #{tpu_custom_call.1} parent=11 // pred_region
          _
        $region28: #{tpu_custom_call.1} parent=11 // pred_fallthru
          _
      $region12: #{tpu_custom_call.1} parent=5 // pred_fallthru
        _
      %p229 = scmp.lt.s32.totalorder %s22, 2
      // Predicated region
      $region29: #{tpu_custom_call.1} parent=5 // pred_check
        %p230 = pneg %p229
      $region30: #{tpu_custom_call.1} parent=5 // pred_check_branch
        %232 = sbr.rel (%p230) target = $region32
      $region31: #{tpu_custom_call.1} parent=5 // pred_region
        // Predicated region
        $region33: #{tpu_custom_call.1} parent=31 // pred_check
          %p233 = pneg %p56
        $region34: #{tpu_custom_call.1} parent=31 // pred_check_branch
          %235 = sbr.rel (%p233) target = $region36
        $region35: #{tpu_custom_call.1} parent=31 // pred_region
          %s236 = sand.u32 %s46, 1
          %s237 = scalar_lea.sflag [#allocation3], %s236
          %s238 = sand.u32 %s46, 1
          %s239 = smul.addr %s238, 320
          %s240 = scalar_lea.vmem [#allocation2], %s239
          %s241 = smul.u32 2, %s30
          %s243 = ssub.s32 5120, 5120
          %244 = vsyncadd %s237, %s243
          %s245 = smul.addr %s29, 40
          %s246 = sadd.s32 %s241, %s245
          %s247 = smul.addr %s246, 128
          %s248 = scalar_lea.hbm %s0, %s247
          %s249 = sshll.u32 %s240, 4
          %s250 = int_to_ptr.vmem [resolvable:$true] %s249
          %255 = dma.hbm_to_vmem [thread:$0]  %s248, 5120, %s250, %s237, 256, 256, 16
        $region36: #{tpu_custom_call.1} parent=31 // pred_fallthru
          _
      $region32: #{tpu_custom_call.1} parent=5 // pred_fallthru
        _
      %p256 = scmp.le.s32.totalorder 1, %s22
      %p257 = scmp.lt.s32.totalorder %s22, 3
      %p258 = pnand %p256, %p257
      %p259 = pneg %p258
      // Predicated region
      $region37: #{tpu_custom_call.1} parent=5 // pred_check
        _
      $region38: #{tpu_custom_call.1} parent=5 // pred_check_branch
        %261 = sbr.rel (%p258) target = $region40
      $region39: #{tpu_custom_call.1} parent=5 // pred_region
        %s262 = ssub.s32 %s22, 1
        %s263 = sand.u32 %s49, 1
        %s264 = scalar_lea.sflag [#allocation3], %s263
        %s265 = sand.u32 %s49, 1
        %s266 = smul.addr %s265, 320
        %s267 = scalar_lea.vmem [#allocation2], %s266
        // Predicated region
        $region41: #{tpu_custom_call.1} parent=39 // pred_check
          %p268 = pneg %p62
        $region42: #{tpu_custom_call.1} parent=39 // pred_check_branch
          %270 = sbr.rel (%p268) target = $region44
        $region43: #{tpu_custom_call.1} parent=39 // pred_region
          %271 = dma.done %s264, 5120
        $region44: #{tpu_custom_call.1} parent=39 // pred_fallthru
          _
        %s272 = sand.u32 %s49, 1
        %s273 = scalar_lea.sflag [#allocation3], %s272
        %s274 = sand.u32 %s49, 1
        %s275 = smul.addr %s274, 320
        %s276 = scalar_lea.vmem [#allocation2], %s275
        %p277 = pneg %p62
        %p278 = pneg %p59
        %p279 = pneg %p83
        %p280 = pneg %p80
        %p281 = pneg %p104
        %p282 = pneg %p101
        %p283 = pneg %p125
        %p284 = pneg %p122
        %p285 = pneg %p146
        %p286 = pneg %p143
        %p287 = pneg %p174
        %p288 = pneg %p171
        %s289 = sand.u32 %s161, 1
        %s290 = scalar_lea.sflag [#allocation4], %s289
        %s291 = sand.u32 %s161, 1
        %s292 = smul.addr %s291, 64
        %s293 = scalar_lea.vmem [#allocation5], %s292
        %p294 = pneg %p202
        %p295 = pneg %p199
        %s296 = sand.u32 %s189, 1
        %s297 = scalar_lea.sflag [#allocation7], %s296
        %s298 = sand.u32 %s189, 1
        %s299 = smul.addr %s298, 8
        %s300 = scalar_lea.vmem [#allocation6], %s299
        %s301 = smul.u32 2, %s32
        %s302 = smul.u32 2, %s32
        %s303 = smul.u32 2, %s32
        %v304 = vld [vmem:[%s1] sm:$0xff]
        %v305 = vld [vmem:[%s1 + $0x8] sm:$0xff]
        %v306 = vld [vmem:[%s1 + $0x10] sm:$0xff]
        %v307 = vld [vmem:[%s1 + $0x18] sm:$0xff]
        %v308 = vld [vmem:[%s1 + $0x20] sm:$0xff]
        %v309 = vld [vmem:[%s1 + $0x28] sm:$0xff]
        %v310 = vld [vmem:[%s1 + $0x30] sm:$0xff]
        %v311 = vld [vmem:[%s1 + $0x38] sm:$0xff]
        %v312 = vld [vmem:[%s1 + $0x40] sm:$0xff]
        %v313 = vld [vmem:[%s1 + $0x48] sm:$0xff]
        %v314 = vld [vmem:[%s1 + $0x50] sm:$0xff]
        %v315 = vld [vmem:[%s1 + $0x58] sm:$0xff]
        %v316 = vld [vmem:[%s2] sm:$0xff]
        %v317 = vld [vmem:[%s2 + $0x8] sm:$0xff]
        %v318 = vld [vmem:[%s2 + $0x10] sm:$0xff]
        %v319 = vld [vmem:[%s2 + $0x18] sm:$0xff]
        %v320 = vld [vmem:[%s2 + $0x20] sm:$0xff]
        %v321 = vld [vmem:[%s2 + $0x28] sm:$0xff]
        %v322 = vld [vmem:[%s2 + $0x30] sm:$0xff]
        %v323 = vld [vmem:[%s2 + $0x38] sm:$0xff]
        %v324 = vld [vmem:[%s2 + $0x40] sm:$0xff]
        %v325 = vld [vmem:[%s2 + $0x48] sm:$0xff]
        %v326 = vld [vmem:[%s2 + $0x50] sm:$0xff]
        %v327 = vld [vmem:[%s2 + $0x58] sm:$0xff]
        %v328 = vld [vmem:[%s3] sm:$0xf]
        %v329 = vld [vmem:[%s4] sm:$0xff]
        %v330 = vld [vmem:[%s4 + $0x8] sm:$0xff]
        %v331 = vld [vmem:[%s4 + $0x10] sm:$0xff]
        %v332 = vld [vmem:[%s4 + $0x18] sm:$0xff]
        %v333 = vld [vmem:[%s4 + $0x20] sm:$0xff]
        %v334 = vld [vmem:[%s4 + $0x28] sm:$0xff]
        %v335 = vld [vmem:[%s4 + $0x30] sm:$0xff]
        %v336 = vld [vmem:[%s4 + $0x38] sm:$0xff]
        %v337 = vld [vmem:[%s4 + $0x40] sm:$0xff]
        %v338 = vld [vmem:[%s4 + $0x48] sm:$0xff]
        %v339 = vld [vmem:[%s4 + $0x50] sm:$0xff]
        %v340 = vld [vmem:[%s4 + $0x58] sm:$0xff]
        %342 = vset.pattern.permute.xlu0 0
        %343 = vperm.xlu0 %342, %v329
        %v344 = vpop.permute.xlu0 %343
        %347 = vset.pattern.permute.xlu0 0
        %348 = vperm.xlu0 %347, %v330
        %v349 = vpop.permute.xlu0 %348
        %352 = vset.pattern.permute.xlu0 0
        %353 = vperm.xlu0 %352, %v331
        %v354 = vpop.permute.xlu0 %353
        %357 = vset.pattern.permute.xlu0 0
        %358 = vperm.xlu0 %357, %v332
        %v359 = vpop.permute.xlu0 %358
        %362 = vset.pattern.permute.xlu0 0
        %363 = vperm.xlu0 %362, %v333
        %v364 = vpop.permute.xlu0 %363
        %367 = vset.pattern.permute.xlu0 0
        %368 = vperm.xlu0 %367, %v334
        %v369 = vpop.permute.xlu0 %368
        %372 = vset.pattern.permute.xlu0 0
        %373 = vperm.xlu0 %372, %v335
        %v374 = vpop.permute.xlu0 %373
        %377 = vset.pattern.permute.xlu0 0
        %378 = vperm.xlu0 %377, %v336
        %v379 = vpop.permute.xlu0 %378
        %382 = vset.pattern.permute.xlu0 0
        %383 = vperm.xlu0 %382, %v337
        %v384 = vpop.permute.xlu0 %383
        %387 = vset.pattern.permute.xlu0 0
        %388 = vperm.xlu0 %387, %v338
        %v389 = vpop.permute.xlu0 %388
        %392 = vset.pattern.permute.xlu0 0
        %393 = vperm.xlu0 %392, %v339
        %v394 = vpop.permute.xlu0 %393
        %397 = vset.pattern.permute.xlu0 0
        %398 = vperm.xlu0 %397, %v340
        %v399 = vpop.permute.xlu0 %398
        %v401 = vld [vmem:[%s4 + $0x60] sm:$0xff]
        %v402 = vld [vmem:[%s4 + $0x68] sm:$0xff]
        %v403 = vld [vmem:[%s4 + $0x70] sm:$0xff]
        %v404 = vld [vmem:[%s4 + $0x78] sm:$0xff]
        %406 = vset.pattern.permute.xlu0 0
        %407 = vperm.xlu0 %406, %v401
        %v408 = vpop.permute.xlu0 %407
        %411 = vset.pattern.permute.xlu0 0
        %412 = vperm.xlu0 %411, %v402
        %v413 = vpop.permute.xlu0 %412
        %416 = vset.pattern.permute.xlu0 0
        %417 = vperm.xlu0 %416, %v403
        %v418 = vpop.permute.xlu0 %417
        %421 = vset.pattern.permute.xlu0 0
        %422 = vperm.xlu0 %421, %v404
        %v423 = vpop.permute.xlu0 %422
        %v425 = vld [vmem:[%s4 + $0x80] sm:$0xff]
        %v426 = vld [vmem:[%s4 + $0x88] sm:$0xff]
        %v427 = vld [vmem:[%s4 + $0x90] sm:$0xff]
        %v428 = vld [vmem:[%s4 + $0x98] sm:$0xff]
        %v429 = vld [vmem:[%s4 + $0xa0] sm:$0xff]
        %v430 = vld [vmem:[%s4 + $0xa8] sm:$0xff]
        %v431 = vld [vmem:[%s4 + $0xb0] sm:$0xff]
        %v432 = vld [vmem:[%s4 + $0xb8] sm:$0xff]
        %v433 = vld [vmem:[%s4 + $0xc0] sm:$0xf]
        %v434 = vld [vmem:[%s267] sm:$0xff]
        %v435 = vld [vmem:[%s267 + $0x8] sm:$0xff]
        %v436 = vld [vmem:[%s267 + $0x10] sm:$0xff]
        %v437 = vld [vmem:[%s267 + $0x18] sm:$0xff]
        %v438 = vld [vmem:[%s267 + $0x20] sm:$0xff]
        %v439 = vld [vmem:[%s267 + $0x28] sm:$0xff]
        %v440 = vld [vmem:[%s267 + $0x30] sm:$0xff]
        %v441 = vld [vmem:[%s267 + $0x38] sm:$0xff]
        %vm442 = vcmask 261120
        %v444 = vsel %vm442, %v304, 0
        %v447 = vsel %vm442, %v305, 0
        %v450 = vsel %vm442, %v306, 0
        %v453 = vsel %vm442, %v307, 0
        %v456 = vsel %vm442, %v308, 0
        %v459 = vsel %vm442, %v309, 0
        %v462 = vsel %vm442, %v310, 0
        %v465 = vsel %vm442, %v311, 0
        %v468 = vsel %vm442, %v312, 0
        %v471 = vsel %vm442, %v313, 0
        %v474 = vsel %vm442, %v314, 0
        %v477 = vsel %vm442, %v315, 0
        %479 = vmatprep.subr.mxu0 %v435
        %480 = vmatpush1.msra.mxu0 %v434
        %481 = vmatprep.subr.mxu0 %v437
        %482 = vmatpush1.msra.mxu0 %v436
        %483 = vmatprep.subr.mxu0 %v439
        %484 = vmatpush1.msra.mxu0 %v438
        %485 = vmatprep.subr.mxu0 %v441
        %486 = vmatpush1.msra.mxu0 %v440
        %487 = vmatprep.subr.mxu0 0.0
        %488 = vmatpush1.msra.mxu0 0.0
        %489 = vmatprep.subr.mxu0 0.0
        %490 = vmatpush1.msra.mxu0 0.0
        %491 = vmatprep.subr.mxu0 0.0
        %492 = vmatpush1.msra.mxu0 0.0
        %493 = vmatprep.subr.mxu0 0.0
        %494 = vmatpush1.msra.mxu0 0.0
        %495 = vmatprep.subr.mxu0 0.0
        %496 = vmatpush1.msra.mxu0 0.0
        %497 = vmatprep.subr.mxu0 0.0
        %498 = vmatpush1.msra.mxu0 0.0
        %499 = vmatprep.subr.mxu0 0.0
        %500 = vmatpush1.msra.mxu0 0.0
        %501 = vmatprep.subr.mxu0 0.0
        %502 = vmatpush1.msra.mxu0 0.0
        %503 = vmatprep.subr.mxu0 0.0
        %504 = vmatpush1.msra.mxu0 0.0
        %505 = vmatprep.subr.mxu0 0.0
        %506 = vmatpush1.msra.mxu0 0.0
        %507 = vmatprep.subr.mxu0 0.0
        %508 = vmatpush1.msra.mxu0 0.0
        %509 = vmatprep.subr.mxu0 0.0
        %510 = vmatpush1.msra.mxu0 0.0
        %511 = vmatprep.subr.mxu0 0.0
        %512 = vmatpush1.msra.mxu0 0.0
        %513 = vmatprep.subr.mxu0 0.0
        %514 = vmatpush1.msra.mxu0 0.0
        %515 = vmatprep.subr.mxu0 0.0
        %516 = vmatpush1.msra.mxu0 0.0
        %517 = vmatprep.subr.mxu0 0.0
        %518 = vmatpush1.msra.mxu0 0.0
        %519 = vmatprep.subr.mxu0 0.0
        %520 = vmatpush1.msra.mxu0 0.0
        %521 = vmatprep.subr.mxu0 0.0
        %522 = vmatpush1.msra.mxu0 0.0
        %523 = vmatprep.subr.mxu0 0.0
        %524 = vmatpush1.msra.mxu0 0.0
        %525 = vmatprep.subr.mxu0 0.0
        %526 = vmatpush1.msra.mxu0 0.0
        %527 = vmatprep.subr.mxu0 0.0
        %528 = vmatpush1.msra.mxu0 0.0
        %529 = vmatprep.subr.mxu0 0.0
        %530 = vmatpush1.msra.mxu0 0.0
        %531 = vmatprep.subr.mxu0 0.0
        %532 = vmatpush1.msra.mxu0 0.0
        %533 = vmatprep.subr.mxu0 0.0
        %534 = vmatpush1.msra.mxu0 0.0
        %535 = vmatprep.subr.mxu0 0.0
        %536 = vmatpush1.msra.mxu0 0.0
        %537 = vmatprep.subr.mxu0 0.0
        %538 = vmatpush1.msra.mxu0 0.0
        %539 = vmatprep.subr.mxu0 0.0
        %540 = vmatpush1.msra.mxu0 0.0
        %541 = vmatprep.subr.mxu0 0.0
        %542 = vmatpush1.msra.mxu0 0.0
        %543 = vmatprep.mubr.f32.mxu0 0.0
        %544 = vmatmul.mubr.f32.gmra.mrb[0].mxu0 %v444
        %v545 = vpop.f32.mrb[0].mxu0
        %v546 = vadd.f32 %v344, %v545
        %v547 = vpop.f32.mrb[0].mxu0
        %v548 = vadd.f32 %v344, %v547
        %549 = vmatprep.mubr.f32.mxu0 0.0
        %550 = vmatmul.mubr.f32.gmra.mrb[0].mxu0 %v447
        %v551 = vpop.f32.mrb[0].mxu0
        %v552 = vadd.f32 %v349, %v551
        %v553 = vpop.f32.mrb[0].mxu0
        %v554 = vadd.f32 %v349, %v553
        %555 = vmatprep.mubr.f32.mxu0 0.0
        %556 = vmatmul.mubr.f32.gmra.mrb[0].mxu0 %v450
        %v557 = vpop.f32.mrb[0].mxu0
        %v558 = vadd.f32 %v354, %v557
        %v559 = vpop.f32.mrb[0].mxu0
        %v560 = vadd.f32 %v354, %v559
        %561 = vmatprep.mubr.f32.mxu0 0.0
        %562 = vmatmul.mubr.f32.gmra.mrb[0].mxu0 %v453
        %v563 = vpop.f32.mrb[0].mxu0
        %v564 = vadd.f32 %v359, %v563
        %v565 = vpop.f32.mrb[0].mxu0
        %v566 = vadd.f32 %v359, %v565
        %567 = vmatprep.mubr.f32.mxu0 0.0
        %568 = vmatmul.mubr.f32.gmra.mrb[0].mxu0 %v456
        %v569 = vpop.f32.mrb[0].mxu0
        %v570 = vadd.f32 %v364, %v569
        %v571 = vpop.f32.mrb[0].mxu0
        %v572 = vadd.f32 %v364, %v571
        %573 = vmatprep.mubr.f32.mxu0 0.0
        %574 = vmatmul.mubr.f32.gmra.mrb[0].mxu0 %v459
        %v575 = vpop.f32.mrb[0].mxu0
        %v576 = vadd.f32 %v369, %v575
        %v577 = vpop.f32.mrb[0].mxu0
        %v578 = vadd.f32 %v369, %v577
        %579 = vmatprep.mubr.f32.mxu0 0.0
        %580 = vmatmul.mubr.f32.gmra.mrb[0].mxu0 %v462
        %v581 = vpop.f32.mrb[0].mxu0
        %v582 = vadd.f32 %v374, %v581
        %v583 = vpop.f32.mrb[0].mxu0
        %v584 = vadd.f32 %v374, %v583
        %585 = vmatprep.mubr.f32.mxu0 0.0
        %586 = vmatmul.mubr.f32.gmra.mrb[0].mxu0 %v465
        %v587 = vpop.f32.mrb[0].mxu0
        %v588 = vadd.f32 %v379, %v587
        %v589 = vpop.f32.mrb[0].mxu0
        %v590 = vadd.f32 %v379, %v589
        %591 = vmatprep.mubr.f32.mxu0 0.0
        %592 = vmatmul.mubr.f32.gmra.mrb[0].mxu0 %v468
        %v593 = vpop.f32.mrb[0].mxu0
        %v594 = vadd.f32 %v384, %v593
        %v595 = vpop.f32.mrb[0].mxu0
        %v596 = vadd.f32 %v384, %v595
        %597 = vmatprep.mubr.f32.mxu0 0.0
        %598 = vmatmul.mubr.f32.gmra.mrb[0].mxu0 %v471
        %v599 = vpop.f32.mrb[0].mxu0
        %v600 = vadd.f32 %v389, %v599
        %v601 = vpop.f32.mrb[0].mxu0
        %v602 = vadd.f32 %v389, %v601
        %603 = vmatprep.mubr.f32.mxu0 0.0
        %604 = vmatmul.mubr.f32.gmra.mrb[0].mxu0 %v474
        %v605 = vpop.f32.mrb[0].mxu0
        %v606 = vadd.f32 %v394, %v605
        %v607 = vpop.f32.mrb[0].mxu0
        %v608 = vadd.f32 %v394, %v607
        %609 = vmatprep.mubr.f32.mxu0 0.0
        %610 = vmatmul.mubr.f32.gmra.mrb[0].mxu0 %v477
        %v611 = vpop.f32.mrb[0].mxu0
        %v612 = vadd.f32 %v399, %v611
        %v613 = vpop.f32.mrb[0].mxu0
        %v614 = vadd.f32 %v399, %v613
        %615 = vdwg.mxu0
        %v616 = vmul.f32 %v546, 0.5
        %v617 = vmul.f32 %v548, 0.5
        %v618 = vmul.f32 %v552, 0.5
        %v619 = vmul.f32 %v554, 0.5
        %v620 = vmul.f32 %v558, 0.5
        %v621 = vmul.f32 %v560, 0.5
        %v622 = vmul.f32 %v564, 0.5
        %v623 = vmul.f32 %v566, 0.5
        %v624 = vtanh.pop %v616
        %v625 = vtanh.pop %v617
        %v626 = vtanh.pop %v618
        %v627 = vtanh.pop %v619
        %v628 = vtanh.pop %v620
        %v629 = vtanh.pop %v621
        %v630 = vtanh.pop %v622
        %v631 = vtanh.pop %v623
        %v632 = vmul.f32 %v624, 0.5
        %v633 = vmul.f32 %v625, 0.5
        %v634 = vmul.f32 %v626, 0.5
        %v635 = vmul.f32 %v627, 0.5
        %v636 = vmul.f32 %v628, 0.5
        %v637 = vmul.f32 %v629, 0.5
        %v638 = vmul.f32 %v630, 0.5
        %v639 = vmul.f32 %v631, 0.5
        %v640 = vadd.f32 %v632, 0.5
        %v641 = vadd.f32 %v633, 0.5
        %v642 = vadd.f32 %v634, 0.5
        %v643 = vadd.f32 %v635, 0.5
        %v644 = vadd.f32 %v636, 0.5
        %v645 = vadd.f32 %v637, 0.5
        %v646 = vadd.f32 %v638, 0.5
        %v647 = vadd.f32 %v639, 0.5
        %v648 = vmul.f32 %v570, 0.5
        %v649 = vmul.f32 %v572, 0.5
        %v650 = vmul.f32 %v576, 0.5
        %v651 = vmul.f32 %v578, 0.5
        %v652 = vmul.f32 %v582, 0.5
        %v653 = vmul.f32 %v584, 0.5
        %v654 = vmul.f32 %v588, 0.5
        %v655 = vmul.f32 %v590, 0.5
        %v656 = vtanh.pop %v648
        %v657 = vtanh.pop %v649
        %v658 = vtanh.pop %v650
        %v659 = vtanh.pop %v651
        %v660 = vtanh.pop %v652
        %v661 = vtanh.pop %v653
        %v662 = vtanh.pop %v654
        %v663 = vtanh.pop %v655
        %v664 = vmul.f32 %v656, 0.5
        %v665 = vmul.f32 %v657, 0.5
        %v666 = vmul.f32 %v658, 0.5
        %v667 = vmul.f32 %v659, 0.5
        %v668 = vmul.f32 %v660, 0.5
        %v669 = vmul.f32 %v661, 0.5
        %v670 = vmul.f32 %v662, 0.5
        %v671 = vmul.f32 %v663, 0.5
        %v672 = vadd.f32 %v664, 0.5
        %v673 = vadd.f32 %v665, 0.5
        %v674 = vadd.f32 %v666, 0.5
        %v675 = vadd.f32 %v667, 0.5
        %v676 = vadd.f32 %v668, 0.5
        %v677 = vadd.f32 %v669, 0.5
        %v678 = vadd.f32 %v670, 0.5
        %v679 = vadd.f32 %v671, 0.5
        %v680 = vmul.f32 %v640, %v408
        %v681 = vmul.f32 %v641, %v408
        %v682 = vmul.f32 %v642, %v413
        %v683 = vmul.f32 %v643, %v413
        %v684 = vmul.f32 %v644, %v418
        %v685 = vmul.f32 %v645, %v418
        %v686 = vmul.f32 %v646, %v423
        %v687 = vmul.f32 %v647, %v423
        %v688 = vadd.f32 %v594, %v680
        %v689 = vadd.f32 %v596, %v681
        %v690 = vadd.f32 %v600, %v682
        %v691 = vadd.f32 %v602, %v683
        %v692 = vadd.f32 %v606, %v684
        %v693 = vadd.f32 %v608, %v685
        %v694 = vadd.f32 %v612, %v686
        %v695 = vadd.f32 %v614, %v687
        %v696 = vtanh.pop %v688
        %v697 = vtanh.pop %v689
        %v698 = vtanh.pop %v690
        %v699 = vtanh.pop %v691
        %v700 = vtanh.pop %v692
        %v701 = vtanh.pop %v693
        %v702 = vtanh.pop %v694
        %v703 = vtanh.pop %v695
        %v704 = vsub.f32 1.0, %v672
        %v705 = vsub.f32 1.0, %v673
        %v706 = vsub.f32 1.0, %v674
        %v707 = vsub.f32 1.0, %v675
        %v708 = vsub.f32 1.0, %v676
        %v709 = vsub.f32 1.0, %v677
        %v710 = vsub.f32 1.0, %v678
        %v711 = vsub.f32 1.0, %v679
        %v712 = vmul.f32 %v704, %v696
        %v713 = vmul.f32 %v705, %v697
        %v714 = vmul.f32 %v706, %v698
        %v715 = vmul.f32 %v707, %v699
        %v716 = vmul.f32 %v708, %v700
        %v717 = vmul.f32 %v709, %v701
        %v718 = vmul.f32 %v710, %v702
        %v719 = vmul.f32 %v711, %v703
        %s720 = scalar_lea.vmem %s267, 64 [#allocation2]
        %v721 = vld [vmem:[%s720] sm:$0xff]
        %v722 = vld [vmem:[%s720 + $0x8] sm:$0xff]
        %v723 = vld [vmem:[%s720 + $0x10] sm:$0xff]
        %v724 = vld [vmem:[%s720 + $0x18] sm:$0xff]
        %v725 = vld [vmem:[%s720 + $0x20] sm:$0xff]
        %v726 = vld [vmem:[%s720 + $0x28] sm:$0xff]
        %v727 = vld [vmem:[%s720 + $0x30] sm:$0xff]
        %v728 = vld [vmem:[%s720 + $0x38] sm:$0xff]
        %729 = vmatprep.subr.mxu0 %v722
        %730 = vmatpush1.msra.mxu0 %v721
        %731 = vmatprep.subr.mxu0 %v724
        %732 = vmatpush1.msra.mxu0 %v723
        %733 = vmatprep.subr.mxu0 %v726
        %734 = vmatpush1.msra.mxu0 %v725
        %735 = vmatprep.subr.mxu0 %v728
        %736 = vmatpush1.msra.mxu0 %v727
        %737 = vmatprep.subr.mxu0 0.0
        %738 = vmatpush1.msra.mxu0 0.0
        %739 = vmatprep.subr.mxu0 0.0
        %740 = vmatpush1.msra.mxu0 0.0
        %741 = vmatprep.subr.mxu0 0.0
        %742 = vmatpush1.msra.mxu0 0.0
        %743 = vmatprep.subr.mxu0 0.0
        %744 = vmatpush1.msra.mxu0 0.0
        %745 = vmatprep.subr.mxu0 0.0
        %746 = vmatpush1.msra.mxu0 0.0
        %747 = vmatprep.subr.mxu0 0.0
        %748 = vmatpush1.msra.mxu0 0.0
        %749 = vmatprep.subr.mxu0 0.0
        %750 = vmatpush1.msra.mxu0 0.0
        %751 = vmatprep.subr.mxu0 0.0
        %752 = vmatpush1.msra.mxu0 0.0
        %753 = vmatprep.subr.mxu0 0.0
        %754 = vmatpush1.msra.mxu0 0.0
        %755 = vmatprep.subr.mxu0 0.0
        %756 = vmatpush1.msra.mxu0 0.0
        %757 = vmatprep.subr.mxu0 0.0
        %758 = vmatpush1.msra.mxu0 0.0
        %759 = vmatprep.subr.mxu0 0.0
        %760 = vmatpush1.msra.mxu0 0.0
        %761 = vmatprep.subr.mxu0 0.0
        %762 = vmatpush1.msra.mxu0 0.0
        %763 = vmatprep.subr.mxu0 0.0
        %764 = vmatpush1.msra.mxu0 0.0
        %765 = vmatprep.subr.mxu0 0.0
        %766 = vmatpush1.msra.mxu0 0.0
        %767 = vmatprep.subr.mxu0 0.0
        %768 = vmatpush1.msra.mxu0 0.0
        %769 = vmatprep.subr.mxu0 0.0
        %770 = vmatpush1.msra.mxu0 0.0
        %771 = vmatprep.subr.mxu0 0.0
        %772 = vmatpush1.msra.mxu0 0.0
        %773 = vmatprep.subr.mxu0 0.0
        %774 = vmatpush1.msra.mxu0 0.0
        %775 = vmatprep.subr.mxu0 0.0
        %776 = vmatpush1.msra.mxu0 0.0
        %777 = vmatprep.subr.mxu0 0.0
        %778 = vmatpush1.msra.mxu0 0.0
        %779 = vmatprep.subr.mxu0 0.0
        %780 = vmatpush1.msra.mxu0 0.0
        %781 = vmatprep.subr.mxu0 0.0
        %782 = vmatpush1.msra.mxu0 0.0
        %783 = vmatprep.subr.mxu0 0.0
        %784 = vmatpush1.msra.mxu0 0.0
        %785 = vmatprep.subr.mxu0 0.0
        %786 = vmatpush1.msra.mxu0 0.0
        %787 = vmatprep.subr.mxu0 0.0
        %788 = vmatpush1.msra.mxu0 0.0
        %789 = vmatprep.subr.mxu0 0.0
        %790 = vmatpush1.msra.mxu0 0.0
        %791 = vmatprep.subr.mxu0 0.0
        %792 = vmatpush1.msra.mxu0 0.0
        %793 = vmatprep.mubr.f32.mxu0 0.0
        %794 = vmatmul.mubr.f32.gmra.mrb[0].mxu0 %v444
        %v795 = vpop.f32.mrb[0].mxu0
        %v796 = vadd.f32 %v344, %v795
        %v797 = vpop.f32.mrb[0].mxu0
        %v798 = vadd.f32 %v344, %v797
        %799 = vmatprep.mubr.f32.mxu0 0.0
        %800 = vmatmul.mubr.f32.gmra.mrb[0].mxu0 %v447
        %v801 = vpop.f32.mrb[0].mxu0
        %v802 = vadd.f32 %v349, %v801
        %v803 = vpop.f32.mrb[0].mxu0
        %v804 = vadd.f32 %v349, %v803
        %805 = vmatprep.mubr.f32.mxu0 0.0
        %806 = vmatmul.mubr.f32.gmra.mrb[0].mxu0 %v450
        %v807 = vpop.f32.mrb[0].mxu0
        %v808 = vadd.f32 %v354, %v807
        %v809 = vpop.f32.mrb[0].mxu0
        %v810 = vadd.f32 %v354, %v809
        %811 = vmatprep.mubr.f32.mxu0 0.0
        %812 = vmatmul.mubr.f32.gmra.mrb[0].mxu0 %v453
        %v813 = vpop.f32.mrb[0].mxu0
        %v814 = vadd.f32 %v359, %v813
        %v815 = vpop.f32.mrb[0].mxu0
        %v816 = vadd.f32 %v359, %v815
        %817 = vmatprep.mubr.f32.mxu0 0.0
        %818 = vmatmul.mubr.f32.gmra.mrb[0].mxu0 %v456
        %v819 = vpop.f32.mrb[0].mxu0
        %v820 = vadd.f32 %v364, %v819
        %v821 = vpop.f32.mrb[0].mxu0
        %v822 = vadd.f32 %v364, %v821
        %823 = vmatprep.mubr.f32.mxu0 0.0
        %824 = vmatmul.mubr.f32.gmra.mrb[0].mxu0 %v459
        %v825 = vpop.f32.mrb[0].mxu0
        %v826 = vadd.f32 %v369, %v825
        %v827 = vpop.f32.mrb[0].mxu0
        %v828 = vadd.f32 %v369, %v827
        %829 = vmatprep.mubr.f32.mxu0 0.0
        %830 = vmatmul.mubr.f32.gmra.mrb[0].mxu0 %v462
        %v831 = vpop.f32.mrb[0].mxu0
        %v832 = vadd.f32 %v374, %v831
        %v833 = vpop.f32.mrb[0].mxu0
        %v834 = vadd.f32 %v374, %v833
        %835 = vmatprep.mubr.f32.mxu0 0.0
        %836 = vmatmul.mubr.f32.gmra.mrb[0].mxu0 %v465
        %v837 = vpop.f32.mrb[0].mxu0
        %v838 = vadd.f32 %v379, %v837
        %v839 = vpop.f32.mrb[0].mxu0
        %v840 = vadd.f32 %v379, %v839
        %841 = vmatprep.mubr.f32.mxu0 0.0
        %842 = vmatmul.mubr.f32.gmra.mrb[0].mxu0 %v468
        %v843 = vpop.f32.mrb[0].mxu0
        %v844 = vadd.f32 %v384, %v843
        %v845 = vpop.f32.mrb[0].mxu0
        %v846 = vadd.f32 %v384, %v845
        %847 = vmatprep.mubr.f32.mxu0 0.0
        %848 = vmatmul.mubr.f32.gmra.mrb[0].mxu0 %v471
        %v849 = vpop.f32.mrb[0].mxu0
        %v850 = vadd.f32 %v389, %v849
        %v851 = vpop.f32.mrb[0].mxu0
        %v852 = vadd.f32 %v389, %v851
        %853 = vmatprep.mubr.f32.mxu0 0.0
        %854 = vmatmul.mubr.f32.gmra.mrb[0].mxu0 %v474
        %v855 = vpop.f32.mrb[0].mxu0
        %v856 = vadd.f32 %v394, %v855
        %v857 = vpop.f32.mrb[0].mxu0
        %v858 = vadd.f32 %v394, %v857
        %859 = vmatprep.mubr.f32.mxu0 0.0
        %860 = vmatmul.mubr.f32.gmra.mrb[0].mxu0 %v477
        %v861 = vpop.f32.mrb[0].mxu0
        %v862 = vadd.f32 %v399, %v861
        %v863 = vpop.f32.mrb[0].mxu0
        %v864 = vadd.f32 %v399, %v863
        %865 = vdwg.mxu0
        %v867 = vsel %vm442, %v316, 0
        %v870 = vsel %vm442, %v317, 0
        %v873 = vsel %vm442, %v318, 0
        %v876 = vsel %vm442, %v319, 0
        %v879 = vsel %vm442, %v320, 0
        %v882 = vsel %vm442, %v321, 0
        %v885 = vsel %vm442, %v322, 0
        %v888 = vsel %vm442, %v323, 0
        %v891 = vsel %vm442, %v324, 0
        %v894 = vsel %vm442, %v325, 0
        %v897 = vsel %vm442, %v326, 0
        %v900 = vsel %vm442, %v327, 0
        %902 = vmatprep.subr.mxu0 %v713
        %903 = vmatpush1.msra.mxu0 %v712
        %904 = vmatprep.subr.mxu0 %v715
        %905 = vmatpush1.msra.mxu0 %v714
        %906 = vmatprep.subr.mxu0 %v717
        %907 = vmatpush1.msra.mxu0 %v716
        %908 = vmatprep.subr.mxu0 %v719
        %909 = vmatpush1.msra.mxu0 %v718
        %910 = vmatprep.subr.mxu0 0.0
        %911 = vmatpush1.msra.mxu0 0.0
        %912 = vmatprep.subr.mxu0 0.0
        %913 = vmatpush1.msra.mxu0 0.0
        %914 = vmatprep.subr.mxu0 0.0
        %915 = vmatpush1.msra.mxu0 0.0
        %916 = vmatprep.subr.mxu0 0.0
        %917 = vmatpush1.msra.mxu0 0.0
        %918 = vmatprep.subr.mxu0 0.0
        %919 = vmatpush1.msra.mxu0 0.0
        %920 = vmatprep.subr.mxu0 0.0
        %921 = vmatpush1.msra.mxu0 0.0
        %922 = vmatprep.subr.mxu0 0.0
        %923 = vmatpush1.msra.mxu0 0.0
        %924 = vmatprep.subr.mxu0 0.0
        %925 = vmatpush1.msra.mxu0 0.0
        %926 = vmatprep.subr.mxu0 0.0
        %927 = vmatpush1.msra.mxu0 0.0
        %928 = vmatprep.subr.mxu0 0.0
        %929 = vmatpush1.msra.mxu0 0.0
        %930 = vmatprep.subr.mxu0 0.0
        %931 = vmatpush1.msra.mxu0 0.0
        %932 = vmatprep.subr.mxu0 0.0
        %933 = vmatpush1.msra.mxu0 0.0
        %934 = vmatprep.subr.mxu0 0.0
        %935 = vmatpush1.msra.mxu0 0.0
        %936 = vmatprep.subr.mxu0 0.0
        %937 = vmatpush1.msra.mxu0 0.0
        %938 = vmatprep.subr.mxu0 0.0
        %939 = vmatpush1.msra.mxu0 0.0
        %940 = vmatprep.subr.mxu0 0.0
        %941 = vmatpush1.msra.mxu0 0.0
        %942 = vmatprep.subr.mxu0 0.0
        %943 = vmatpush1.msra.mxu0 0.0
        %944 = vmatprep.subr.mxu0 0.0
        %945 = vmatpush1.msra.mxu0 0.0
        %946 = vmatprep.subr.mxu0 0.0
        %947 = vmatpush1.msra.mxu0 0.0
        %948 = vmatprep.subr.mxu0 0.0
        %949 = vmatpush1.msra.mxu0 0.0
        %950 = vmatprep.subr.mxu0 0.0
        %951 = vmatpush1.msra.mxu0 0.0
        %952 = vmatprep.subr.mxu0 0.0
        %953 = vmatpush1.msra.mxu0 0.0
        %954 = vmatprep.subr.mxu0 0.0
        %955 = vmatpush1.msra.mxu0 0.0
        %956 = vmatprep.subr.mxu0 0.0
        %957 = vmatpush1.msra.mxu0 0.0
        %958 = vmatprep.subr.mxu0 0.0
        %959 = vmatpush1.msra.mxu0 0.0
        %960 = vmatprep.subr.mxu0 0.0
        %961 = vmatpush1.msra.mxu0 0.0
        %962 = vmatprep.subr.mxu0 0.0
        %963 = vmatpush1.msra.mxu0 0.0
        %964 = vmatprep.subr.mxu0 0.0
        %965 = vmatpush1.msra.mxu0 0.0
        %966 = vmatprep.mubr.f32.mxu0 0.0
        %967 = vmatmul.mubr.f32.gmra.mrb[0].mxu0 %v867
        %v968 = vpop.f32.mrb[0].mxu0
        %v969 = vadd.f32 0.0, %v968
        %v970 = vpop.f32.mrb[0].mxu0
        %v971 = vadd.f32 0.0, %v970
        %972 = vmatprep.mubr.f32.mxu0 0.0
        %973 = vmatmul.mubr.f32.gmra.mrb[0].mxu0 %v870
        %v974 = vpop.f32.mrb[0].mxu0
        %v975 = vadd.f32 0.0, %v974
        %v976 = vpop.f32.mrb[0].mxu0
        %v977 = vadd.f32 0.0, %v976
        %978 = vmatprep.mubr.f32.mxu0 0.0
        %979 = vmatmul.mubr.f32.gmra.mrb[0].mxu0 %v873
        %v980 = vpop.f32.mrb[0].mxu0
        %v981 = vadd.f32 0.0, %v980
        %v982 = vpop.f32.mrb[0].mxu0
        %v983 = vadd.f32 0.0, %v982
        %984 = vmatprep.mubr.f32.mxu0 0.0
        %985 = vmatmul.mubr.f32.gmra.mrb[0].mxu0 %v876
        %v986 = vpop.f32.mrb[0].mxu0
        %v987 = vadd.f32 0.0, %v986
        %v988 = vpop.f32.mrb[0].mxu0
        %v989 = vadd.f32 0.0, %v988
        %990 = vmatprep.mubr.f32.mxu0 0.0
        %991 = vmatmul.mubr.f32.gmra.mrb[0].mxu0 %v879
        %v992 = vpop.f32.mrb[0].mxu0
        %v993 = vadd.f32 0.0, %v992
        %v994 = vpop.f32.mrb[0].mxu0
        %v995 = vadd.f32 0.0, %v994
        %996 = vmatprep.mubr.f32.mxu0 0.0
        %997 = vmatmul.mubr.f32.gmra.mrb[0].mxu0 %v882
        %v998 = vpop.f32.mrb[0].mxu0
        %v999 = vadd.f32 0.0, %v998
        %v1000 = vpop.f32.mrb[0].mxu0
        %v1001 = vadd.f32 0.0, %v1000
        %1002 = vmatprep.mubr.f32.mxu0 0.0
        %1003 = vmatmul.mubr.f32.gmra.mrb[0].mxu0 %v885
        %v1004 = vpop.f32.mrb[0].mxu0
        %v1005 = vadd.f32 0.0, %v1004
        %v1006 = vpop.f32.mrb[0].mxu0
        %v1007 = vadd.f32 0.0, %v1006
        %1008 = vmatprep.mubr.f32.mxu0 0.0
        %1009 = vmatmul.mubr.f32.gmra.mrb[0].mxu0 %v888
        %v1010 = vpop.f32.mrb[0].mxu0
        %v1011 = vadd.f32 0.0, %v1010
        %v1012 = vpop.f32.mrb[0].mxu0
        %v1013 = vadd.f32 0.0, %v1012
        %1014 = vmatprep.mubr.f32.mxu0 0.0
        %1015 = vmatmul.mubr.f32.gmra.mrb[0].mxu0 %v891
        %v1016 = vpop.f32.mrb[0].mxu0
        %v1017 = vadd.f32 0.0, %v1016
        %v1018 = vpop.f32.mrb[0].mxu0
        %v1019 = vadd.f32 0.0, %v1018
        %1020 = vmatprep.mubr.f32.mxu0 0.0
        %1021 = vmatmul.mubr.f32.gmra.mrb[0].mxu0 %v894
        %v1022 = vpop.f32.mrb[0].mxu0
        %v1023 = vadd.f32 0.0, %v1022
        %v1024 = vpop.f32.mrb[0].mxu0
        %v1025 = vadd.f32 0.0, %v1024
        %1026 = vmatprep.mubr.f32.mxu0 0.0
        %1027 = vmatmul.mubr.f32.gmra.mrb[0].mxu0 %v897
        %v1028 = vpop.f32.mrb[0].mxu0
        %v1029 = vadd.f32 0.0, %v1028
        %v1030 = vpop.f32.mrb[0].mxu0
        %v1031 = vadd.f32 0.0, %v1030
        %1032 = vmatprep.mubr.f32.mxu0 0.0
        %1033 = vmatmul.mubr.f32.gmra.mrb[0].mxu0 %v900
        %v1034 = vpop.f32.mrb[0].mxu0
        %v1035 = vadd.f32 0.0, %v1034
        %v1036 = vpop.f32.mrb[0].mxu0
        %v1037 = vadd.f32 0.0, %v1036
        %1038 = vdwg.mxu0
        %v1039 = vadd.f32 %v796, %v969
        %v1040 = vadd.f32 %v798, %v971
        %v1041 = vadd.f32 %v802, %v975
        %v1042 = vadd.f32 %v804, %v977
        %v1043 = vadd.f32 %v808, %v981
        %v1044 = vadd.f32 %v810, %v983
        %v1045 = vadd.f32 %v814, %v987
        %v1046 = vadd.f32 %v816, %v989
        %v1047 = vmul.f32 %v1039, 0.5
        %v1048 = vmul.f32 %v1040, 0.5
        %v1049 = vmul.f32 %v1041, 0.5
        %v1050 = vmul.f32 %v1042, 0.5
        %v1051 = vmul.f32 %v1043, 0.5
        %v1052 = vmul.f32 %v1044, 0.5
        %v1053 = vmul.f32 %v1045, 0.5
        %v1054 = vmul.f32 %v1046, 0.5
        %v1055 = vtanh.pop %v1047
        %v1056 = vtanh.pop %v1048
        %v1057 = vtanh.pop %v1049
        %v1058 = vtanh.pop %v1050
        %v1059 = vtanh.pop %v1051
        %v1060 = vtanh.pop %v1052
        %v1061 = vtanh.pop %v1053
        %v1062 = vtanh.pop %v1054
        %v1063 = vmul.f32 %v1055, 0.5
        %v1064 = vmul.f32 %v1056, 0.5
        %v1065 = vmul.f32 %v1057, 0.5
        %v1066 = vmul.f32 %v1058, 0.5
        %v1067 = vmul.f32 %v1059, 0.5
        %v1068 = vmul.f32 %v1060, 0.5
        %v1069 = vmul.f32 %v1061, 0.5
        %v1070 = vmul.f32 %v1062, 0.5
        %v1071 = vadd.f32 %v1063, 0.5
        %v1072 = vadd.f32 %v1064, 0.5
        %v1073 = vadd.f32 %v1065, 0.5
        %v1074 = vadd.f32 %v1066, 0.5
        %v1075 = vadd.f32 %v1067, 0.5
        %v1076 = vadd.f32 %v1068, 0.5
        %v1077 = vadd.f32 %v1069, 0.5
        %v1078 = vadd.f32 %v1070, 0.5
        %v1079 = vadd.f32 %v820, %v993
        %v1080 = vadd.f32 %v822, %v995
        %v1081 = vadd.f32 %v826, %v999
        %v1082 = vadd.f32 %v828, %v1001
        %v1083 = vadd.f32 %v832, %v1005
        %v1084 = vadd.f32 %v834, %v1007
        %v1085 = vadd.f32 %v838, %v1011
        %v1086 = vadd.f32 %v840, %v1013
        %v1087 = vmul.f32 %v1079, 0.5
        %v1088 = vmul.f32 %v1080, 0.5
        %v1089 = vmul.f32 %v1081, 0.5
        %v1090 = vmul.f32 %v1082, 0.5
        %v1091 = vmul.f32 %v1083, 0.5
        %v1092 = vmul.f32 %v1084, 0.5
        %v1093 = vmul.f32 %v1085, 0.5
        %v1094 = vmul.f32 %v1086, 0.5
        %v1095 = vtanh.pop %v1087
        %v1096 = vtanh.pop %v1088
        %v1097 = vtanh.pop %v1089
        %v1098 = vtanh.pop %v1090
        %v1099 = vtanh.pop %v1091
        %v1100 = vtanh.pop %v1092
        %v1101 = vtanh.pop %v1093
        %v1102 = vtanh.pop %v1094
        %v1103 = vmul.f32 %v1095, 0.5
        %v1104 = vmul.f32 %v1096, 0.5
        %v1105 = vmul.f32 %v1097, 0.5
        %v1106 = vmul.f32 %v1098, 0.5
        %v1107 = vmul.f32 %v1099, 0.5
        %v1108 = vmul.f32 %v1100, 0.5
        %v1109 = vmul.f32 %v1101, 0.5
        %v1110 = vmul.f32 %v1102, 0.5
        %v1111 = vadd.f32 %v1103, 0.5
        %v1112 = vadd.f32 %v1104, 0.5
        %v1113 = vadd.f32 %v1105, 0.5
        %v1114 = vadd.f32 %v1106, 0.5
        %v1115 = vadd.f32 %v1107, 0.5
        %v1116 = vadd.f32 %v1108, 0.5
        %v1117 = vadd.f32 %v1109, 0.5
        %v1118 = vadd.f32 %v1110, 0.5
        %v1119 = vadd.f32 %v1017, %v408
        %v1120 = vadd.f32 %v1019, %v408
        %v1121 = vadd.f32 %v1023, %v413
        %v1122 = vadd.f32 %v1025, %v413
        %v1123 = vadd.f32 %v1029, %v418
        %v1124 = vadd.f32 %v1031, %v418
        %v1125 = vadd.f32 %v1035, %v423
        %v1126 = vadd.f32 %v1037, %v423
        %v1127 = vmul.f32 %v1071, %v1119
        %v1128 = vmul.f32 %v1072, %v1120
        %v1129 = vmul.f32 %v1073, %v1121
        %v1130 = vmul.f32 %v1074, %v1122
        %v1131 = vmul.f32 %v1075, %v1123
        %v1132 = vmul.f32 %v1076, %v1124
        %v1133 = vmul.f32 %v1077, %v1125
        %v1134 = vmul.f32 %v1078, %v1126
        %v1135 = vadd.f32 %v844, %v1127
        %v1136 = vadd.f32 %v846, %v1128
        %v1137 = vadd.f32 %v850, %v1129
        %v1138 = vadd.f32 %v852, %v1130
        %v1139 = vadd.f32 %v856, %v1131
        %v1140 = vadd.f32 %v858, %v1132
        %v1141 = vadd.f32 %v862, %v1133
        %v1142 = vadd.f32 %v864, %v1134
        %v1143 = vtanh.pop %v1135
        %v1144 = vtanh.pop %v1136
        %v1145 = vtanh.pop %v1137
        %v1146 = vtanh.pop %v1138
        %v1147 = vtanh.pop %v1139
        %v1148 = vtanh.pop %v1140
        %v1149 = vtanh.pop %v1141
        %v1150 = vtanh.pop %v1142
        %v1151 = vsub.f32 1.0, %v1111
        %v1152 = vsub.f32 1.0, %v1112
        %v1153 = vsub.f32 1.0, %v1113
        %v1154 = vsub.f32 1.0, %v1114
        %v1155 = vsub.f32 1.0, %v1115
        %v1156 = vsub.f32 1.0, %v1116
        %v1157 = vsub.f32 1.0, %v1117
        %v1158 = vsub.f32 1.0, %v1118
        %v1159 = vmul.f32 %v1151, %v1143
        %v1160 = vmul.f32 %v1152, %v1144
        %v1161 = vmul.f32 %v1153, %v1145
        %v1162 = vmul.f32 %v1154, %v1146
        %v1163 = vmul.f32 %v1155, %v1147
        %v1164 = vmul.f32 %v1156, %v1148
        %v1165 = vmul.f32 %v1157, %v1149
        %v1166 = vmul.f32 %v1158, %v1150
        %v1167 = vmul.f32 %v1111, %v712
        %v1168 = vmul.f32 %v1112, %v713
        %v1169 = vmul.f32 %v1113, %v714
        %v1170 = vmul.f32 %v1114, %v715
        %v1171 = vmul.f32 %v1115, %v716
        %v1172 = vmul.f32 %v1116, %v717
        %v1173 = vmul.f32 %v1117, %v718
        %v1174 = vmul.f32 %v1118, %v719
        %v1175 = vadd.f32 %v1159, %v1167
        %v1176 = vadd.f32 %v1160, %v1168
        %v1177 = vadd.f32 %v1161, %v1169
        %v1178 = vadd.f32 %v1162, %v1170
        %v1179 = vadd.f32 %v1163, %v1171
        %v1180 = vadd.f32 %v1164, %v1172
        %v1181 = vadd.f32 %v1165, %v1173
        %v1182 = vadd.f32 %v1166, %v1174
        %s1183 = scalar_lea.vmem %s267, 128 [#allocation2]
        %v1184 = vld [vmem:[%s1183] sm:$0xff]
        %v1185 = vld [vmem:[%s1183 + $0x8] sm:$0xff]
        %v1186 = vld [vmem:[%s1183 + $0x10] sm:$0xff]
        %v1187 = vld [vmem:[%s1183 + $0x18] sm:$0xff]
        %v1188 = vld [vmem:[%s1183 + $0x20] sm:$0xff]
        %v1189 = vld [vmem:[%s1183 + $0x28] sm:$0xff]
        %v1190 = vld [vmem:[%s1183 + $0x30] sm:$0xff]
        %v1191 = vld [vmem:[%s1183 + $0x38] sm:$0xff]
        %1192 = vmatprep.subr.mxu0 %v1185
        %1193 = vmatpush1.msra.mxu0 %v1184
        %1194 = vmatprep.subr.mxu0 %v1187
        %1195 = vmatpush1.msra.mxu0 %v1186
        %1196 = vmatprep.subr.mxu0 %v1189
        %1197 = vmatpush1.msra.mxu0 %v1188
        %1198 = vmatprep.subr.mxu0 %v1191
        %1199 = vmatpush1.msra.mxu0 %v1190
        %1200 = vmatprep.subr.mxu0 0.0
        %1201 = vmatpush1.msra.mxu0 0.0
        %1202 = vmatprep.subr.mxu0 0.0
        %1203 = vmatpush1.msra.mxu0 0.0
        %1204 = vmatprep.subr.mxu0 0.0
        %1205 = vmatpush1.msra.mxu0 0.0
        %1206 = vmatprep.subr.mxu0 0.0
        %1207 = vmatpush1.msra.mxu0 0.0
        %1208 = vmatprep.subr.mxu0 0.0
        %1209 = vmatpush1.msra.mxu0 0.0
        %1210 = vmatprep.subr.mxu0 0.0
        %1211 = vmatpush1.msra.mxu0 0.0
        %1212 = vmatprep.subr.mxu0 0.0
        %1213 = vmatpush1.msra.mxu0 0.0
        %1214 = vmatprep.subr.mxu0 0.0
        %1215 = vmatpush1.msra.mxu0 0.0
        %1216 = vmatprep.subr.mxu0 0.0
        %1217 = vmatpush1.msra.mxu0 0.0
        %1218 = vmatprep.subr.mxu0 0.0
        %1219 = vmatpush1.msra.mxu0 0.0
        %1220 = vmatprep.subr.mxu0 0.0
        %1221 = vmatpush1.msra.mxu0 0.0
        %1222 = vmatprep.subr.mxu0 0.0
        %1223 = vmatpush1.msra.mxu0 0.0
        %1224 = vmatprep.subr.mxu0 0.0
        %1225 = vmatpush1.msra.mxu0 0.0
        %1226 = vmatprep.subr.mxu0 0.0
        %1227 = vmatpush1.msra.mxu0 0.0
        %1228 = vmatprep.subr.mxu0 0.0
        %1229 = vmatpush1.msra.mxu0 0.0
        %1230 = vmatprep.subr.mxu0 0.0
        %1231 = vmatpush1.msra.mxu0 0.0
        %1232 = vmatprep.subr.mxu0 0.0
        %1233 = vmatpush1.msra.mxu0 0.0
        %1234 = vmatprep.subr.mxu0 0.0
        %1235 = vmatpush1.msra.mxu0 0.0
        %1236 = vmatprep.subr.mxu0 0.0
        %1237 = vmatpush1.msra.mxu0 0.0
        %1238 = vmatprep.subr.mxu0 0.0
        %1239 = vmatpush1.msra.mxu0 0.0
        %1240 = vmatprep.subr.mxu0 0.0
        %1241 = vmatpush1.msra.mxu0 0.0
        %1242 = vmatprep.subr.mxu0 0.0
        %1243 = vmatpush1.msra.mxu0 0.0
        %1244 = vmatprep.subr.mxu0 0.0
        %1245 = vmatpush1.msra.mxu0 0.0
        %1246 = vmatprep.subr.mxu0 0.0
        %1247 = vmatpush1.msra.mxu0 0.0
        %1248 = vmatprep.subr.mxu0 0.0
        %1249 = vmatpush1.msra.mxu0 0.0
        %1250 = vmatprep.subr.mxu0 0.0
        %1251 = vmatpush1.msra.mxu0 0.0
        %1252 = vmatprep.subr.mxu0 0.0
        %1253 = vmatpush1.msra.mxu0 0.0
        %1254 = vmatprep.subr.mxu0 0.0
        %1255 = vmatpush1.msra.mxu0 0.0
        %1256 = vmatprep.mubr.f32.mxu0 0.0
        %1257 = vmatmul.mubr.f32.gmra.mrb[0].mxu0 %v444
        %v1258 = vpop.f32.mrb[0].mxu0
        %v1259 = vadd.f32 %v344, %v1258
        %v1260 = vpop.f32.mrb[0].mxu0
        %v1261 = vadd.f32 %v344, %v1260
        %1262 = vmatprep.mubr.f32.mxu0 0.0
        %1263 = vmatmul.mubr.f32.gmra.mrb[0].mxu0 %v447
        %v1264 = vpop.f32.mrb[0].mxu0
        %v1265 = vadd.f32 %v349, %v1264
        %v1266 = vpop.f32.mrb[0].mxu0
        %v1267 = vadd.f32 %v349, %v1266
        %1268 = vmatprep.mubr.f32.mxu0 0.0
        %1269 = vmatmul.mubr.f32.gmra.mrb[0].mxu0 %v450
        %v1270 = vpop.f32.mrb[0].mxu0
        %v1271 = vadd.f32 %v354, %v1270
        %v1272 = vpop.f32.mrb[0].mxu0
        %v1273 = vadd.f32 %v354, %v1272
        %1274 = vmatprep.mubr.f32.mxu0 0.0
        %1275 = vmatmul.mubr.f32.gmra.mrb[0].mxu0 %v453
        %v1276 = vpop.f32.mrb[0].mxu0
        %v1277 = vadd.f32 %v359, %v1276
        %v1278 = vpop.f32.mrb[0].mxu0
        %v1279 = vadd.f32 %v359, %v1278
        %1280 = vmatprep.mubr.f32.mxu0 0.0
        %1281 = vmatmul.mubr.f32.gmra.mrb[0].mxu0 %v456
        %v1282 = vpop.f32.mrb[0].mxu0
        %v1283 = vadd.f32 %v364, %v1282
        %v1284 = vpop.f32.mrb[0].mxu0
        %v1285 = vadd.f32 %v364, %v1284
        %1286 = vmatprep.mubr.f32.mxu0 0.0
        %1287 = vmatmul.mubr.f32.gmra.mrb[0].mxu0 %v459
        %v1288 = vpop.f32.mrb[0].mxu0
        %v1289 = vadd.f32 %v369, %v1288
        %v1290 = vpop.f32.mrb[0].mxu0
        %v1291 = vadd.f32 %v369, %v1290
        %1292 = vmatprep.mubr.f32.mxu0 0.0
        %1293 = vmatmul.mubr.f32.gmra.mrb[0].mxu0 %v462
        %v1294 = vpop.f32.mrb[0].mxu0
        %v1295 = vadd.f32 %v374, %v1294
        %v1296 = vpop.f32.mrb[0].mxu0
        %v1297 = vadd.f32 %v374, %v1296
        %1298 = vmatprep.mubr.f32.mxu0 0.0
        %1299 = vmatmul.mubr.f32.gmra.mrb[0].mxu0 %v465
        %v1300 = vpop.f32.mrb[0].mxu0
        %v1301 = vadd.f32 %v379, %v1300
        %v1302 = vpop.f32.mrb[0].mxu0
        %v1303 = vadd.f32 %v379, %v1302
        %1304 = vmatprep.mubr.f32.mxu0 0.0
        %1305 = vmatmul.mubr.f32.gmra.mrb[0].mxu0 %v468
        %v1306 = vpop.f32.mrb[0].mxu0
        %v1307 = vadd.f32 %v384, %v1306
        %v1308 = vpop.f32.mrb[0].mxu0
        %v1309 = vadd.f32 %v384, %v1308
        %1310 = vmatprep.mubr.f32.mxu0 0.0
        %1311 = vmatmul.mubr.f32.gmra.mrb[0].mxu0 %v471
        %v1312 = vpop.f32.mrb[0].mxu0
        %v1313 = vadd.f32 %v389, %v1312
        %v1314 = vpop.f32.mrb[0].mxu0
        %v1315 = vadd.f32 %v389, %v1314
        %1316 = vmatprep.mubr.f32.mxu0 0.0
        %1317 = vmatmul.mubr.f32.gmra.mrb[0].mxu0 %v474
        %v1318 = vpop.f32.mrb[0].mxu0
        %v1319 = vadd.f32 %v394, %v1318
        %v1320 = vpop.f32.mrb[0].mxu0
        %v1321 = vadd.f32 %v394, %v1320
        %1322 = vmatprep.mubr.f32.mxu0 0.0
        %1323 = vmatmul.mubr.f32.gmra.mrb[0].mxu0 %v477
        %v1324 = vpop.f32.mrb[0].mxu0
        %v1325 = vadd.f32 %v399, %v1324
        %v1326 = vpop.f32.mrb[0].mxu0
        %v1327 = vadd.f32 %v399, %v1326
        %1328 = vdwg.mxu0
        %1329 = vmatprep.subr.mxu0 %v1176
        %1330 = vmatpush1.msra.mxu0 %v1175
        %1331 = vmatprep.subr.mxu0 %v1178
        %1332 = vmatpush1.msra.mxu0 %v1177
        %1333 = vmatprep.subr.mxu0 %v1180
        %1334 = vmatpush1.msra.mxu0 %v1179
        %1335 = vmatprep.subr.mxu0 %v1182
        %1336 = vmatpush1.msra.mxu0 %v1181
        %1337 = vmatprep.subr.mxu0 0.0
        %1338 = vmatpush1.msra.mxu0 0.0
        %1339 = vmatprep.subr.mxu0 0.0
        %1340 = vmatpush1.msra.mxu0 0.0
        %1341 = vmatprep.subr.mxu0 0.0
        %1342 = vmatpush1.msra.mxu0 0.0
        %1343 = vmatprep.subr.mxu0 0.0
        %1344 = vmatpush1.msra.mxu0 0.0
        %1345 = vmatprep.subr.mxu0 0.0
        %1346 = vmatpush1.msra.mxu0 0.0
        %1347 = vmatprep.subr.mxu0 0.0
        %1348 = vmatpush1.msra.mxu0 0.0
        %1349 = vmatprep.subr.mxu0 0.0
        %1350 = vmatpush1.msra.mxu0 0.0
        %1351 = vmatprep.subr.mxu0 0.0
        %1352 = vmatpush1.msra.mxu0 0.0
        %1353 = vmatprep.subr.mxu0 0.0
        %1354 = vmatpush1.msra.mxu0 0.0
        %1355 = vmatprep.subr.mxu0 0.0
        %1356 = vmatpush1.msra.mxu0 0.0
        %1357 = vmatprep.subr.mxu0 0.0
        %1358 = vmatpush1.msra.mxu0 0.0
        %1359 = vmatprep.subr.mxu0 0.0
        %1360 = vmatpush1.msra.mxu0 0.0
        %1361 = vmatprep.subr.mxu0 0.0
        %1362 = vmatpush1.msra.mxu0 0.0
        %1363 = vmatprep.subr.mxu0 0.0
        %1364 = vmatpush1.msra.mxu0 0.0
        %1365 = vmatprep.subr.mxu0 0.0
        %1366 = vmatpush1.msra.mxu0 0.0
        %1367 = vmatprep.subr.mxu0 0.0
        %1368 = vmatpush1.msra.mxu0 0.0
        %1369 = vmatprep.subr.mxu0 0.0
        %1370 = vmatpush1.msra.mxu0 0.0
        %1371 = vmatprep.subr.mxu0 0.0
        %1372 = vmatpush1.msra.mxu0 0.0
        %1373 = vmatprep.subr.mxu0 0.0
        %1374 = vmatpush1.msra.mxu0 0.0
        %1375 = vmatprep.subr.mxu0 0.0
        %1376 = vmatpush1.msra.mxu0 0.0
        %1377 = vmatprep.subr.mxu0 0.0
        %1378 = vmatpush1.msra.mxu0 0.0
        %1379 = vmatprep.subr.mxu0 0.0
        %1380 = vmatpush1.msra.mxu0 0.0
        %1381 = vmatprep.subr.mxu0 0.0
        %1382 = vmatpush1.msra.mxu0 0.0
        %1383 = vmatprep.subr.mxu0 0.0
        %1384 = vmatpush1.msra.mxu0 0.0
        %1385 = vmatprep.subr.mxu0 0.0
        %1386 = vmatpush1.msra.mxu0 0.0
        %1387 = vmatprep.subr.mxu0 0.0
        %1388 = vmatpush1.msra.mxu0 0.0
        %1389 = vmatprep.subr.mxu0 0.0
        %1390 = vmatpush1.msra.mxu0 0.0
        %1391 = vmatprep.subr.mxu0 0.0
        %1392 = vmatpush1.msra.mxu0 0.0
        %1393 = vmatprep.mubr.f32.mxu0 0.0
        %1394 = vmatmul.mubr.f32.gmra.mrb[0].mxu0 %v867
        %v1395 = vpop.f32.mrb[0].mxu0
        %v1396 = vadd.f32 0.0, %v1395
        %v1397 = vpop.f32.mrb[0].mxu0
        %v1398 = vadd.f32 0.0, %v1397
        %1399 = vmatprep.mubr.f32.mxu0 0.0
        %1400 = vmatmul.mubr.f32.gmra.mrb[0].mxu0 %v870
        %v1401 = vpop.f32.mrb[0].mxu0
        %v1402 = vadd.f32 0.0, %v1401
        %v1403 = vpop.f32.mrb[0].mxu0
        %v1404 = vadd.f32 0.0, %v1403
        %1405 = vmatprep.mubr.f32.mxu0 0.0
        %1406 = vmatmul.mubr.f32.gmra.mrb[0].mxu0 %v873
        %v1407 = vpop.f32.mrb[0].mxu0
        %v1408 = vadd.f32 0.0, %v1407
        %v1409 = vpop.f32.mrb[0].mxu0
        %v1410 = vadd.f32 0.0, %v1409
        %1411 = vmatprep.mubr.f32.mxu0 0.0
        %1412 = vmatmul.mubr.f32.gmra.mrb[0].mxu0 %v876
        %v1413 = vpop.f32.mrb[0].mxu0
        %v1414 = vadd.f32 0.0, %v1413
        %v1415 = vpop.f32.mrb[0].mxu0
        %v1416 = vadd.f32 0.0, %v1415
        %1417 = vmatprep.mubr.f32.mxu0 0.0
        %1418 = vmatmul.mubr.f32.gmra.mrb[0].mxu0 %v879
        %v1419 = vpop.f32.mrb[0].mxu0
        %v1420 = vadd.f32 0.0, %v1419
        %v1421 = vpop.f32.mrb[0].mxu0
        %v1422 = vadd.f32 0.0, %v1421
        %1423 = vmatprep.mubr.f32.mxu0 0.0
        %1424 = vmatmul.mubr.f32.gmra.mrb[0].mxu0 %v882
        %v1425 = vpop.f32.mrb[0].mxu0
        %v1426 = vadd.f32 0.0, %v1425
        %v1427 = vpop.f32.mrb[0].mxu0
        %v1428 = vadd.f32 0.0, %v1427
        %1429 = vmatprep.mubr.f32.mxu0 0.0
        %1430 = vmatmul.mubr.f32.gmra.mrb[0].mxu0 %v885
        %v1431 = vpop.f32.mrb[0].mxu0
        %v1432 = vadd.f32 0.0, %v1431
        %v1433 = vpop.f32.mrb[0].mxu0
        %v1434 = vadd.f32 0.0, %v1433
        %1435 = vmatprep.mubr.f32.mxu0 0.0
        %1436 = vmatmul.mubr.f32.gmra.mrb[0].mxu0 %v888
        %v1437 = vpop.f32.mrb[0].mxu0
        %v1438 = vadd.f32 0.0, %v1437
        %v1439 = vpop.f32.mrb[0].mxu0
        %v1440 = vadd.f32 0.0, %v1439
        %1441 = vmatprep.mubr.f32.mxu0 0.0
        %1442 = vmatmul.mubr.f32.gmra.mrb[0].mxu0 %v891
        %v1443 = vpop.f32.mrb[0].mxu0
        %v1444 = vadd.f32 0.0, %v1443
        %v1445 = vpop.f32.mrb[0].mxu0
        %v1446 = vadd.f32 0.0, %v1445
        %1447 = vmatprep.mubr.f32.mxu0 0.0
        %1448 = vmatmul.mubr.f32.gmra.mrb[0].mxu0 %v894
        %v1449 = vpop.f32.mrb[0].mxu0
        %v1450 = vadd.f32 0.0, %v1449
        %v1451 = vpop.f32.mrb[0].mxu0
        %v1452 = vadd.f32 0.0, %v1451
        %1453 = vmatprep.mubr.f32.mxu0 0.0
        %1454 = vmatmul.mubr.f32.gmra.mrb[0].mxu0 %v897
        %v1455 = vpop.f32.mrb[0].mxu0
        %v1456 = vadd.f32 0.0, %v1455
        %v1457 = vpop.f32.mrb[0].mxu0
        %v1458 = vadd.f32 0.0, %v1457
        %1459 = vmatprep.mubr.f32.mxu0 0.0
        %1460 = vmatmul.mubr.f32.gmra.mrb[0].mxu0 %v900
        %v1461 = vpop.f32.mrb[0].mxu0
        %v1462 = vadd.f32 0.0, %v1461
        %v1463 = vpop.f32.mrb[0].mxu0
        %v1464 = vadd.f32 0.0, %v1463
        %1465 = vdwg.mxu0
        %v1466 = vadd.f32 %v1259, %v1396
        %v1467 = vadd.f32 %v1261, %v1398
        %v1468 = vadd.f32 %v1265, %v1402
        %v1469 = vadd.f32 %v1267, %v1404
        %v1470 = vadd.f32 %v1271, %v1408
        %v1471 = vadd.f32 %v1273, %v1410
        %v1472 = vadd.f32 %v1277, %v1414
        %v1473 = vadd.f32 %v1279, %v1416
        %v1474 = vmul.f32 %v1466, 0.5
        %v1475 = vmul.f32 %v1467, 0.5
        %v1476 = vmul.f32 %v1468, 0.5
        %v1477 = vmul.f32 %v1469, 0.5
        %v1478 = vmul.f32 %v1470, 0.5
        %v1479 = vmul.f32 %v1471, 0.5
        %v1480 = vmul.f32 %v1472, 0.5
        %v1481 = vmul.f32 %v1473, 0.5
        %v1482 = vtanh.pop %v1474
        %v1483 = vtanh.pop %v1475
        %v1484 = vtanh.pop %v1476
        %v1485 = vtanh.pop %v1477
        %v1486 = vtanh.pop %v1478
        %v1487 = vtanh.pop %v1479
        %v1488 = vtanh.pop %v1480
        %v1489 = vtanh.pop %v1481
        %v1490 = vmul.f32 %v1482, 0.5
        %v1491 = vmul.f32 %v1483, 0.5
        %v1492 = vmul.f32 %v1484, 0.5
        %v1493 = vmul.f32 %v1485, 0.5
        %v1494 = vmul.f32 %v1486, 0.5
        %v1495 = vmul.f32 %v1487, 0.5
        %v1496 = vmul.f32 %v1488, 0.5
        %v1497 = vmul.f32 %v1489, 0.5
        %v1498 = vadd.f32 %v1490, 0.5
        %v1499 = vadd.f32 %v1491, 0.5
        %v1500 = vadd.f32 %v1492, 0.5
        %v1501 = vadd.f32 %v1493, 0.5
        %v1502 = vadd.f32 %v1494, 0.5
        %v1503 = vadd.f32 %v1495, 0.5
        %v1504 = vadd.f32 %v1496, 0.5
        %v1505 = vadd.f32 %v1497, 0.5
        %v1506 = vadd.f32 %v1283, %v1420
        %v1507 = vadd.f32 %v1285, %v1422
        %v1508 = vadd.f32 %v1289, %v1426
        %v1509 = vadd.f32 %v1291, %v1428
        %v1510 = vadd.f32 %v1295, %v1432
        %v1511 = vadd.f32 %v1297, %v1434
        %v1512 = vadd.f32 %v1301, %v1438
        %v1513 = vadd.f32 %v1303, %v1440
        %v1514 = vmul.f32 %v1506, 0.5
        %v1515 = vmul.f32 %v1507, 0.5
        %v1516 = vmul.f32 %v1508, 0.5
        %v1517 = vmul.f32 %v1509, 0.5
        %v1518 = vmul.f32 %v1510, 0.5
        %v1519 = vmul.f32 %v1511, 0.5
        %v1520 = vmul.f32 %v1512, 0.5
        %v1521 = vmul.f32 %v1513, 0.5
        %v1522 = vtanh.pop %v1514
        %v1523 = vtanh.pop %v1515
        %v1524 = vtanh.pop %v1516
        %v1525 = vtanh.pop %v1517
        %v1526 = vtanh.pop %v1518
        %v1527 = vtanh.pop %v1519
        %v1528 = vtanh.pop %v1520
        %v1529 = vtanh.pop %v1521
        %v1530 = vmul.f32 %v1522, 0.5
        %v1531 = vmul.f32 %v1523, 0.5
        %v1532 = vmul.f32 %v1524, 0.5
        %v1533 = vmul.f32 %v1525, 0.5
        %v1534 = vmul.f32 %v1526, 0.5
        %v1535 = vmul.f32 %v1527, 0.5
        %v1536 = vmul.f32 %v1528, 0.5
        %v1537 = vmul.f32 %v1529, 0.5
        %v1538 = vadd.f32 %v1530, 0.5
        %v1539 = vadd.f32 %v1531, 0.5
        %v1540 = vadd.f32 %v1532, 0.5
        %v1541 = vadd.f32 %v1533, 0.5
        %v1542 = vadd.f32 %v1534, 0.5
        %v1543 = vadd.f32 %v1535, 0.5
        %v1544 = vadd.f32 %v1536, 0.5
        %v1545 = vadd.f32 %v1537, 0.5
        %v1546 = vadd.f32 %v1444, %v408
        %v1547 = vadd.f32 %v1446, %v408
        %v1548 = vadd.f32 %v1450, %v413
        %v1549 = vadd.f32 %v1452, %v413
        %v1550 = vadd.f32 %v1456, %v418
        %v1551 = vadd.f32 %v1458, %v418
        %v1552 = vadd.f32 %v1462, %v423
        %v1553 = vadd.f32 %v1464, %v423
        %v1554 = vmul.f32 %v1498, %v1546
        %v1555 = vmul.f32 %v1499, %v1547
        %v1556 = vmul.f32 %v1500, %v1548
        %v1557 = vmul.f32 %v1501, %v1549
        %v1558 = vmul.f32 %v1502, %v1550
        %v1559 = vmul.f32 %v1503, %v1551
        %v1560 = vmul.f32 %v1504, %v1552
        %v1561 = vmul.f32 %v1505, %v1553
        %v1562 = vadd.f32 %v1307, %v1554
        %v1563 = vadd.f32 %v1309, %v1555
        %v1564 = vadd.f32 %v1313, %v1556
        %v1565 = vadd.f32 %v1315, %v1557
        %v1566 = vadd.f32 %v1319, %v1558
        %v1567 = vadd.f32 %v1321, %v1559
        %v1568 = vadd.f32 %v1325, %v1560
        %v1569 = vadd.f32 %v1327, %v1561
        %v1570 = vtanh.pop %v1562
        %v1571 = vtanh.pop %v1563
        %v1572 = vtanh.pop %v1564
        %v1573 = vtanh.pop %v1565
        %v1574 = vtanh.pop %v1566
        %v1575 = vtanh.pop %v1567
        %v1576 = vtanh.pop %v1568
        %v1577 = vtanh.pop %v1569
        %v1578 = vsub.f32 1.0, %v1538
        %v1579 = vsub.f32 1.0, %v1539
        %v1580 = vsub.f32 1.0, %v1540
        %v1581 = vsub.f32 1.0, %v1541
        %v1582 = vsub.f32 1.0, %v1542
        %v1583 = vsub.f32 1.0, %v1543
        %v1584 = vsub.f32 1.0, %v1544
        %v1585 = vsub.f32 1.0, %v1545
        %v1586 = vmul.f32 %v1578, %v1570
        %v1587 = vmul.f32 %v1579, %v1571
        %v1588 = vmul.f32 %v1580, %v1572
        %v1589 = vmul.f32 %v1581, %v1573
        %v1590 = vmul.f32 %v1582, %v1574
        %v1591 = vmul.f32 %v1583, %v1575
        %v1592 = vmul.f32 %v1584, %v1576
        %v1593 = vmul.f32 %v1585, %v1577
        %v1594 = vmul.f32 %v1538, %v1175
        %v1595 = vmul.f32 %v1539, %v1176
        %v1596 = vmul.f32 %v1540, %v1177
        %v1597 = vmul.f32 %v1541, %v1178
        %v1598 = vmul.f32 %v1542, %v1179
        %v1599 = vmul.f32 %v1543, %v1180
        %v1600 = vmul.f32 %v1544, %v1181
        %v1601 = vmul.f32 %v1545, %v1182
        %v1602 = vadd.f32 %v1586, %v1594
        %v1603 = vadd.f32 %v1587, %v1595
        %v1604 = vadd.f32 %v1588, %v1596
        %v1605 = vadd.f32 %v1589, %v1597
        %v1606 = vadd.f32 %v1590, %v1598
        %v1607 = vadd.f32 %v1591, %v1599
        %v1608 = vadd.f32 %v1592, %v1600
        %v1609 = vadd.f32 %v1593, %v1601
        %s1610 = scalar_lea.vmem %s267, 192 [#allocation2]
        %v1611 = vld [vmem:[%s1610] sm:$0xff]
        %v1612 = vld [vmem:[%s1610 + $0x8] sm:$0xff]
        %v1613 = vld [vmem:[%s1610 + $0x10] sm:$0xff]
        %v1614 = vld [vmem:[%s1610 + $0x18] sm:$0xff]
        %v1615 = vld [vmem:[%s1610 + $0x20] sm:$0xff]
        %v1616 = vld [vmem:[%s1610 + $0x28] sm:$0xff]
        %v1617 = vld [vmem:[%s1610 + $0x30] sm:$0xff]
        %v1618 = vld [vmem:[%s1610 + $0x38] sm:$0xff]
        %1619 = vmatprep.subr.mxu0 %v1612
        %1620 = vmatpush1.msra.mxu0 %v1611
        %1621 = vmatprep.subr.mxu0 %v1614
        %1622 = vmatpush1.msra.mxu0 %v1613
        %1623 = vmatprep.subr.mxu0 %v1616
        %1624 = vmatpush1.msra.mxu0 %v1615
        %1625 = vmatprep.subr.mxu0 %v1618
        %1626 = vmatpush1.msra.mxu0 %v1617
        %1627 = vmatprep.subr.mxu0 0.0
        %1628 = vmatpush1.msra.mxu0 0.0
        %1629 = vmatprep.subr.mxu0 0.0
        %1630 = vmatpush1.msra.mxu0 0.0
        %1631 = vmatprep.subr.mxu0 0.0
        %1632 = vmatpush1.msra.mxu0 0.0
        %1633 = vmatprep.subr.mxu0 0.0
        %1634 = vmatpush1.msra.mxu0 0.0
        %1635 = vmatprep.subr.mxu0 0.0
        %1636 = vmatpush1.msra.mxu0 0.0
        %1637 = vmatprep.subr.mxu0 0.0
        %1638 = vmatpush1.msra.mxu0 0.0
        %1639 = vmatprep.subr.mxu0 0.0
        %1640 = vmatpush1.msra.mxu0 0.0
        %1641 = vmatprep.subr.mxu0 0.0
        %1642 = vmatpush1.msra.mxu0 0.0
        %1643 = vmatprep.subr.mxu0 0.0
        %1644 = vmatpush1.msra.mxu0 0.0
        %1645 = vmatprep.subr.mxu0 0.0
        %1646 = vmatpush1.msra.mxu0 0.0
        %1647 = vmatprep.subr.mxu0 0.0
        %1648 = vmatpush1.msra.mxu0 0.0
        %1649 = vmatprep.subr.mxu0 0.0
        %1650 = vmatpush1.msra.mxu0 0.0
        %1651 = vmatprep.subr.mxu0 0.0
        %1652 = vmatpush1.msra.mxu0 0.0
        %1653 = vmatprep.subr.mxu0 0.0
        %1654 = vmatpush1.msra.mxu0 0.0
        %1655 = vmatprep.subr.mxu0 0.0
        %1656 = vmatpush1.msra.mxu0 0.0
        %1657 = vmatprep.subr.mxu0 0.0
        %1658 = vmatpush1.msra.mxu0 0.0
        %1659 = vmatprep.subr.mxu0 0.0
        %1660 = vmatpush1.msra.mxu0 0.0
        %1661 = vmatprep.subr.mxu0 0.0
        %1662 = vmatpush1.msra.mxu0 0.0
        %1663 = vmatprep.subr.mxu0 0.0
        %1664 = vmatpush1.msra.mxu0 0.0
        %1665 = vmatprep.subr.mxu0 0.0
        %1666 = vmatpush1.msra.mxu0 0.0
        %1667 = vmatprep.subr.mxu0 0.0
        %1668 = vmatpush1.msra.mxu0 0.0
        %1669 = vmatprep.subr.mxu0 0.0
        %1670 = vmatpush1.msra.mxu0 0.0
        %1671 = vmatprep.subr.mxu0 0.0
        %1672 = vmatpush1.msra.mxu0 0.0
        %1673 = vmatprep.subr.mxu0 0.0
        %1674 = vmatpush1.msra.mxu0 0.0
        %1675 = vmatprep.subr.mxu0 0.0
        %1676 = vmatpush1.msra.mxu0 0.0
        %1677 = vmatprep.subr.mxu0 0.0
        %1678 = vmatpush1.msra.mxu0 0.0
        %1679 = vmatprep.subr.mxu0 0.0
        %1680 = vmatpush1.msra.mxu0 0.0
        %1681 = vmatprep.subr.mxu0 0.0
        %1682 = vmatpush1.msra.mxu0 0.0
        %1683 = vmatprep.mubr.f32.mxu0 0.0
        %1684 = vmatmul.mubr.f32.gmra.mrb[0].mxu0 %v444
        %v1685 = vpop.f32.mrb[0].mxu0
        %v1686 = vadd.f32 %v344, %v1685
        %v1687 = vpop.f32.mrb[0].mxu0
        %v1688 = vadd.f32 %v344, %v1687
        %1689 = vmatprep.mubr.f32.mxu0 0.0
        %1690 = vmatmul.mubr.f32.gmra.mrb[0].mxu0 %v447
        %v1691 = vpop.f32.mrb[0].mxu0
        %v1692 = vadd.f32 %v349, %v1691
        %v1693 = vpop.f32.mrb[0].mxu0
        %v1694 = vadd.f32 %v349, %v1693
        %1695 = vmatprep.mubr.f32.mxu0 0.0
        %1696 = vmatmul.mubr.f32.gmra.mrb[0].mxu0 %v450
        %v1697 = vpop.f32.mrb[0].mxu0
        %v1698 = vadd.f32 %v354, %v1697
        %v1699 = vpop.f32.mrb[0].mxu0
        %v1700 = vadd.f32 %v354, %v1699
        %1701 = vmatprep.mubr.f32.mxu0 0.0
        %1702 = vmatmul.mubr.f32.gmra.mrb[0].mxu0 %v453
        %v1703 = vpop.f32.mrb[0].mxu0
        %v1704 = vadd.f32 %v359, %v1703
        %v1705 = vpop.f32.mrb[0].mxu0
        %v1706 = vadd.f32 %v359, %v1705
        %1707 = vmatprep.mubr.f32.mxu0 0.0
        %1708 = vmatmul.mubr.f32.gmra.mrb[0].mxu0 %v456
        %v1709 = vpop.f32.mrb[0].mxu0
        %v1710 = vadd.f32 %v364, %v1709
        %v1711 = vpop.f32.mrb[0].mxu0
        %v1712 = vadd.f32 %v364, %v1711
        %1713 = vmatprep.mubr.f32.mxu0 0.0
        %1714 = vmatmul.mubr.f32.gmra.mrb[0].mxu0 %v459
        %v1715 = vpop.f32.mrb[0].mxu0
        %v1716 = vadd.f32 %v369, %v1715
        %v1717 = vpop.f32.mrb[0].mxu0
        %v1718 = vadd.f32 %v369, %v1717
        %1719 = vmatprep.mubr.f32.mxu0 0.0
        %1720 = vmatmul.mubr.f32.gmra.mrb[0].mxu0 %v462
        %v1721 = vpop.f32.mrb[0].mxu0
        %v1722 = vadd.f32 %v374, %v1721
        %v1723 = vpop.f32.mrb[0].mxu0
        %v1724 = vadd.f32 %v374, %v1723
        %1725 = vmatprep.mubr.f32.mxu0 0.0
        %1726 = vmatmul.mubr.f32.gmra.mrb[0].mxu0 %v465
        %v1727 = vpop.f32.mrb[0].mxu0
        %v1728 = vadd.f32 %v379, %v1727
        %v1729 = vpop.f32.mrb[0].mxu0
        %v1730 = vadd.f32 %v379, %v1729
        %1731 = vmatprep.mubr.f32.mxu0 0.0
        %1732 = vmatmul.mubr.f32.gmra.mrb[0].mxu0 %v468
        %v1733 = vpop.f32.mrb[0].mxu0
        %v1734 = vadd.f32 %v384, %v1733
        %v1735 = vpop.f32.mrb[0].mxu0
        %v1736 = vadd.f32 %v384, %v1735
        %1737 = vmatprep.mubr.f32.mxu0 0.0
        %1738 = vmatmul.mubr.f32.gmra.mrb[0].mxu0 %v471
        %v1739 = vpop.f32.mrb[0].mxu0
        %v1740 = vadd.f32 %v389, %v1739
        %v1741 = vpop.f32.mrb[0].mxu0
        %v1742 = vadd.f32 %v389, %v1741
        %1743 = vmatprep.mubr.f32.mxu0 0.0
        %1744 = vmatmul.mubr.f32.gmra.mrb[0].mxu0 %v474
        %v1745 = vpop.f32.mrb[0].mxu0
        %v1746 = vadd.f32 %v394, %v1745
        %v1747 = vpop.f32.mrb[0].mxu0
        %v1748 = vadd.f32 %v394, %v1747
        %1749 = vmatprep.mubr.f32.mxu0 0.0
        %1750 = vmatmul.mubr.f32.gmra.mrb[0].mxu0 %v477
        %v1751 = vpop.f32.mrb[0].mxu0
        %v1752 = vadd.f32 %v399, %v1751
        %v1753 = vpop.f32.mrb[0].mxu0
        %v1754 = vadd.f32 %v399, %v1753
        %1755 = vdwg.mxu0
        %1756 = vmatprep.subr.mxu0 %v1603
        %1757 = vmatpush1.msra.mxu0 %v1602
        %1758 = vmatprep.subr.mxu0 %v1605
        %1759 = vmatpush1.msra.mxu0 %v1604
        %1760 = vmatprep.subr.mxu0 %v1607
        %1761 = vmatpush1.msra.mxu0 %v1606
        %1762 = vmatprep.subr.mxu0 %v1609
        %1763 = vmatpush1.msra.mxu0 %v1608
        %1764 = vmatprep.subr.mxu0 0.0
        %1765 = vmatpush1.msra.mxu0 0.0
        %1766 = vmatprep.subr.mxu0 0.0
        %1767 = vmatpush1.msra.mxu0 0.0
        %1768 = vmatprep.subr.mxu0 0.0
        %1769 = vmatpush1.msra.mxu0 0.0
        %1770 = vmatprep.subr.mxu0 0.0
        %1771 = vmatpush1.msra.mxu0 0.0
        %1772 = vmatprep.subr.mxu0 0.0
        %1773 = vmatpush1.msra.mxu0 0.0
        %1774 = vmatprep.subr.mxu0 0.0
        %1775 = vmatpush1.msra.mxu0 0.0
        %1776 = vmatprep.subr.mxu0 0.0
        %1777 = vmatpush1.msra.mxu0 0.0
        %1778 = vmatprep.subr.mxu0 0.0
        %1779 = vmatpush1.msra.mxu0 0.0
        %1780 = vmatprep.subr.mxu0 0.0
        %1781 = vmatpush1.msra.mxu0 0.0
        %1782 = vmatprep.subr.mxu0 0.0
        %1783 = vmatpush1.msra.mxu0 0.0
        %1784 = vmatprep.subr.mxu0 0.0
        %1785 = vmatpush1.msra.mxu0 0.0
        %1786 = vmatprep.subr.mxu0 0.0
        %1787 = vmatpush1.msra.mxu0 0.0
        %1788 = vmatprep.subr.mxu0 0.0
        %1789 = vmatpush1.msra.mxu0 0.0
        %1790 = vmatprep.subr.mxu0 0.0
        %1791 = vmatpush1.msra.mxu0 0.0
        %1792 = vmatprep.subr.mxu0 0.0
        %1793 = vmatpush1.msra.mxu0 0.0
        %1794 = vmatprep.subr.mxu0 0.0
        %1795 = vmatpush1.msra.mxu0 0.0
        %1796 = vmatprep.subr.mxu0 0.0
        %1797 = vmatpush1.msra.mxu0 0.0
        %1798 = vmatprep.subr.mxu0 0.0
        %1799 = vmatpush1.msra.mxu0 0.0
        %1800 = vmatprep.subr.mxu0 0.0
        %1801 = vmatpush1.msra.mxu0 0.0
        %1802 = vmatprep.subr.mxu0 0.0
        %1803 = vmatpush1.msra.mxu0 0.0
        %1804 = vmatprep.subr.mxu0 0.0
        %1805 = vmatpush1.msra.mxu0 0.0
        %1806 = vmatprep.subr.mxu0 0.0
        %1807 = vmatpush1.msra.mxu0 0.0
        %1808 = vmatprep.subr.mxu0 0.0
        %1809 = vmatpush1.msra.mxu0 0.0
        %1810 = vmatprep.subr.mxu0 0.0
        %1811 = vmatpush1.msra.mxu0 0.0
        %1812 = vmatprep.subr.mxu0 0.0
        %1813 = vmatpush1.msra.mxu0 0.0
        %1814 = vmatprep.subr.mxu0 0.0
        %1815 = vmatpush1.msra.mxu0 0.0
        %1816 = vmatprep.subr.mxu0 0.0
        %1817 = vmatpush1.msra.mxu0 0.0
        %1818 = vmatprep.subr.mxu0 0.0
        %1819 = vmatpush1.msra.mxu0 0.0
        %1820 = vmatprep.mubr.f32.mxu0 0.0
        %1821 = vmatmul.mubr.f32.gmra.mrb[0].mxu0 %v867
        %v1822 = vpop.f32.mrb[0].mxu0
        %v1823 = vadd.f32 0.0, %v1822
        %v1824 = vpop.f32.mrb[0].mxu0
        %v1825 = vadd.f32 0.0, %v1824
        %1826 = vmatprep.mubr.f32.mxu0 0.0
        %1827 = vmatmul.mubr.f32.gmra.mrb[0].mxu0 %v870
        %v1828 = vpop.f32.mrb[0].mxu0
        %v1829 = vadd.f32 0.0, %v1828
        %v1830 = vpop.f32.mrb[0].mxu0
        %v1831 = vadd.f32 0.0, %v1830
        %1832 = vmatprep.mubr.f32.mxu0 0.0
        %1833 = vmatmul.mubr.f32.gmra.mrb[0].mxu0 %v873
        %v1834 = vpop.f32.mrb[0].mxu0
        %v1835 = vadd.f32 0.0, %v1834
        %v1836 = vpop.f32.mrb[0].mxu0
        %v1837 = vadd.f32 0.0, %v1836
        %1838 = vmatprep.mubr.f32.mxu0 0.0
        %1839 = vmatmul.mubr.f32.gmra.mrb[0].mxu0 %v876
        %v1840 = vpop.f32.mrb[0].mxu0
        %v1841 = vadd.f32 0.0, %v1840
        %v1842 = vpop.f32.mrb[0].mxu0
        %v1843 = vadd.f32 0.0, %v1842
        %1844 = vmatprep.mubr.f32.mxu0 0.0
        %1845 = vmatmul.mubr.f32.gmra.mrb[0].mxu0 %v879
        %v1846 = vpop.f32.mrb[0].mxu0
        %v1847 = vadd.f32 0.0, %v1846
        %v1848 = vpop.f32.mrb[0].mxu0
        %v1849 = vadd.f32 0.0, %v1848
        %1850 = vmatprep.mubr.f32.mxu0 0.0
        %1851 = vmatmul.mubr.f32.gmra.mrb[0].mxu0 %v882
        %v1852 = vpop.f32.mrb[0].mxu0
        %v1853 = vadd.f32 0.0, %v1852
        %v1854 = vpop.f32.mrb[0].mxu0
        %v1855 = vadd.f32 0.0, %v1854
        %1856 = vmatprep.mubr.f32.mxu0 0.0
        %1857 = vmatmul.mubr.f32.gmra.mrb[0].mxu0 %v885
        %v1858 = vpop.f32.mrb[0].mxu0
        %v1859 = vadd.f32 0.0, %v1858
        %v1860 = vpop.f32.mrb[0].mxu0
        %v1861 = vadd.f32 0.0, %v1860
        %1862 = vmatprep.mubr.f32.mxu0 0.0
        %1863 = vmatmul.mubr.f32.gmra.mrb[0].mxu0 %v888
        %v1864 = vpop.f32.mrb[0].mxu0
        %v1865 = vadd.f32 0.0, %v1864
        %v1866 = vpop.f32.mrb[0].mxu0
        %v1867 = vadd.f32 0.0, %v1866
        %1868 = vmatprep.mubr.f32.mxu0 0.0
        %1869 = vmatmul.mubr.f32.gmra.mrb[0].mxu0 %v891
        %v1870 = vpop.f32.mrb[0].mxu0
        %v1871 = vadd.f32 0.0, %v1870
        %v1872 = vpop.f32.mrb[0].mxu0
        %v1873 = vadd.f32 0.0, %v1872
        %1874 = vmatprep.mubr.f32.mxu0 0.0
        %1875 = vmatmul.mubr.f32.gmra.mrb[0].mxu0 %v894
        %v1876 = vpop.f32.mrb[0].mxu0
        %v1877 = vadd.f32 0.0, %v1876
        %v1878 = vpop.f32.mrb[0].mxu0
        %v1879 = vadd.f32 0.0, %v1878
        %1880 = vmatprep.mubr.f32.mxu0 0.0
        %1881 = vmatmul.mubr.f32.gmra.mrb[0].mxu0 %v897
        %v1882 = vpop.f32.mrb[0].mxu0
        %v1883 = vadd.f32 0.0, %v1882
        %v1884 = vpop.f32.mrb[0].mxu0
        %v1885 = vadd.f32 0.0, %v1884
        %1886 = vmatprep.mubr.f32.mxu0 0.0
        %1887 = vmatmul.mubr.f32.gmra.mrb[0].mxu0 %v900
        %v1888 = vpop.f32.mrb[0].mxu0
        %v1889 = vadd.f32 0.0, %v1888
        %v1890 = vpop.f32.mrb[0].mxu0
        %v1891 = vadd.f32 0.0, %v1890
        %1892 = vdwg.mxu0
        %v1893 = vadd.f32 %v1686, %v1823
        %v1894 = vadd.f32 %v1688, %v1825
        %v1895 = vadd.f32 %v1692, %v1829
        %v1896 = vadd.f32 %v1694, %v1831
        %v1897 = vadd.f32 %v1698, %v1835
        %v1898 = vadd.f32 %v1700, %v1837
        %v1899 = vadd.f32 %v1704, %v1841
        %v1900 = vadd.f32 %v1706, %v1843
        %v1901 = vmul.f32 %v1893, 0.5
        %v1902 = vmul.f32 %v1894, 0.5
        %v1903 = vmul.f32 %v1895, 0.5
        %v1904 = vmul.f32 %v1896, 0.5
        %v1905 = vmul.f32 %v1897, 0.5
        %v1906 = vmul.f32 %v1898, 0.5
        %v1907 = vmul.f32 %v1899, 0.5
        %v1908 = vmul.f32 %v1900, 0.5
        %v1909 = vtanh.pop %v1901
        %v1910 = vtanh.pop %v1902
        %v1911 = vtanh.pop %v1903
        %v1912 = vtanh.pop %v1904
        %v1913 = vtanh.pop %v1905
        %v1914 = vtanh.pop %v1906
        %v1915 = vtanh.pop %v1907
        %v1916 = vtanh.pop %v1908
        %v1917 = vmul.f32 %v1909, 0.5
        %v1918 = vmul.f32 %v1910, 0.5
        %v1919 = vmul.f32 %v1911, 0.5
        %v1920 = vmul.f32 %v1912, 0.5
        %v1921 = vmul.f32 %v1913, 0.5
        %v1922 = vmul.f32 %v1914, 0.5
        %v1923 = vmul.f32 %v1915, 0.5
        %v1924 = vmul.f32 %v1916, 0.5
        %v1925 = vadd.f32 %v1917, 0.5
        %v1926 = vadd.f32 %v1918, 0.5
        %v1927 = vadd.f32 %v1919, 0.5
        %v1928 = vadd.f32 %v1920, 0.5
        %v1929 = vadd.f32 %v1921, 0.5
        %v1930 = vadd.f32 %v1922, 0.5
        %v1931 = vadd.f32 %v1923, 0.5
        %v1932 = vadd.f32 %v1924, 0.5
        %v1933 = vadd.f32 %v1710, %v1847
        %v1934 = vadd.f32 %v1712, %v1849
        %v1935 = vadd.f32 %v1716, %v1853
        %v1936 = vadd.f32 %v1718, %v1855
        %v1937 = vadd.f32 %v1722, %v1859
        %v1938 = vadd.f32 %v1724, %v1861
        %v1939 = vadd.f32 %v1728, %v1865
        %v1940 = vadd.f32 %v1730, %v1867
        %v1941 = vmul.f32 %v1933, 0.5
        %v1942 = vmul.f32 %v1934, 0.5
        %v1943 = vmul.f32 %v1935, 0.5
        %v1944 = vmul.f32 %v1936, 0.5
        %v1945 = vmul.f32 %v1937, 0.5
        %v1946 = vmul.f32 %v1938, 0.5
        %v1947 = vmul.f32 %v1939, 0.5
        %v1948 = vmul.f32 %v1940, 0.5
        %v1949 = vtanh.pop %v1941
        %v1950 = vtanh.pop %v1942
        %v1951 = vtanh.pop %v1943
        %v1952 = vtanh.pop %v1944
        %v1953 = vtanh.pop %v1945
        %v1954 = vtanh.pop %v1946
        %v1955 = vtanh.pop %v1947
        %v1956 = vtanh.pop %v1948
        %v1957 = vmul.f32 %v1949, 0.5
        %v1958 = vmul.f32 %v1950, 0.5
        %v1959 = vmul.f32 %v1951, 0.5
        %v1960 = vmul.f32 %v1952, 0.5
        %v1961 = vmul.f32 %v1953, 0.5
        %v1962 = vmul.f32 %v1954, 0.5
        %v1963 = vmul.f32 %v1955, 0.5
        %v1964 = vmul.f32 %v1956, 0.5
        %v1965 = vadd.f32 %v1957, 0.5
        %v1966 = vadd.f32 %v1958, 0.5
        %v1967 = vadd.f32 %v1959, 0.5
        %v1968 = vadd.f32 %v1960, 0.5
        %v1969 = vadd.f32 %v1961, 0.5
        %v1970 = vadd.f32 %v1962, 0.5
        %v1971 = vadd.f32 %v1963, 0.5
        %v1972 = vadd.f32 %v1964, 0.5
        %v1973 = vadd.f32 %v1871, %v408
        %v1974 = vadd.f32 %v1873, %v408
        %v1975 = vadd.f32 %v1877, %v413
        %v1976 = vadd.f32 %v1879, %v413
        %v1977 = vadd.f32 %v1883, %v418
        %v1978 = vadd.f32 %v1885, %v418
        %v1979 = vadd.f32 %v1889, %v423
        %v1980 = vadd.f32 %v1891, %v423
        %v1981 = vmul.f32 %v1925, %v1973
        %v1982 = vmul.f32 %v1926, %v1974
        %v1983 = vmul.f32 %v1927, %v1975
        %v1984 = vmul.f32 %v1928, %v1976
        %v1985 = vmul.f32 %v1929, %v1977
        %v1986 = vmul.f32 %v1930, %v1978
        %v1987 = vmul.f32 %v1931, %v1979
        %v1988 = vmul.f32 %v1932, %v1980
        %v1989 = vadd.f32 %v1734, %v1981
        %v1990 = vadd.f32 %v1736, %v1982
        %v1991 = vadd.f32 %v1740, %v1983
        %v1992 = vadd.f32 %v1742, %v1984
        %v1993 = vadd.f32 %v1746, %v1985
        %v1994 = vadd.f32 %v1748, %v1986
        %v1995 = vadd.f32 %v1752, %v1987
        %v1996 = vadd.f32 %v1754, %v1988
        %v1997 = vtanh.pop %v1989
        %v1998 = vtanh.pop %v1990
        %v1999 = vtanh.pop %v1991
        %v2000 = vtanh.pop %v1992
        %v2001 = vtanh.pop %v1993
        %v2002 = vtanh.pop %v1994
        %v2003 = vtanh.pop %v1995
        %v2004 = vtanh.pop %v1996
        %v2005 = vsub.f32 1.0, %v1965
        %v2006 = vsub.f32 1.0, %v1966
        %v2007 = vsub.f32 1.0, %v1967
        %v2008 = vsub.f32 1.0, %v1968
        %v2009 = vsub.f32 1.0, %v1969
        %v2010 = vsub.f32 1.0, %v1970
        %v2011 = vsub.f32 1.0, %v1971
        %v2012 = vsub.f32 1.0, %v1972
        %v2013 = vmul.f32 %v2005, %v1997
        %v2014 = vmul.f32 %v2006, %v1998
        %v2015 = vmul.f32 %v2007, %v1999
        %v2016 = vmul.f32 %v2008, %v2000
        %v2017 = vmul.f32 %v2009, %v2001
        %v2018 = vmul.f32 %v2010, %v2002
        %v2019 = vmul.f32 %v2011, %v2003
        %v2020 = vmul.f32 %v2012, %v2004
        %v2021 = vmul.f32 %v1965, %v1602
        %v2022 = vmul.f32 %v1966, %v1603
        %v2023 = vmul.f32 %v1967, %v1604
        %v2024 = vmul.f32 %v1968, %v1605
        %v2025 = vmul.f32 %v1969, %v1606
        %v2026 = vmul.f32 %v1970, %v1607
        %v2027 = vmul.f32 %v1971, %v1608
        %v2028 = vmul.f32 %v1972, %v1609
        %v2029 = vadd.f32 %v2013, %v2021
        %v2030 = vadd.f32 %v2014, %v2022
        %v2031 = vadd.f32 %v2015, %v2023
        %v2032 = vadd.f32 %v2016, %v2024
        %v2033 = vadd.f32 %v2017, %v2025
        %v2034 = vadd.f32 %v2018, %v2026
        %v2035 = vadd.f32 %v2019, %v2027
        %v2036 = vadd.f32 %v2020, %v2028
        %s2037 = scalar_lea.vmem %s267, 256 [#allocation2]
        %v2038 = vld [vmem:[%s2037] sm:$0xff]
        %v2039 = vld [vmem:[%s2037 + $0x8] sm:$0xff]
        %v2040 = vld [vmem:[%s2037 + $0x10] sm:$0xff]
        %v2041 = vld [vmem:[%s2037 + $0x18] sm:$0xff]
        %v2042 = vld [vmem:[%s2037 + $0x20] sm:$0xff]
        %v2043 = vld [vmem:[%s2037 + $0x28] sm:$0xff]
        %v2044 = vld [vmem:[%s2037 + $0x30] sm:$0xff]
        %v2045 = vld [vmem:[%s2037 + $0x38] sm:$0xff]
        %2046 = vmatprep.subr.mxu0 %v2039
        %2047 = vmatpush1.msra.mxu0 %v2038
        %2048 = vmatprep.subr.mxu0 %v2041
        %2049 = vmatpush1.msra.mxu0 %v2040
        %2050 = vmatprep.subr.mxu0 %v2043
        %2051 = vmatpush1.msra.mxu0 %v2042
        %2052 = vmatprep.subr.mxu0 %v2045
        %2053 = vmatpush1.msra.mxu0 %v2044
        %2054 = vmatprep.subr.mxu0 0.0
        %2055 = vmatpush1.msra.mxu0 0.0
        %2056 = vmatprep.subr.mxu0 0.0
        %2057 = vmatpush1.msra.mxu0 0.0
        %2058 = vmatprep.subr.mxu0 0.0
        %2059 = vmatpush1.msra.mxu0 0.0
        %2060 = vmatprep.subr.mxu0 0.0
        %2061 = vmatpush1.msra.mxu0 0.0
        %2062 = vmatprep.subr.mxu0 0.0
        %2063 = vmatpush1.msra.mxu0 0.0
        %2064 = vmatprep.subr.mxu0 0.0
        %2065 = vmatpush1.msra.mxu0 0.0
        %2066 = vmatprep.subr.mxu0 0.0
        %2067 = vmatpush1.msra.mxu0 0.0
        %2068 = vmatprep.subr.mxu0 0.0
        %2069 = vmatpush1.msra.mxu0 0.0
        %2070 = vmatprep.subr.mxu0 0.0
        %2071 = vmatpush1.msra.mxu0 0.0
        %2072 = vmatprep.subr.mxu0 0.0
        %2073 = vmatpush1.msra.mxu0 0.0
        %2074 = vmatprep.subr.mxu0 0.0
        %2075 = vmatpush1.msra.mxu0 0.0
        %2076 = vmatprep.subr.mxu0 0.0
        %2077 = vmatpush1.msra.mxu0 0.0
        %2078 = vmatprep.subr.mxu0 0.0
        %2079 = vmatpush1.msra.mxu0 0.0
        %2080 = vmatprep.subr.mxu0 0.0
        %2081 = vmatpush1.msra.mxu0 0.0
        %2082 = vmatprep.subr.mxu0 0.0
        %2083 = vmatpush1.msra.mxu0 0.0
        %2084 = vmatprep.subr.mxu0 0.0
        %2085 = vmatpush1.msra.mxu0 0.0
        %2086 = vmatprep.subr.mxu0 0.0
        %2087 = vmatpush1.msra.mxu0 0.0
        %2088 = vmatprep.subr.mxu0 0.0
        %2089 = vmatpush1.msra.mxu0 0.0
        %2090 = vmatprep.subr.mxu0 0.0
        %2091 = vmatpush1.msra.mxu0 0.0
        %2092 = vmatprep.subr.mxu0 0.0
        %2093 = vmatpush1.msra.mxu0 0.0
        %2094 = vmatprep.subr.mxu0 0.0
        %2095 = vmatpush1.msra.mxu0 0.0
        %2096 = vmatprep.subr.mxu0 0.0
        %2097 = vmatpush1.msra.mxu0 0.0
        %2098 = vmatprep.subr.mxu0 0.0
        %2099 = vmatpush1.msra.mxu0 0.0
        %2100 = vmatprep.subr.mxu0 0.0
        %2101 = vmatpush1.msra.mxu0 0.0
        %2102 = vmatprep.subr.mxu0 0.0
        %2103 = vmatpush1.msra.mxu0 0.0
        %2104 = vmatprep.subr.mxu0 0.0
        %2105 = vmatpush1.msra.mxu0 0.0
        %2106 = vmatprep.subr.mxu0 0.0
        %2107 = vmatpush1.msra.mxu0 0.0
        %2108 = vmatprep.subr.mxu0 0.0
        %2109 = vmatpush1.msra.mxu0 0.0
        %2110 = vmatprep.mubr.f32.mxu0 0.0
        %2111 = vmatmul.mubr.f32.gmra.mrb[0].mxu0 %v444
        %v2112 = vpop.f32.mrb[0].mxu0
        %v2113 = vadd.f32 %v344, %v2112
        %v2114 = vpop.f32.mrb[0].mxu0
        %v2115 = vadd.f32 %v344, %v2114
        %2116 = vmatprep.mubr.f32.mxu0 0.0
        %2117 = vmatmul.mubr.f32.gmra.mrb[0].mxu0 %v447
        %v2118 = vpop.f32.mrb[0].mxu0
        %v2119 = vadd.f32 %v349, %v2118
        %v2120 = vpop.f32.mrb[0].mxu0
        %v2121 = vadd.f32 %v349, %v2120
        %2122 = vmatprep.mubr.f32.mxu0 0.0
        %2123 = vmatmul.mubr.f32.gmra.mrb[0].mxu0 %v450
        %v2124 = vpop.f32.mrb[0].mxu0
        %v2125 = vadd.f32 %v354, %v2124
        %v2126 = vpop.f32.mrb[0].mxu0
        %v2127 = vadd.f32 %v354, %v2126
        %2128 = vmatprep.mubr.f32.mxu0 0.0
        %2129 = vmatmul.mubr.f32.gmra.mrb[0].mxu0 %v453
        %v2130 = vpop.f32.mrb[0].mxu0
        %v2131 = vadd.f32 %v359, %v2130
        %v2132 = vpop.f32.mrb[0].mxu0
        %v2133 = vadd.f32 %v359, %v2132
        %2134 = vmatprep.mubr.f32.mxu0 0.0
        %2135 = vmatmul.mubr.f32.gmra.mrb[0].mxu0 %v456
        %v2136 = vpop.f32.mrb[0].mxu0
        %v2137 = vadd.f32 %v364, %v2136
        %v2138 = vpop.f32.mrb[0].mxu0
        %v2139 = vadd.f32 %v364, %v2138
        %2140 = vmatprep.mubr.f32.mxu0 0.0
        %2141 = vmatmul.mubr.f32.gmra.mrb[0].mxu0 %v459
        %v2142 = vpop.f32.mrb[0].mxu0
        %v2143 = vadd.f32 %v369, %v2142
        %v2144 = vpop.f32.mrb[0].mxu0
        %v2145 = vadd.f32 %v369, %v2144
        %2146 = vmatprep.mubr.f32.mxu0 0.0
        %2147 = vmatmul.mubr.f32.gmra.mrb[0].mxu0 %v462
        %v2148 = vpop.f32.mrb[0].mxu0
        %v2149 = vadd.f32 %v374, %v2148
        %v2150 = vpop.f32.mrb[0].mxu0
        %v2151 = vadd.f32 %v374, %v2150
        %2152 = vmatprep.mubr.f32.mxu0 0.0
        %2153 = vmatmul.mubr.f32.gmra.mrb[0].mxu0 %v465
        %v2154 = vpop.f32.mrb[0].mxu0
        %v2155 = vadd.f32 %v379, %v2154
        %v2156 = vpop.f32.mrb[0].mxu0
        %v2157 = vadd.f32 %v379, %v2156
        %2158 = vmatprep.mubr.f32.mxu0 0.0
        %2159 = vmatmul.mubr.f32.gmra.mrb[0].mxu0 %v468
        %v2160 = vpop.f32.mrb[0].mxu0
        %v2161 = vadd.f32 %v384, %v2160
        %v2162 = vpop.f32.mrb[0].mxu0
        %v2163 = vadd.f32 %v384, %v2162
        %2164 = vmatprep.mubr.f32.mxu0 0.0
        %2165 = vmatmul.mubr.f32.gmra.mrb[0].mxu0 %v471
        %v2166 = vpop.f32.mrb[0].mxu0
        %v2167 = vadd.f32 %v389, %v2166
        %v2168 = vpop.f32.mrb[0].mxu0
        %v2169 = vadd.f32 %v389, %v2168
        %2170 = vmatprep.mubr.f32.mxu0 0.0
        %2171 = vmatmul.mubr.f32.gmra.mrb[0].mxu0 %v474
        %v2172 = vpop.f32.mrb[0].mxu0
        %v2173 = vadd.f32 %v394, %v2172
        %v2174 = vpop.f32.mrb[0].mxu0
        %v2175 = vadd.f32 %v394, %v2174
        %2176 = vmatprep.mubr.f32.mxu0 0.0
        %2177 = vmatmul.mubr.f32.gmra.mrb[0].mxu0 %v477
        %v2178 = vpop.f32.mrb[0].mxu0
        %v2179 = vadd.f32 %v399, %v2178
        %v2180 = vpop.f32.mrb[0].mxu0
        %v2181 = vadd.f32 %v399, %v2180
        %2182 = vdwg.mxu0
        %2183 = vmatprep.subr.mxu0 %v2030
        %2184 = vmatpush1.msra.mxu0 %v2029
        %2185 = vmatprep.subr.mxu0 %v2032
        %2186 = vmatpush1.msra.mxu0 %v2031
        %2187 = vmatprep.subr.mxu0 %v2034
        %2188 = vmatpush1.msra.mxu0 %v2033
        %2189 = vmatprep.subr.mxu0 %v2036
        %2190 = vmatpush1.msra.mxu0 %v2035
        %2191 = vmatprep.subr.mxu0 0.0
        %2192 = vmatpush1.msra.mxu0 0.0
        %2193 = vmatprep.subr.mxu0 0.0
        %2194 = vmatpush1.msra.mxu0 0.0
        %2195 = vmatprep.subr.mxu0 0.0
        %2196 = vmatpush1.msra.mxu0 0.0
        %2197 = vmatprep.subr.mxu0 0.0
        %2198 = vmatpush1.msra.mxu0 0.0
        %2199 = vmatprep.subr.mxu0 0.0
        %2200 = vmatpush1.msra.mxu0 0.0
        %2201 = vmatprep.subr.mxu0 0.0
        %2202 = vmatpush1.msra.mxu0 0.0
        %2203 = vmatprep.subr.mxu0 0.0
        %2204 = vmatpush1.msra.mxu0 0.0
        %2205 = vmatprep.subr.mxu0 0.0
        %2206 = vmatpush1.msra.mxu0 0.0
        %2207 = vmatprep.subr.mxu0 0.0
        %2208 = vmatpush1.msra.mxu0 0.0
        %2209 = vmatprep.subr.mxu0 0.0
        %2210 = vmatpush1.msra.mxu0 0.0
        %2211 = vmatprep.subr.mxu0 0.0
        %2212 = vmatpush1.msra.mxu0 0.0
        %2213 = vmatprep.subr.mxu0 0.0
        %2214 = vmatpush1.msra.mxu0 0.0
        %2215 = vmatprep.subr.mxu0 0.0
        %2216 = vmatpush1.msra.mxu0 0.0
        %2217 = vmatprep.subr.mxu0 0.0
        %2218 = vmatpush1.msra.mxu0 0.0
        %2219 = vmatprep.subr.mxu0 0.0
        %2220 = vmatpush1.msra.mxu0 0.0
        %2221 = vmatprep.subr.mxu0 0.0
        %2222 = vmatpush1.msra.mxu0 0.0
        %2223 = vmatprep.subr.mxu0 0.0
        %2224 = vmatpush1.msra.mxu0 0.0
        %2225 = vmatprep.subr.mxu0 0.0
        %2226 = vmatpush1.msra.mxu0 0.0
        %2227 = vmatprep.subr.mxu0 0.0
        %2228 = vmatpush1.msra.mxu0 0.0
        %2229 = vmatprep.subr.mxu0 0.0
        %2230 = vmatpush1.msra.mxu0 0.0
        %2231 = vmatprep.subr.mxu0 0.0
        %2232 = vmatpush1.msra.mxu0 0.0
        %2233 = vmatprep.subr.mxu0 0.0
        %2234 = vmatpush1.msra.mxu0 0.0
        %2235 = vmatprep.subr.mxu0 0.0
        %2236 = vmatpush1.msra.mxu0 0.0
        %2237 = vmatprep.subr.mxu0 0.0
        %2238 = vmatpush1.msra.mxu0 0.0
        %2239 = vmatprep.subr.mxu0 0.0
        %2240 = vmatpush1.msra.mxu0 0.0
        %2241 = vmatprep.subr.mxu0 0.0
        %2242 = vmatpush1.msra.mxu0 0.0
        %2243 = vmatprep.subr.mxu0 0.0
        %2244 = vmatpush1.msra.mxu0 0.0
        %2245 = vmatprep.subr.mxu0 0.0
        %2246 = vmatpush1.msra.mxu0 0.0
        %2247 = vmatprep.mubr.f32.mxu0 0.0
        %2248 = vmatmul.mubr.f32.gmra.mrb[0].mxu0 %v867
        %v2249 = vpop.f32.mrb[0].mxu0
        %v2250 = vadd.f32 0.0, %v2249
        %v2251 = vpop.f32.mrb[0].mxu0
        %v2252 = vadd.f32 0.0, %v2251
        %2253 = vmatprep.mubr.f32.mxu0 0.0
        %2254 = vmatmul.mubr.f32.gmra.mrb[0].mxu0 %v870
        %v2255 = vpop.f32.mrb[0].mxu0
        %v2256 = vadd.f32 0.0, %v2255
        %v2257 = vpop.f32.mrb[0].mxu0
        %v2258 = vadd.f32 0.0, %v2257
        %2259 = vmatprep.mubr.f32.mxu0 0.0
        %2260 = vmatmul.mubr.f32.gmra.mrb[0].mxu0 %v873
        %v2261 = vpop.f32.mrb[0].mxu0
        %v2262 = vadd.f32 0.0, %v2261
        %v2263 = vpop.f32.mrb[0].mxu0
        %v2264 = vadd.f32 0.0, %v2263
        %2265 = vmatprep.mubr.f32.mxu0 0.0
        %2266 = vmatmul.mubr.f32.gmra.mrb[0].mxu0 %v876
        %v2267 = vpop.f32.mrb[0].mxu0
        %v2268 = vadd.f32 0.0, %v2267
        %v2269 = vpop.f32.mrb[0].mxu0
        %v2270 = vadd.f32 0.0, %v2269
        %2271 = vmatprep.mubr.f32.mxu0 0.0
        %2272 = vmatmul.mubr.f32.gmra.mrb[0].mxu0 %v879
        %v2273 = vpop.f32.mrb[0].mxu0
        %v2274 = vadd.f32 0.0, %v2273
        %v2275 = vpop.f32.mrb[0].mxu0
        %v2276 = vadd.f32 0.0, %v2275
        %2277 = vmatprep.mubr.f32.mxu0 0.0
        %2278 = vmatmul.mubr.f32.gmra.mrb[0].mxu0 %v882
        %v2279 = vpop.f32.mrb[0].mxu0
        %v2280 = vadd.f32 0.0, %v2279
        %v2281 = vpop.f32.mrb[0].mxu0
        %v2282 = vadd.f32 0.0, %v2281
        %2283 = vmatprep.mubr.f32.mxu0 0.0
        %2284 = vmatmul.mubr.f32.gmra.mrb[0].mxu0 %v885
        %v2285 = vpop.f32.mrb[0].mxu0
        %v2286 = vadd.f32 0.0, %v2285
        %v2287 = vpop.f32.mrb[0].mxu0
        %v2288 = vadd.f32 0.0, %v2287
        %2289 = vmatprep.mubr.f32.mxu0 0.0
        %2290 = vmatmul.mubr.f32.gmra.mrb[0].mxu0 %v888
        %v2291 = vpop.f32.mrb[0].mxu0
        %v2292 = vadd.f32 0.0, %v2291
        %v2293 = vpop.f32.mrb[0].mxu0
        %v2294 = vadd.f32 0.0, %v2293
        %2295 = vmatprep.mubr.f32.mxu0 0.0
        %2296 = vmatmul.mubr.f32.gmra.mrb[0].mxu0 %v891
        %v2297 = vpop.f32.mrb[0].mxu0
        %v2298 = vadd.f32 0.0, %v2297
        %v2299 = vpop.f32.mrb[0].mxu0
        %v2300 = vadd.f32 0.0, %v2299
        %2301 = vmatprep.mubr.f32.mxu0 0.0
        %2302 = vmatmul.mubr.f32.gmra.mrb[0].mxu0 %v894
        %v2303 = vpop.f32.mrb[0].mxu0
        %v2304 = vadd.f32 0.0, %v2303
        %v2305 = vpop.f32.mrb[0].mxu0
        %v2306 = vadd.f32 0.0, %v2305
        %2307 = vmatprep.mubr.f32.mxu0 0.0
        %2308 = vmatmul.mubr.f32.gmra.mrb[0].mxu0 %v897
        %v2309 = vpop.f32.mrb[0].mxu0
        %v2310 = vadd.f32 0.0, %v2309
        %v2311 = vpop.f32.mrb[0].mxu0
        %v2312 = vadd.f32 0.0, %v2311
        %2313 = vmatprep.mubr.f32.mxu0 0.0
        %2314 = vmatmul.mubr.f32.gmra.mrb[0].mxu0 %v900
        %v2315 = vpop.f32.mrb[0].mxu0
        %v2316 = vadd.f32 0.0, %v2315
        %v2317 = vpop.f32.mrb[0].mxu0
        %v2318 = vadd.f32 0.0, %v2317
        %2319 = vdwg.mxu0
        %v2320 = vadd.f32 %v2113, %v2250
        %v2321 = vadd.f32 %v2115, %v2252
        %v2322 = vadd.f32 %v2119, %v2256
        %v2323 = vadd.f32 %v2121, %v2258
        %v2324 = vadd.f32 %v2125, %v2262
        %v2325 = vadd.f32 %v2127, %v2264
        %v2326 = vadd.f32 %v2131, %v2268
        %v2327 = vadd.f32 %v2133, %v2270
        %v2328 = vmul.f32 %v2320, 0.5
        %v2329 = vmul.f32 %v2321, 0.5
        %v2330 = vmul.f32 %v2322, 0.5
        %v2331 = vmul.f32 %v2323, 0.5
        %v2332 = vmul.f32 %v2324, 0.5
        %v2333 = vmul.f32 %v2325, 0.5
        %v2334 = vmul.f32 %v2326, 0.5
        %v2335 = vmul.f32 %v2327, 0.5
        %v2336 = vtanh.pop %v2328
        %v2337 = vtanh.pop %v2329
        %v2338 = vtanh.pop %v2330
        %v2339 = vtanh.pop %v2331
        %v2340 = vtanh.pop %v2332
        %v2341 = vtanh.pop %v2333
        %v2342 = vtanh.pop %v2334
        %v2343 = vtanh.pop %v2335
        %v2344 = vmul.f32 %v2336, 0.5
        %v2345 = vmul.f32 %v2337, 0.5
        %v2346 = vmul.f32 %v2338, 0.5
        %v2347 = vmul.f32 %v2339, 0.5
        %v2348 = vmul.f32 %v2340, 0.5
        %v2349 = vmul.f32 %v2341, 0.5
        %v2350 = vmul.f32 %v2342, 0.5
        %v2351 = vmul.f32 %v2343, 0.5
        %v2352 = vadd.f32 %v2344, 0.5
        %v2353 = vadd.f32 %v2345, 0.5
        %v2354 = vadd.f32 %v2346, 0.5
        %v2355 = vadd.f32 %v2347, 0.5
        %v2356 = vadd.f32 %v2348, 0.5
        %v2357 = vadd.f32 %v2349, 0.5
        %v2358 = vadd.f32 %v2350, 0.5
        %v2359 = vadd.f32 %v2351, 0.5
        %v2360 = vadd.f32 %v2137, %v2274
        %v2361 = vadd.f32 %v2139, %v2276
        %v2362 = vadd.f32 %v2143, %v2280
        %v2363 = vadd.f32 %v2145, %v2282
        %v2364 = vadd.f32 %v2149, %v2286
        %v2365 = vadd.f32 %v2151, %v2288
        %v2366 = vadd.f32 %v2155, %v2292
        %v2367 = vadd.f32 %v2157, %v2294
        %v2368 = vmul.f32 %v2360, 0.5
        %v2369 = vmul.f32 %v2361, 0.5
        %v2370 = vmul.f32 %v2362, 0.5
        %v2371 = vmul.f32 %v2363, 0.5
        %v2372 = vmul.f32 %v2364, 0.5
        %v2373 = vmul.f32 %v2365, 0.5
        %v2374 = vmul.f32 %v2366, 0.5
        %v2375 = vmul.f32 %v2367, 0.5
        %v2376 = vtanh.pop %v2368
        %v2377 = vtanh.pop %v2369
        %v2378 = vtanh.pop %v2370
        %v2379 = vtanh.pop %v2371
        %v2380 = vtanh.pop %v2372
        %v2381 = vtanh.pop %v2373
        %v2382 = vtanh.pop %v2374
        %v2383 = vtanh.pop %v2375
        %v2384 = vmul.f32 %v2376, 0.5
        %v2385 = vmul.f32 %v2377, 0.5
        %v2386 = vmul.f32 %v2378, 0.5
        %v2387 = vmul.f32 %v2379, 0.5
        %v2388 = vmul.f32 %v2380, 0.5
        %v2389 = vmul.f32 %v2381, 0.5
        %v2390 = vmul.f32 %v2382, 0.5
        %v2391 = vmul.f32 %v2383, 0.5
        %v2392 = vadd.f32 %v2384, 0.5
        %v2393 = vadd.f32 %v2385, 0.5
        %v2394 = vadd.f32 %v2386, 0.5
        %v2395 = vadd.f32 %v2387, 0.5
        %v2396 = vadd.f32 %v2388, 0.5
        %v2397 = vadd.f32 %v2389, 0.5
        %v2398 = vadd.f32 %v2390, 0.5
        %v2399 = vadd.f32 %v2391, 0.5
        %v2400 = vadd.f32 %v2298, %v408
        %v2401 = vadd.f32 %v2300, %v408
        %v2402 = vadd.f32 %v2304, %v413
        %v2403 = vadd.f32 %v2306, %v413
        %v2404 = vadd.f32 %v2310, %v418
        %v2405 = vadd.f32 %v2312, %v418
        %v2406 = vadd.f32 %v2316, %v423
        %v2407 = vadd.f32 %v2318, %v423
        %v2408 = vmul.f32 %v2352, %v2400
        %v2409 = vmul.f32 %v2353, %v2401
        %v2410 = vmul.f32 %v2354, %v2402
        %v2411 = vmul.f32 %v2355, %v2403
        %v2412 = vmul.f32 %v2356, %v2404
        %v2413 = vmul.f32 %v2357, %v2405
        %v2414 = vmul.f32 %v2358, %v2406
        %v2415 = vmul.f32 %v2359, %v2407
        %v2416 = vadd.f32 %v2161, %v2408
        %v2417 = vadd.f32 %v2163, %v2409
        %v2418 = vadd.f32 %v2167, %v2410
        %v2419 = vadd.f32 %v2169, %v2411
        %v2420 = vadd.f32 %v2173, %v2412
        %v2421 = vadd.f32 %v2175, %v2413
        %v2422 = vadd.f32 %v2179, %v2414
        %v2423 = vadd.f32 %v2181, %v2415
        %v2424 = vtanh.pop %v2416
        %v2425 = vtanh.pop %v2417
        %v2426 = vtanh.pop %v2418
        %v2427 = vtanh.pop %v2419
        %v2428 = vtanh.pop %v2420
        %v2429 = vtanh.pop %v2421
        %v2430 = vtanh.pop %v2422
        %v2431 = vtanh.pop %v2423
        %v2432 = vsub.f32 1.0, %v2392
        %v2433 = vsub.f32 1.0, %v2393
        %v2434 = vsub.f32 1.0, %v2394
        %v2435 = vsub.f32 1.0, %v2395
        %v2436 = vsub.f32 1.0, %v2396
        %v2437 = vsub.f32 1.0, %v2397
        %v2438 = vsub.f32 1.0, %v2398
        %v2439 = vsub.f32 1.0, %v2399
        %v2440 = vmul.f32 %v2432, %v2424
        %v2441 = vmul.f32 %v2433, %v2425
        %v2442 = vmul.f32 %v2434, %v2426
        %v2443 = vmul.f32 %v2435, %v2427
        %v2444 = vmul.f32 %v2436, %v2428
        %v2445 = vmul.f32 %v2437, %v2429
        %v2446 = vmul.f32 %v2438, %v2430
        %v2447 = vmul.f32 %v2439, %v2431
        %v2448 = vmul.f32 %v2392, %v2029
        %v2449 = vmul.f32 %v2393, %v2030
        %v2450 = vmul.f32 %v2394, %v2031
        %v2451 = vmul.f32 %v2395, %v2032
        %v2452 = vmul.f32 %v2396, %v2033
        %v2453 = vmul.f32 %v2397, %v2034
        %v2454 = vmul.f32 %v2398, %v2035
        %v2455 = vmul.f32 %v2399, %v2036
        %v2456 = vadd.f32 %v2440, %v2448
        %v2457 = vadd.f32 %v2441, %v2449
        %v2458 = vadd.f32 %v2442, %v2450
        %v2459 = vadd.f32 %v2443, %v2451
        %v2460 = vadd.f32 %v2444, %v2452
        %v2461 = vadd.f32 %v2445, %v2453
        %v2462 = vadd.f32 %v2446, %v2454
        %v2463 = vadd.f32 %v2447, %v2455
        %2465 = vset.pattern.permute.xlu0 0
        %2466 = vperm.xlu0 %2465, %v425
        %v2467 = vpop.permute.xlu0 %2466
        %2470 = vset.pattern.permute.xlu0 0
        %2471 = vperm.xlu0 %2470, %v426
        %v2472 = vpop.permute.xlu0 %2471
        %2475 = vset.pattern.permute.xlu0 0
        %2476 = vperm.xlu0 %2475, %v427
        %v2477 = vpop.permute.xlu0 %2476
        %2480 = vset.pattern.permute.xlu0 0
        %2481 = vperm.xlu0 %2480, %v428
        %v2482 = vpop.permute.xlu0 %2481
        %v2484 = vmul.f32 %v2456, %v2467
        %v2485 = vmul.f32 %v2457, %v2467
        %v2486 = vmul.f32 %v2458, %v2472
        %v2487 = vmul.f32 %v2459, %v2472
        %v2488 = vmul.f32 %v2460, %v2477
        %v2489 = vmul.f32 %v2461, %v2477
        %v2490 = vmul.f32 %v2462, %v2482
        %v2491 = vmul.f32 %v2463, %v2482
        %2493 = vset.pattern.permute.xlu0 0
        %2494 = vperm.xlu0 %2493, %v429
        %v2495 = vpop.permute.xlu0 %2494
        %2498 = vset.pattern.permute.xlu0 0
        %2499 = vperm.xlu0 %2498, %v430
        %v2500 = vpop.permute.xlu0 %2499
        %2503 = vset.pattern.permute.xlu0 0
        %2504 = vperm.xlu0 %2503, %v431
        %v2505 = vpop.permute.xlu0 %2504
        %2508 = vset.pattern.permute.xlu0 0
        %2509 = vperm.xlu0 %2508, %v432
        %v2510 = vpop.permute.xlu0 %2509
        %v2512 = vadd.f32 %v2484, %v2495
        %v2513 = vadd.f32 %v2485, %v2495
        %v2514 = vadd.f32 %v2486, %v2500
        %v2515 = vadd.f32 %v2487, %v2500
        %v2516 = vadd.f32 %v2488, %v2505
        %v2517 = vadd.f32 %v2489, %v2505
        %v2518 = vadd.f32 %v2490, %v2510
        %v2519 = vadd.f32 %v2491, %v2510
        %v2520 = vmax.f32 %v2512, 0.0
        %v2521 = vmax.f32 %v2513, 0.0
        %v2522 = vmax.f32 %v2514, 0.0
        %v2523 = vmax.f32 %v2515, 0.0
        %v2524 = vmax.f32 %v2516, 0.0
        %v2525 = vmax.f32 %v2517, 0.0
        %v2526 = vmax.f32 %v2518, 0.0
        %v2527 = vmax.f32 %v2519, 0.0
        %2528 = vst [vmem:[%s293] sm:$0xff] %v2520
        %2529 = vst [vmem:[%s293 + $0x8] sm:$0xff] %v2521
        %2530 = vst [vmem:[%s293 + $0x10] sm:$0xff] %v2522
        %2531 = vst [vmem:[%s293 + $0x18] sm:$0xff] %v2523
        %2532 = vst [vmem:[%s293 + $0x20] sm:$0xff] %v2524
        %2533 = vst [vmem:[%s293 + $0x28] sm:$0xff] %v2525
        %2534 = vst [vmem:[%s293 + $0x30] sm:$0xff] %v2526
        %2535 = vst [vmem:[%s293 + $0x38] sm:$0xff] %v2527
        %2537 = vset.pattern.permute.xlu0 0
        %2538 = vperm.xlu0 %2537, %v433
        %v2539 = vpop.permute.xlu0 %2538
        %v2542 = vsel %vm442, %v328, 0
        %2544 = vmatprep.subr.mxu0 %v2521
        %2545 = vmatpush1.msra.mxu0 %v2520
        %2546 = vmatprep.subr.mxu0 %v2523
        %2547 = vmatpush1.msra.mxu0 %v2522
        %2548 = vmatprep.subr.mxu0 %v2525
        %2549 = vmatpush1.msra.mxu0 %v2524
        %2550 = vmatprep.subr.mxu0 %v2527
        %2551 = vmatpush1.msra.mxu0 %v2526
        %2552 = vmatprep.subr.mxu0 0.0
        %2553 = vmatpush1.msra.mxu0 0.0
        %2554 = vmatprep.subr.mxu0 0.0
        %2555 = vmatpush1.msra.mxu0 0.0
        %2556 = vmatprep.subr.mxu0 0.0
        %2557 = vmatpush1.msra.mxu0 0.0
        %2558 = vmatprep.subr.mxu0 0.0
        %2559 = vmatpush1.msra.mxu0 0.0
        %2560 = vmatprep.subr.mxu0 0.0
        %2561 = vmatpush1.msra.mxu0 0.0
        %2562 = vmatprep.subr.mxu0 0.0
        %2563 = vmatpush1.msra.mxu0 0.0
        %2564 = vmatprep.subr.mxu0 0.0
        %2565 = vmatpush1.msra.mxu0 0.0
        %2566 = vmatprep.subr.mxu0 0.0
        %2567 = vmatpush1.msra.mxu0 0.0
        %2568 = vmatprep.subr.mxu0 0.0
        %2569 = vmatpush1.msra.mxu0 0.0
        %2570 = vmatprep.subr.mxu0 0.0
        %2571 = vmatpush1.msra.mxu0 0.0
        %2572 = vmatprep.subr.mxu0 0.0
        %2573 = vmatpush1.msra.mxu0 0.0
        %2574 = vmatprep.subr.mxu0 0.0
        %2575 = vmatpush1.msra.mxu0 0.0
        %2576 = vmatprep.subr.mxu0 0.0
        %2577 = vmatpush1.msra.mxu0 0.0
        %2578 = vmatprep.subr.mxu0 0.0
        %2579 = vmatpush1.msra.mxu0 0.0
        %2580 = vmatprep.subr.mxu0 0.0
        %2581 = vmatpush1.msra.mxu0 0.0
        %2582 = vmatprep.subr.mxu0 0.0
        %2583 = vmatpush1.msra.mxu0 0.0
        %2584 = vmatprep.subr.mxu0 0.0
        %2585 = vmatpush1.msra.mxu0 0.0
        %2586 = vmatprep.subr.mxu0 0.0
        %2587 = vmatpush1.msra.mxu0 0.0
        %2588 = vmatprep.subr.mxu0 0.0
        %2589 = vmatpush1.msra.mxu0 0.0
        %2590 = vmatprep.subr.mxu0 0.0
        %2591 = vmatpush1.msra.mxu0 0.0
        %2592 = vmatprep.subr.mxu0 0.0
        %2593 = vmatpush1.msra.mxu0 0.0
        %2594 = vmatprep.subr.mxu0 0.0
        %2595 = vmatpush1.msra.mxu0 0.0
        %2596 = vmatprep.subr.mxu0 0.0
        %2597 = vmatpush1.msra.mxu0 0.0
        %2598 = vmatprep.subr.mxu0 0.0
        %2599 = vmatpush1.msra.mxu0 0.0
        %2600 = vmatprep.subr.mxu0 0.0
        %2601 = vmatpush1.msra.mxu0 0.0
        %2602 = vmatprep.subr.mxu0 0.0
        %2603 = vmatpush1.msra.mxu0 0.0
        %2604 = vmatprep.subr.mxu0 0.0
        %2605 = vmatpush1.msra.mxu0 0.0
        %2606 = vmatprep.subr.mxu0 0.0
        %2607 = vmatpush1.msra.mxu0 0.0
        %2608 = vmatprep.mubr.f32.mxu0 0.0
        %2609 = vmatmul.mubr.f32.gmra.mrb[0].mxu0 %v2542
        %v2610 = vpop.f32.mrb[0].mxu0
        %v2611 = vadd.f32 %v2539, %v2610
        %v2612 = vpop.f32.mrb[0].mxu0
        %v2613 = vadd.f32 %v2539, %v2612
        %2614 = vdwg.mxu0
        %v2617 = vcombine.low %v2611, %v2613
        %2619 = vst [vmem:[%s300] sm:$0xff] %v2617
        %s2620 = sand.u32 %s161, 1
        %s2621 = scalar_lea.sflag [#allocation4], %s2620
        %s2622 = sand.u32 %s161, 1
        %s2623 = smul.addr %s2622, 64
        %s2624 = scalar_lea.vmem [#allocation5], %s2623
        %s2625 = sand.u32 %s189, 1
        %s2626 = scalar_lea.sflag [#allocation7], %s2625
        %s2627 = sand.u32 %s189, 1
        %s2628 = smul.addr %s2627, 8
        %s2629 = scalar_lea.vmem [#allocation6], %s2628
        // Predicated region
        $region45: #{tpu_custom_call.1} parent=39 // pred_check
          %p2630 = pneg %p171
        $region46: #{tpu_custom_call.1} parent=39 // pred_check_branch
          %2632 = sbr.rel (%p2630) target = $region48
        $region47: #{tpu_custom_call.1} parent=39 // pred_region
          %s2633 = smul.u32 2, %s32
          %s2635 = ssub.s32 1024, 1024
          %2636 = vsyncadd %s2621, %s2635
          %s2637 = smul.addr %s31, 8
          %s2638 = sadd.s32 %s2633, %s2637
          %s2639 = smul.addr %s2638, 128
          %s2640 = scalar_lea.hbm %s5, %s2639
          %s2641 = sshll.u32 %s2624, 4
          %s2642 = int_to_ptr.vmem [resolvable:$true] %s2641
          %2647 = dma.vmem_to_hbm [thread:$0]  %s2642, 1024, %s2640, %s2621, 256, 256, 16
        $region48: #{tpu_custom_call.1} parent=39 // pred_fallthru
          _
        // Predicated region
        $region49: #{tpu_custom_call.1} parent=39 // pred_check
          %p2648 = pneg %p199
        $region50: #{tpu_custom_call.1} parent=39 // pred_check_branch
          %2650 = sbr.rel (%p2648) target = $region52
        $region51: #{tpu_custom_call.1} parent=39 // pred_region
          %s2651 = smul.u32 2, %s32
          %s2653 = ssub.s32 128, 128
          %2654 = vsyncadd %s2626, %s2653
          %s2655 = smul.addr %s31, 2
          %s2656 = sadd.s32 %s2651, %s2655
          %s2657 = smul.addr %s2656, 64
          %s2658 = scalar_lea.hbm %s6, %s2657
          %s2660 = sshll.u32 %s2629, 4
          %s2661 = int_to_ptr.vmem [resolvable:$true] %s2660
          %2663 = dma.vmem_to_hbm [thread:$0]  %s2661, 128, %s2658, %s2626
        $region52: #{tpu_custom_call.1} parent=39 // pred_fallthru
          _
      $region40: #{tpu_custom_call.1} parent=5 // pred_fallthru
        _
      %p2664 = scmp.le.s32.totalorder 2, %s22
      // Predicated region
      $region53: #{tpu_custom_call.1} parent=5 // pred_check
        %p2665 = pneg %p2664
      $region54: #{tpu_custom_call.1} parent=5 // pred_check_branch
        %2667 = sbr.rel (%p2665) target = $region56
      $region55: #{tpu_custom_call.1} parent=5 // pred_region
        %s2668 = ssub.s32 %s22, 2
        // Predicated region
        $region57: #{tpu_custom_call.1} parent=55 // pred_check
          %p2669 = pneg %p177
        $region58: #{tpu_custom_call.1} parent=55 // pred_check_branch
          %2671 = sbr.rel (%p2669) target = $region60
        $region59: #{tpu_custom_call.1} parent=55 // pred_region
          %s2672 = sand.u32 %s162, 1
          %s2673 = scalar_lea.sflag [#allocation4], %s2672
          %s2674 = sand.u32 %s162, 1
          %s2675 = smul.addr %s2674, 64
          %s2676 = scalar_lea.vmem [#allocation5], %s2675
          %2677 = dma.done %s2673, 1024
        $region60: #{tpu_custom_call.1} parent=55 // pred_fallthru
          _
        // Predicated region
        $region61: #{tpu_custom_call.1} parent=55 // pred_check
          %p2678 = pneg %p205
        $region62: #{tpu_custom_call.1} parent=55 // pred_check_branch
          %2680 = sbr.rel (%p2678) target = $region64
        $region63: #{tpu_custom_call.1} parent=55 // pred_region
          %s2681 = sand.u32 %s190, 1
          %s2682 = scalar_lea.sflag [#allocation7], %s2681
          %s2683 = sand.u32 %s190, 1
          %s2684 = smul.addr %s2683, 8
          %s2685 = scalar_lea.vmem [#allocation6], %s2684
          %2686 = dma.done %s2682, 128
        $region64: #{tpu_custom_call.1} parent=55 // pred_fallthru
          _
      $region56: #{tpu_custom_call.1} parent=5 // pred_fallthru
        _
    $region6: #{tpu_custom_call.1} parent=1 // loop_footer
      %s26 = sadd.s32 1, %s22
    $region7: #{tpu_custom_call.1} parent=1 // loop_footer_branch
      %21 = sbr.rel target = $region3
    $region8: #{tpu_custom_call.1} parent=1 // loop_exit
      _
    %2687 = vsyncpa [#allocation3], 1
    %s2688 = scalar_lea.sflag [#allocation3], 1
    %2689 = vsyncpa %s2688, 1
    %2690 = vsyncpa [#allocation4], 1
    %s2691 = scalar_lea.sflag [#allocation4], 1
    %2692 = vsyncpa %s2691, 1
    %2693 = vsyncpa [#allocation7], 1
    %s2694 = scalar_lea.sflag [#allocation7], 1
    %2695 = vsyncpa %s2694, 1

// kernel: tpu_custom_call.1
$region0: #{tpu_custom_call.1}
  #allocation0 [shape = 'u32[]', space=smem, size = 0x4, offset = 0x4, fixed_abs, tag = 'smem constant byte address 0x4 - core index']
  #allocation1 [shape = 'u32[144,128]{1,0:T(1,128)}', space=vmem, size = 0x12000, scoped, tag = 'internal scratch']
  %s0 = inlined_call_operand.hbm [shape: f32[2,5,32,256], index: 0, kind: input, shape index: {}]
  %s1 = inlined_call_operand.vmem [shape: f32[96,32], index: 1, kind: input, shape index: {}]
  %s2 = inlined_call_operand.vmem [shape: f32[96,32], index: 2, kind: input, shape index: {}]
  %s3 = inlined_call_operand.vmem [shape: f32[4,32], index: 3, kind: input, shape index: {}]
  %s4 = inlined_call_operand.vmem [shape: f32[196,1], index: 4, kind: input, shape index: {}]
  %s5 = inlined_call_operand.hbm [shape: f32[2,32,256], index: 5, kind: output, shape index: {0}]
  %s6 = inlined_call_operand.hbm [shape: f32[2,4,256], index: 6, kind: output, shape index: {1}]
  %7 = xla_tuple %s5, %s6
  %s8 = sld [smem:[#allocation0]]
  $region65: #{tpu_custom_call.1} parent=0
    _
  %s10 = ssub.s32 1, %s8
  %s11 = scalar_select 0, %s10, %s8
  $region1: #{tpu_custom_call.1} parent=0
    #allocation2 [shape = 'u8[327680]{0}', space=vmem, size = 0x50000, scoped, tag = 'input window, operand 0']
    #allocation3 [shape = 's32[2]{0}', space=sflag, size = 0x8, scoped, tag = 'scoped memory for tpu_custom_call.1']
    #allocation4 [shape = 's32[2]{0}', space=sflag, size = 0x8, scoped, tag = 'scoped memory for tpu_custom_call.1']
    #allocation5 [shape = 'u8[65536]{0}', space=vmem, size = 0x10000, scoped, tag = 'output window, operand 0']
    #allocation6 [shape = 'u8[8192]{0}', space=vmem, size = 0x2000, scoped, tag = 'output window, operand 1']
    #allocation7 [shape = 's32[2]{0}', space=sflag, size = 0x8, scoped, tag = 'scoped memory for tpu_custom_call.1']
    %12 = vsyncpa [#allocation3], 0
    %s13 = scalar_lea.sflag [#allocation3], 1
    %14 = vsyncpa %s13, 0
    %15 = vsyncpa [#allocation4], 0
    %s16 = scalar_lea.sflag [#allocation4], 1
    %17 = vsyncpa %s16, 0
    %18 = vsyncpa [#allocation7], 0
    %s19 = scalar_lea.sflag [#allocation7], 1
    %20 = vsyncpa %s19, 0
    loop: start=0, step=1, limit=4
    $region2: #{tpu_custom_call.1} parent=1 // loop_pre_header
      _
    $region3: #{tpu_custom_call.1} parent=1 // loop_header
      %s22 = sphi 0, %s26
      %p23 = scmp.ge.s32.totalorder %s22, 4
      %s29 = sphi 0, %s41
      %s30 = sphi 0, %s37
      %s31 = sphi 0, %s29
      %s32 = sphi 0, %s30
      %s33 = sphi 0, %s31
      %s34 = sphi 0, %s32
      %s46 = sphi 0, %s48
      %s49 = sphi 0, %s46
      %s50 = sphi 0, %s49
      %s66 = sphi 0, %s50
      %s70 = sphi 0, %s70
      %s72 = sphi 0, %s70
      %s73 = sphi 0, %s72
      %s87 = sphi 0, %s73
      %s91 = sphi 0, %s91
      %s93 = sphi 0, %s91
      %s94 = sphi 0, %s93
      %s108 = sphi 0, %s94
      %s112 = sphi 0, %s112
      %s114 = sphi 0, %s112
      %s115 = sphi 0, %s114
      %s129 = sphi 0, %s115
      %s133 = sphi 0, %s133
      %s135 = sphi 0, %s133
      %s136 = sphi 0, %s135
      %s150 = sphi 0, %s136
      %s158 = sphi 0, %s160
      %s161 = sphi 0, %s158
      %s162 = sphi 0, %s161
      %s178 = sphi 0, %s162
      %s186 = sphi 0, %s188
      %s189 = sphi 0, %s186
      %s190 = sphi 0, %s189
      %s206 = sphi 0, %s190
    $region4: #{tpu_custom_call.1} parent=1 // loop_header_branch
      %25 = sbr.rel (%p23) target = $region8
    $region5: #{tpu_custom_call.1} parent=1 // loop_body
      %s27 = ssub.s32 %s22, 1
      %s28 = ssub.s32 %s22, 2
      %s35 = sadd.s32 1, %s30
      %p36 = scmp.ge.s32.totalorder %s35, 1
      %s37 = scalar_select %p36, 0, %s35
      %s38 = sadd.s32 1, %s29
      %s39 = scalar_select %p36, %s38, %s29
      %p40 = scmp.ge.s32.totalorder %s39, 2
      %s41 = scalar_select %p40, 0, %s39
      %s42 = ssub.s32 %s29, %s41
      %s43 = ssub.s32 %s30, %s37
      %s44 = sor.u32 %s42, %s43
      %p45 = scmp.eq.s32.totalorder %s44, 0
      %s47 = sadd.s32 %s46, 1
      %s48 = scalar_select %p45, %s46, %s47
      %p51 = pneg %p45
      %p52 = scmp.eq.s32.totalorder %s22, 1
      %p53 = por %p51, %p52
      %p54 = scmp.ne.s32.totalorder %s46, %s49
      %p55 = scmp.eq.s32.totalorder %s22, 0
      %p56 = por %p54, %p55
      %p57 = scmp.ne.s32.totalorder %s46, %s49
      %p58 = scmp.eq.s32.totalorder %s27, 1
      %p59 = por %p57, %p58
      %p60 = scmp.ne.s32.totalorder %s49, %s50
      %p61 = scmp.eq.s32.totalorder %s27, 0
      %p62 = por %p60, %p61
      %p63 = scmp.ne.s32.totalorder %s49, %s50
      %p64 = scmp.eq.s32.totalorder %s28, 1
      %p65 = por %p63, %p64
      %p67 = scmp.ne.s32.totalorder %s50, %s66
      %p68 = scmp.eq.s32.totalorder %s28, 0
      %p69 = por %p67, %p68
      %s71 = sadd.s32 %s70, 1
      %p74 = scmp.eq.s32.totalorder %s22, 1
      %p75 = scmp.ne.s32.totalorder %s70, %s72
      %p76 = scmp.eq.s32.totalorder %s22, 0
      %p77 = por %p75, %p76
      %p78 = scmp.ne.s32.totalorder %s70, %s72
      %p79 = scmp.eq.s32.totalorder %s27, 1
      %p80 = por %p78, %p79
      %p81 = scmp.ne.s32.totalorder %s72, %s73
      %p82 = scmp.eq.s32.totalorder %s27, 0
      %p83 = por %p81, %p82
      %p84 = scmp.ne.s32.totalorder %s72, %s73
      %p85 = scmp.eq.s32.totalorder %s28, 1
      %p86 = por %p84, %p85
      %p88 = scmp.ne.s32.totalorder %s73, %s87
      %p89 = scmp.eq.s32.totalorder %s28, 0
      %p90 = por %p88, %p89
      %s92 = sadd.s32 %s91, 1
      %p95 = scmp.eq.s32.totalorder %s22, 1
      %p96 = scmp.ne.s32.totalorder %s91, %s93
      %p97 = scmp.eq.s32.totalorder %s22, 0
      %p98 = por %p96, %p97
      %p99 = scmp.ne.s32.totalorder %s91, %s93
      %p100 = scmp.eq.s32.totalorder %s27, 1
      %p101 = por %p99, %p100
      %p102 = scmp.ne.s32.totalorder %s93, %s94
      %p103 = scmp.eq.s32.totalorder %s27, 0
      %p104 = por %p102, %p103
      %p105 = scmp.ne.s32.totalorder %s93, %s94
      %p106 = scmp.eq.s32.totalorder %s28, 1
      %p107 = por %p105, %p106
      %p109 = scmp.ne.s32.totalorder %s94, %s108
      %p110 = scmp.eq.s32.totalorder %s28, 0
      %p111 = por %p109, %p110
      %s113 = sadd.s32 %s112, 1
      %p116 = scmp.eq.s32.totalorder %s22, 1
      %p117 = scmp.ne.s32.totalorder %s112, %s114
      %p118 = scmp.eq.s32.totalorder %s22, 0
      %p119 = por %p117, %p118
      %p120 = scmp.ne.s32.totalorder %s112, %s114
      %p121 = scmp.eq.s32.totalorder %s27, 1
      %p122 = por %p120, %p121
      %p123 = scmp.ne.s32.totalorder %s114, %s115
      %p124 = scmp.eq.s32.totalorder %s27, 0
      %p125 = por %p123, %p124
      %p126 = scmp.ne.s32.totalorder %s114, %s115
      %p127 = scmp.eq.s32.totalorder %s28, 1
      %p128 = por %p126, %p127
      %p130 = scmp.ne.s32.totalorder %s115, %s129
      %p131 = scmp.eq.s32.totalorder %s28, 0
      %p132 = por %p130, %p131
      %s134 = sadd.s32 %s133, 1
      %p137 = scmp.eq.s32.totalorder %s22, 1
      %p138 = scmp.ne.s32.totalorder %s133, %s135
      %p139 = scmp.eq.s32.totalorder %s22, 0
      %p140 = por %p138, %p139
      %p141 = scmp.ne.s32.totalorder %s133, %s135
      %p142 = scmp.eq.s32.totalorder %s27, 1
      %p143 = por %p141, %p142
      %p144 = scmp.ne.s32.totalorder %s135, %s136
      %p145 = scmp.eq.s32.totalorder %s27, 0
      %p146 = por %p144, %p145
      %p147 = scmp.ne.s32.totalorder %s135, %s136
      %p148 = scmp.eq.s32.totalorder %s28, 1
      %p149 = por %p147, %p148
      %p151 = scmp.ne.s32.totalorder %s136, %s150
      %p152 = scmp.eq.s32.totalorder %s28, 0
      %p153 = por %p151, %p152
      %s154 = ssub.s32 %s29, %s41
      %s155 = ssub.s32 %s30, %s37
      %s156 = sor.u32 %s154, %s155
      %p157 = scmp.eq.s32.totalorder %s156, 0
      %s159 = sadd.s32 %s158, 1
      %s160 = scalar_select %p157, %s158, %s159
      %p163 = pneg %p157
      %p164 = scmp.eq.s32.totalorder %s22, 1
      %p165 = por %p163, %p164
      %p166 = scmp.ne.s32.totalorder %s158, %s161
      %p167 = scmp.eq.s32.totalorder %s22, 0
      %p168 = por %p166, %p167
      %p169 = scmp.ne.s32.totalorder %s158, %s161
      %p170 = scmp.eq.s32.totalorder %s27, 1
      %p171 = por %p169, %p170
      %p172 = scmp.ne.s32.totalorder %s161, %s162
      %p173 = scmp.eq.s32.totalorder %s27, 0
      %p174 = por %p172, %p173
      %p175 = scmp.ne.s32.totalorder %s161, %s162
      %p176 = scmp.eq.s32.totalorder %s28, 1
      %p177 = por %p175, %p176
      %p179 = scmp.ne.s32.totalorder %s162, %s178
      %p180 = scmp.eq.s32.totalorder %s28, 0
      %p181 = por %p179, %p180
      %s182 = ssub.s32 %s29, %s41
      %s183 = ssub.s32 %s30, %s37
      %s184 = sor.u32 %s182, %s183
      %p185 = scmp.eq.s32.totalorder %s184, 0
      %s187 = sadd.s32 %s186, 1
      %s188 = scalar_select %p185, %s186, %s187
      %p191 = pneg %p185
      %p192 = scmp.eq.s32.totalorder %s22, 1
      %p193 = por %p191, %p192
      %p194 = scmp.ne.s32.totalorder %s186, %s189
      %p195 = scmp.eq.s32.totalorder %s22, 0
      %p196 = por %p194, %p195
      %p197 = scmp.ne.s32.totalorder %s186, %s189
      %p198 = scmp.eq.s32.totalorder %s27, 1
      %p199 = por %p197, %p198
      %p200 = scmp.ne.s32.totalorder %s189, %s190
      %p201 = scmp.eq.s32.totalorder %s27, 0
      %p202 = por %p200, %p201
      %p203 = scmp.ne.s32.totalorder %s189, %s190
      %p204 = scmp.eq.s32.totalorder %s28, 1
      %p205 = por %p203, %p204
      %p207 = scmp.ne.s32.totalorder %s190, %s206
      %p208 = scmp.eq.s32.totalorder %s28, 0
      %p209 = por %p207, %p208
      %p210 = scmp.le.s32.totalorder 1, %s22
      %p211 = scmp.lt.s32.totalorder %s22, 3
      %p212 = pnand %p210, %p211
      %p213 = pneg %p212
      // Predicated region
      $region9: #{tpu_custom_call.1} parent=5 // pred_check
        _
      $region10: #{tpu_custom_call.1} parent=5 // pred_check_branch
        %215 = sbr.rel (%p212) target = $region12
      $region11: #{tpu_custom_call.1} parent=5 // pred_region
        %s216 = ssub.s32 %s22, 1
        // Predicated region
        $region13: #{tpu_custom_call.1} parent=11 // pred_check
          %p217 = pneg %p83
        $region14: #{tpu_custom_call.1} parent=11 // pred_check_branch
          %219 = sbr.rel (%p217) target = $region16
        $region15: #{tpu_custom_call.1} parent=11 // pred_region
          _
        $region16: #{tpu_custom_call.1} parent=11 // pred_fallthru
          _
        // Predicated region
        $region17: #{tpu_custom_call.1} parent=11 // pred_check
          %p220 = pneg %p104
        $region18: #{tpu_custom_call.1} parent=11 // pred_check_branch
          %222 = sbr.rel (%p220) target = $region20
        $region19: #{tpu_custom_call.1} parent=11 // pred_region
          _
        $region20: #{tpu_custom_call.1} parent=11 // pred_fallthru
          _
        // Predicated region
        $region21: #{tpu_custom_call.1} parent=11 // pred_check
          %p223 = pneg %p125
        $region22: #{tpu_custom_call.1} parent=11 // pred_check_branch
          %225 = sbr.rel (%p223) target = $region24
        $region23: #{tpu_custom_call.1} parent=11 // pred_region
          _
        $region24: #{tpu_custom_call.1} parent=11 // pred_fallthru
          _
        // Predicated region
        $region25: #{tpu_custom_call.1} parent=11 // pred_check
          %p226 = pneg %p146
        $region26: #{tpu_custom_call.1} parent=11 // pred_check_branch
          %228 = sbr.rel (%p226) target = $region28
        $region27: #{tpu_custom_call.1} parent=11 // pred_region
          _
        $region28: #{tpu_custom_call.1} parent=11 // pred_fallthru
          _
      $region12: #{tpu_custom_call.1} parent=5 // pred_fallthru
        _
      %p229 = scmp.lt.s32.totalorder %s22, 2
      // Predicated region
      $region29: #{tpu_custom_call.1} parent=5 // pred_check
        %p230 = pneg %p229
      $region30: #{tpu_custom_call.1} parent=5 // pred_check_branch
        %232 = sbr.rel (%p230) target = $region32
      $region31: #{tpu_custom_call.1} parent=5 // pred_region
        // Predicated region
        $region33: #{tpu_custom_call.1} parent=31 // pred_check
          %p233 = pneg %p56
        $region34: #{tpu_custom_call.1} parent=31 // pred_check_branch
          %235 = sbr.rel (%p233) target = $region36
        $region35: #{tpu_custom_call.1} parent=31 // pred_region
          %s236 = sand.u32 %s46, 1
          %s237 = scalar_lea.sflag [#allocation3], %s236
          %s238 = sand.u32 %s46, 1
          %s239 = smul.addr %s238, 320
          %s240 = scalar_lea.vmem [#allocation2], %s239
          %s241 = smul.u32 2, %s30
          %s243 = ssub.s32 5120, 5120
          %244 = vsyncadd %s237, %s243
          %s245 = smul.addr %s29, 40
          %s246 = sadd.s32 %s241, %s245
          %s247 = smul.addr %s246, 128
          %s248 = scalar_lea.hbm %s0, %s247
          %s249 = sshll.u32 %s240, 4
          %s250 = int_to_ptr.vmem [resolvable:$true] %s249
          %255 = dma.hbm_to_vmem [thread:$0]  %s248, 5120, %s250, %s237, 256, 256, 16
        $region36: #{tpu_custom_call.1} parent=31 // pred_fallthru
          _
      $region32: #{tpu_custom_call.1} parent=5 // pred_fallthru
        _
      %p256 = scmp.le.s32.totalorder 1, %s22
      %p257 = scmp.lt.s32.totalorder %s22, 3
      %p258 = pnand %p256, %p257
      %p259 = pneg %p258
      // Predicated region
      $region37: #{tpu_custom_call.1} parent=5 // pred_check
        _
      $region38: #{tpu_custom_call.1} parent=5 // pred_check_branch
        %261 = sbr.rel (%p258) target = $region40
      $region39: #{tpu_custom_call.1} parent=5 // pred_region
        %s262 = ssub.s32 %s22, 1
        %s263 = sand.u32 %s49, 1
        %s264 = scalar_lea.sflag [#allocation3], %s263
        %s265 = sand.u32 %s49, 1
        %s266 = smul.addr %s265, 320
        %s267 = scalar_lea.vmem [#allocation2], %s266
        // Predicated region
        $region41: #{tpu_custom_call.1} parent=39 // pred_check
          %p268 = pneg %p62
        $region42: #{tpu_custom_call.1} parent=39 // pred_check_branch
          %270 = sbr.rel (%p268) target = $region44
        $region43: #{tpu_custom_call.1} parent=39 // pred_region
          %271 = dma.done %s264, 5120
        $region44: #{tpu_custom_call.1} parent=39 // pred_fallthru
          _
        %s272 = sand.u32 %s49, 1
        %s273 = scalar_lea.sflag [#allocation3], %s272
        %s274 = sand.u32 %s49, 1
        %s275 = smul.addr %s274, 320
        %s276 = scalar_lea.vmem [#allocation2], %s275
        %p277 = pneg %p62
        %p278 = pneg %p59
        %p279 = pneg %p83
        %p280 = pneg %p80
        %p281 = pneg %p104
        %p282 = pneg %p101
        %p283 = pneg %p125
        %p284 = pneg %p122
        %p285 = pneg %p146
        %p286 = pneg %p143
        %p287 = pneg %p174
        %p288 = pneg %p171
        %s289 = sand.u32 %s161, 1
        %s290 = scalar_lea.sflag [#allocation4], %s289
        %s291 = sand.u32 %s161, 1
        %s292 = smul.addr %s291, 64
        %s293 = scalar_lea.vmem [#allocation5], %s292
        %p294 = pneg %p202
        %p295 = pneg %p199
        %s296 = sand.u32 %s189, 1
        %s297 = scalar_lea.sflag [#allocation7], %s296
        %s298 = sand.u32 %s189, 1
        %s299 = smul.addr %s298, 8
        %s300 = scalar_lea.vmem [#allocation6], %s299
        %s301 = smul.u32 2, %s32
        %s302 = smul.u32 2, %s32
        %s303 = smul.u32 2, %s32
        %v304 = vld [vmem:[%s1] sm:$0xff]
        %v305 = vld [vmem:[%s1 + $0x8] sm:$0xff]
        %v306 = vld [vmem:[%s1 + $0x10] sm:$0xff]
        %v307 = vld [vmem:[%s1 + $0x18] sm:$0xff]
        %v308 = vld [vmem:[%s1 + $0x20] sm:$0xff]
        %v309 = vld [vmem:[%s1 + $0x28] sm:$0xff]
        %v310 = vld [vmem:[%s1 + $0x30] sm:$0xff]
        %v311 = vld [vmem:[%s1 + $0x38] sm:$0xff]
        %v312 = vld [vmem:[%s1 + $0x40] sm:$0xff]
        %v313 = vld [vmem:[%s1 + $0x48] sm:$0xff]
        %v314 = vld [vmem:[%s1 + $0x50] sm:$0xff]
        %v315 = vld [vmem:[%s1 + $0x58] sm:$0xff]
        %v316 = vld [vmem:[%s2] sm:$0xff]
        %v317 = vld [vmem:[%s2 + $0x8] sm:$0xff]
        %v318 = vld [vmem:[%s2 + $0x10] sm:$0xff]
        %v319 = vld [vmem:[%s2 + $0x18] sm:$0xff]
        %v320 = vld [vmem:[%s2 + $0x20] sm:$0xff]
        %v321 = vld [vmem:[%s2 + $0x28] sm:$0xff]
        %v322 = vld [vmem:[%s2 + $0x30] sm:$0xff]
        %v323 = vld [vmem:[%s2 + $0x38] sm:$0xff]
        %v324 = vld [vmem:[%s2 + $0x40] sm:$0xff]
        %v325 = vld [vmem:[%s2 + $0x48] sm:$0xff]
        %v326 = vld [vmem:[%s2 + $0x50] sm:$0xff]
        %v327 = vld [vmem:[%s2 + $0x58] sm:$0xff]
        %v328 = vld [vmem:[%s3] sm:$0xf]
        %v329 = vld [vmem:[%s4] sm:$0xff]
        %v330 = vld [vmem:[%s4 + $0x8] sm:$0xff]
        %v331 = vld [vmem:[%s4 + $0x10] sm:$0xff]
        %v332 = vld [vmem:[%s4 + $0x18] sm:$0xff]
        %v333 = vld [vmem:[%s4 + $0x20] sm:$0xff]
        %v334 = vld [vmem:[%s4 + $0x28] sm:$0xff]
        %v335 = vld [vmem:[%s4 + $0x30] sm:$0xff]
        %v336 = vld [vmem:[%s4 + $0x38] sm:$0xff]
        %v337 = vld [vmem:[%s4 + $0x40] sm:$0xff]
        %v338 = vld [vmem:[%s4 + $0x48] sm:$0xff]
        %v339 = vld [vmem:[%s4 + $0x50] sm:$0xff]
        %v340 = vld [vmem:[%s4 + $0x58] sm:$0xff]
        %342 = vset.pattern.permute.xlu0 0
        %343 = vperm.xlu0 %342, %v329
        %v344 = vpop.permute.xlu0 %343
        %347 = vset.pattern.permute.xlu0 0
        %348 = vperm.xlu0 %347, %v330
        %v349 = vpop.permute.xlu0 %348
        %352 = vset.pattern.permute.xlu0 0
        %353 = vperm.xlu0 %352, %v331
        %v354 = vpop.permute.xlu0 %353
        %357 = vset.pattern.permute.xlu0 0
        %358 = vperm.xlu0 %357, %v332
        %v359 = vpop.permute.xlu0 %358
        %362 = vset.pattern.permute.xlu0 0
        %363 = vperm.xlu0 %362, %v333
        %v364 = vpop.permute.xlu0 %363
        %367 = vset.pattern.permute.xlu0 0
        %368 = vperm.xlu0 %367, %v334
        %v369 = vpop.permute.xlu0 %368
        %372 = vset.pattern.permute.xlu0 0
        %373 = vperm.xlu0 %372, %v335
        %v374 = vpop.permute.xlu0 %373
        %377 = vset.pattern.permute.xlu0 0
        %378 = vperm.xlu0 %377, %v336
        %v379 = vpop.permute.xlu0 %378
        %382 = vset.pattern.permute.xlu0 0
        %383 = vperm.xlu0 %382, %v337
        %v384 = vpop.permute.xlu0 %383
        %387 = vset.pattern.permute.xlu0 0
        %388 = vperm.xlu0 %387, %v338
        %v389 = vpop.permute.xlu0 %388
        %392 = vset.pattern.permute.xlu0 0
        %393 = vperm.xlu0 %392, %v339
        %v394 = vpop.permute.xlu0 %393
        %397 = vset.pattern.permute.xlu0 0
        %398 = vperm.xlu0 %397, %v340
        %v399 = vpop.permute.xlu0 %398
        %v401 = vld [vmem:[%s4 + $0x60] sm:$0xff]
        %v402 = vld [vmem:[%s4 + $0x68] sm:$0xff]
        %v403 = vld [vmem:[%s4 + $0x70] sm:$0xff]
        %v404 = vld [vmem:[%s4 + $0x78] sm:$0xff]
        %406 = vset.pattern.permute.xlu0 0
        %407 = vperm.xlu0 %406, %v401
        %v408 = vpop.permute.xlu0 %407
        %411 = vset.pattern.permute.xlu0 0
        %412 = vperm.xlu0 %411, %v402
        %v413 = vpop.permute.xlu0 %412
        %416 = vset.pattern.permute.xlu0 0
        %417 = vperm.xlu0 %416, %v403
        %v418 = vpop.permute.xlu0 %417
        %421 = vset.pattern.permute.xlu0 0
        %422 = vperm.xlu0 %421, %v404
        %v423 = vpop.permute.xlu0 %422
        %v425 = vld [vmem:[%s4 + $0x80] sm:$0xff]
        %v426 = vld [vmem:[%s4 + $0x88] sm:$0xff]
        %v427 = vld [vmem:[%s4 + $0x90] sm:$0xff]
        %v428 = vld [vmem:[%s4 + $0x98] sm:$0xff]
        %v429 = vld [vmem:[%s4 + $0xa0] sm:$0xff]
        %v430 = vld [vmem:[%s4 + $0xa8] sm:$0xff]
        %v431 = vld [vmem:[%s4 + $0xb0] sm:$0xff]
        %v432 = vld [vmem:[%s4 + $0xb8] sm:$0xff]
        %v433 = vld [vmem:[%s4 + $0xc0] sm:$0xf]
        %v434 = vld [vmem:[%s267] sm:$0xff]
        %v435 = vld [vmem:[%s267 + $0x8] sm:$0xff]
        %v436 = vld [vmem:[%s267 + $0x10] sm:$0xff]
        %v437 = vld [vmem:[%s267 + $0x18] sm:$0xff]
        %v438 = vld [vmem:[%s267 + $0x20] sm:$0xff]
        %v439 = vld [vmem:[%s267 + $0x28] sm:$0xff]
        %v440 = vld [vmem:[%s267 + $0x30] sm:$0xff]
        %v441 = vld [vmem:[%s267 + $0x38] sm:$0xff]
        %vm442 = vcmask 261120
        %v444 = vsel %vm442, %v304, 0
        %v447 = vsel %vm442, %v305, 0
        %v450 = vsel %vm442, %v306, 0
        %v453 = vsel %vm442, %v307, 0
        %v456 = vsel %vm442, %v308, 0
        %v459 = vsel %vm442, %v309, 0
        %v462 = vsel %vm442, %v310, 0
        %v465 = vsel %vm442, %v311, 0
        %v468 = vsel %vm442, %v312, 0
        %v471 = vsel %vm442, %v313, 0
        %v474 = vsel %vm442, %v314, 0
        %v477 = vsel %vm442, %v315, 0
        %479 = vmatprep.subr.mxu0 %v435
        %480 = vmatpush1.msra.mxu0 %v434
        %481 = vmatprep.subr.mxu0 %v437
        %482 = vmatpush1.msra.mxu0 %v436
        %483 = vmatprep.subr.mxu0 %v439
        %484 = vmatpush1.msra.mxu0 %v438
        %485 = vmatprep.subr.mxu0 %v441
        %486 = vmatpush1.msra.mxu0 %v440
        %487 = vmatprep.subr.mxu0 0.0
        %488 = vmatpush1.msra.mxu0 0.0
        %489 = vmatprep.subr.mxu0 0.0
        %490 = vmatpush1.msra.mxu0 0.0
        %491 = vmatprep.subr.mxu0 0.0
        %492 = vmatpush1.msra.mxu0 0.0
        %493 = vmatprep.subr.mxu0 0.0
        %494 = vmatpush1.msra.mxu0 0.0
        %495 = vmatprep.subr.mxu0 0.0
        %496 = vmatpush1.msra.mxu0 0.0
        %497 = vmatprep.subr.mxu0 0.0
        %498 = vmatpush1.msra.mxu0 0.0
        %499 = vmatprep.subr.mxu0 0.0
        %500 = vmatpush1.msra.mxu0 0.0
        %501 = vmatprep.subr.mxu0 0.0
        %502 = vmatpush1.msra.mxu0 0.0
        %503 = vmatprep.subr.mxu0 0.0
        %504 = vmatpush1.msra.mxu0 0.0
        %505 = vmatprep.subr.mxu0 0.0
        %506 = vmatpush1.msra.mxu0 0.0
        %507 = vmatprep.subr.mxu0 0.0
        %508 = vmatpush1.msra.mxu0 0.0
        %509 = vmatprep.subr.mxu0 0.0
        %510 = vmatpush1.msra.mxu0 0.0
        %511 = vmatprep.subr.mxu0 0.0
        %512 = vmatpush1.msra.mxu0 0.0
        %513 = vmatprep.subr.mxu0 0.0
        %514 = vmatpush1.msra.mxu0 0.0
        %515 = vmatprep.subr.mxu0 0.0
        %516 = vmatpush1.msra.mxu0 0.0
        %517 = vmatprep.subr.mxu0 0.0
        %518 = vmatpush1.msra.mxu0 0.0
        %519 = vmatprep.subr.mxu0 0.0
        %520 = vmatpush1.msra.mxu0 0.0
        %521 = vmatprep.subr.mxu0 0.0
        %522 = vmatpush1.msra.mxu0 0.0
        %523 = vmatprep.subr.mxu0 0.0
        %524 = vmatpush1.msra.mxu0 0.0
        %525 = vmatprep.subr.mxu0 0.0
        %526 = vmatpush1.msra.mxu0 0.0
        %527 = vmatprep.subr.mxu0 0.0
        %528 = vmatpush1.msra.mxu0 0.0
        %529 = vmatprep.subr.mxu0 0.0
        %530 = vmatpush1.msra.mxu0 0.0
        %531 = vmatprep.subr.mxu0 0.0
        %532 = vmatpush1.msra.mxu0 0.0
        %533 = vmatprep.subr.mxu0 0.0
        %534 = vmatpush1.msra.mxu0 0.0
        %535 = vmatprep.subr.mxu0 0.0
        %536 = vmatpush1.msra.mxu0 0.0
        %537 = vmatprep.subr.mxu0 0.0
        %538 = vmatpush1.msra.mxu0 0.0
        %539 = vmatprep.subr.mxu0 0.0
        %540 = vmatpush1.msra.mxu0 0.0
        %541 = vmatprep.subr.mxu0 0.0
        %542 = vmatpush1.msra.mxu0 0.0
        %543 = vmatprep.mubr.f32.mxu0 0.0
        %544 = vmatmul.mubr.f32.gmra.mrb[0].mxu0 %v444
        %v545 = vpop.f32.mrb[0].mxu0
        %v546 = vadd.f32 %v344, %v545
        %v547 = vpop.f32.mrb[0].mxu0
        %v548 = vadd.f32 %v344, %v547
        %549 = vmatprep.mubr.f32.mxu0 0.0
        %550 = vmatmul.mubr.f32.gmra.mrb[0].mxu0 %v447
        %v551 = vpop.f32.mrb[0].mxu0
        %v552 = vadd.f32 %v349, %v551
        %v553 = vpop.f32.mrb[0].mxu0
        %v554 = vadd.f32 %v349, %v553
        %555 = vmatprep.mubr.f32.mxu0 0.0
        %556 = vmatmul.mubr.f32.gmra.mrb[0].mxu0 %v450
        %v557 = vpop.f32.mrb[0].mxu0
        %v558 = vadd.f32 %v354, %v557
        %v559 = vpop.f32.mrb[0].mxu0
        %v560 = vadd.f32 %v354, %v559
        %561 = vmatprep.mubr.f32.mxu0 0.0
        %562 = vmatmul.mubr.f32.gmra.mrb[0].mxu0 %v453
        %v563 = vpop.f32.mrb[0].mxu0
        %v564 = vadd.f32 %v359, %v563
        %v565 = vpop.f32.mrb[0].mxu0
        %v566 = vadd.f32 %v359, %v565
        %567 = vmatprep.mubr.f32.mxu0 0.0
        %568 = vmatmul.mubr.f32.gmra.mrb[0].mxu0 %v456
        %v569 = vpop.f32.mrb[0].mxu0
        %v570 = vadd.f32 %v364, %v569
        %v571 = vpop.f32.mrb[0].mxu0
        %v572 = vadd.f32 %v364, %v571
        %573 = vmatprep.mubr.f32.mxu0 0.0
        %574 = vmatmul.mubr.f32.gmra.mrb[0].mxu0 %v459
        %v575 = vpop.f32.mrb[0].mxu0
        %v576 = vadd.f32 %v369, %v575
        %v577 = vpop.f32.mrb[0].mxu0
        %v578 = vadd.f32 %v369, %v577
        %579 = vmatprep.mubr.f32.mxu0 0.0
        %580 = vmatmul.mubr.f32.gmra.mrb[0].mxu0 %v462
        %v581 = vpop.f32.mrb[0].mxu0
        %v582 = vadd.f32 %v374, %v581
        %v583 = vpop.f32.mrb[0].mxu0
        %v584 = vadd.f32 %v374, %v583
        %585 = vmatprep.mubr.f32.mxu0 0.0
        %586 = vmatmul.mubr.f32.gmra.mrb[0].mxu0 %v465
        %v587 = vpop.f32.mrb[0].mxu0
        %v588 = vadd.f32 %v379, %v587
        %v589 = vpop.f32.mrb[0].mxu0
        %v590 = vadd.f32 %v379, %v589
        %591 = vmatprep.mubr.f32.mxu0 0.0
        %592 = vmatmul.mubr.f32.gmra.mrb[0].mxu0 %v468
        %v593 = vpop.f32.mrb[0].mxu0
        %v594 = vadd.f32 %v384, %v593
        %v595 = vpop.f32.mrb[0].mxu0
        %v596 = vadd.f32 %v384, %v595
        %597 = vmatprep.mubr.f32.mxu0 0.0
        %598 = vmatmul.mubr.f32.gmra.mrb[0].mxu0 %v471
        %v599 = vpop.f32.mrb[0].mxu0
        %v600 = vadd.f32 %v389, %v599
        %v601 = vpop.f32.mrb[0].mxu0
        %v602 = vadd.f32 %v389, %v601
        %603 = vmatprep.mubr.f32.mxu0 0.0
        %604 = vmatmul.mubr.f32.gmra.mrb[0].mxu0 %v474
        %v605 = vpop.f32.mrb[0].mxu0
        %v606 = vadd.f32 %v394, %v605
        %v607 = vpop.f32.mrb[0].mxu0
        %v608 = vadd.f32 %v394, %v607
        %609 = vmatprep.mubr.f32.mxu0 0.0
        %610 = vmatmul.mubr.f32.gmra.mrb[0].mxu0 %v477
        %v611 = vpop.f32.mrb[0].mxu0
        %v612 = vadd.f32 %v399, %v611
        %v613 = vpop.f32.mrb[0].mxu0
        %v614 = vadd.f32 %v399, %v613
        %615 = vdwg.mxu0
        %v616 = vmul.f32 %v546, 0.5
        %v617 = vmul.f32 %v548, 0.5
        %v618 = vmul.f32 %v552, 0.5
        %v619 = vmul.f32 %v554, 0.5
        %v620 = vmul.f32 %v558, 0.5
        %v621 = vmul.f32 %v560, 0.5
        %v622 = vmul.f32 %v564, 0.5
        %v623 = vmul.f32 %v566, 0.5
        %v624 = vtanh.pop %v616
        %v625 = vtanh.pop %v617
        %v626 = vtanh.pop %v618
        %v627 = vtanh.pop %v619
        %v628 = vtanh.pop %v620
        %v629 = vtanh.pop %v621
        %v630 = vtanh.pop %v622
        %v631 = vtanh.pop %v623
        %v632 = vmul.f32 %v624, 0.5
        %v633 = vmul.f32 %v625, 0.5
        %v634 = vmul.f32 %v626, 0.5
        %v635 = vmul.f32 %v627, 0.5
        %v636 = vmul.f32 %v628, 0.5
        %v637 = vmul.f32 %v629, 0.5
        %v638 = vmul.f32 %v630, 0.5
        %v639 = vmul.f32 %v631, 0.5
        %v640 = vadd.f32 %v632, 0.5
        %v641 = vadd.f32 %v633, 0.5
        %v642 = vadd.f32 %v634, 0.5
        %v643 = vadd.f32 %v635, 0.5
        %v644 = vadd.f32 %v636, 0.5
        %v645 = vadd.f32 %v637, 0.5
        %v646 = vadd.f32 %v638, 0.5
        %v647 = vadd.f32 %v639, 0.5
        %v648 = vmul.f32 %v570, 0.5
        %v649 = vmul.f32 %v572, 0.5
        %v650 = vmul.f32 %v576, 0.5
        %v651 = vmul.f32 %v578, 0.5
        %v652 = vmul.f32 %v582, 0.5
        %v653 = vmul.f32 %v584, 0.5
        %v654 = vmul.f32 %v588, 0.5
        %v655 = vmul.f32 %v590, 0.5
        %v656 = vtanh.pop %v648
        %v657 = vtanh.pop %v649
        %v658 = vtanh.pop %v650
        %v659 = vtanh.pop %v651
        %v660 = vtanh.pop %v652
        %v661 = vtanh.pop %v653
        %v662 = vtanh.pop %v654
        %v663 = vtanh.pop %v655
        %v664 = vmul.f32 %v656, 0.5
        %v665 = vmul.f32 %v657, 0.5
        %v666 = vmul.f32 %v658, 0.5
        %v667 = vmul.f32 %v659, 0.5
        %v668 = vmul.f32 %v660, 0.5
        %v669 = vmul.f32 %v661, 0.5
        %v670 = vmul.f32 %v662, 0.5
        %v671 = vmul.f32 %v663, 0.5
        %v672 = vadd.f32 %v664, 0.5
        %v673 = vadd.f32 %v665, 0.5
        %v674 = vadd.f32 %v666, 0.5
        %v675 = vadd.f32 %v667, 0.5
        %v676 = vadd.f32 %v668, 0.5
        %v677 = vadd.f32 %v669, 0.5
        %v678 = vadd.f32 %v670, 0.5
        %v679 = vadd.f32 %v671, 0.5
        %v680 = vmul.f32 %v640, %v408
        %v681 = vmul.f32 %v641, %v408
        %v682 = vmul.f32 %v642, %v413
        %v683 = vmul.f32 %v643, %v413
        %v684 = vmul.f32 %v644, %v418
        %v685 = vmul.f32 %v645, %v418
        %v686 = vmul.f32 %v646, %v423
        %v687 = vmul.f32 %v647, %v423
        %v688 = vadd.f32 %v594, %v680
        %v689 = vadd.f32 %v596, %v681
        %v690 = vadd.f32 %v600, %v682
        %v691 = vadd.f32 %v602, %v683
        %v692 = vadd.f32 %v606, %v684
        %v693 = vadd.f32 %v608, %v685
        %v694 = vadd.f32 %v612, %v686
        %v695 = vadd.f32 %v614, %v687
        %v696 = vtanh.pop %v688
        %v697 = vtanh.pop %v689
        %v698 = vtanh.pop %v690
        %v699 = vtanh.pop %v691
        %v700 = vtanh.pop %v692
        %v701 = vtanh.pop %v693
        %v702 = vtanh.pop %v694
        %v703 = vtanh.pop %v695
        %v704 = vsub.f32 1.0, %v672
        %v705 = vsub.f32 1.0, %v673
        %v706 = vsub.f32 1.0, %v674
        %v707 = vsub.f32 1.0, %v675
        %v708 = vsub.f32 1.0, %v676
        %v709 = vsub.f32 1.0, %v677
        %v710 = vsub.f32 1.0, %v678
        %v711 = vsub.f32 1.0, %v679
        %v712 = vmul.f32 %v704, %v696
        %v713 = vmul.f32 %v705, %v697
        %v714 = vmul.f32 %v706, %v698
        %v715 = vmul.f32 %v707, %v699
        %v716 = vmul.f32 %v708, %v700
        %v717 = vmul.f32 %v709, %v701
        %v718 = vmul.f32 %v710, %v702
        %v719 = vmul.f32 %v711, %v703
        %s720 = scalar_lea.vmem %s267, 64 [#allocation2]
        %v721 = vld [vmem:[%s720] sm:$0xff]
        %v722 = vld [vmem:[%s720 + $0x8] sm:$0xff]
        %v723 = vld [vmem:[%s720 + $0x10] sm:$0xff]
        %v724 = vld [vmem:[%s720 + $0x18] sm:$0xff]
        %v725 = vld [vmem:[%s720 + $0x20] sm:$0xff]
        %v726 = vld [vmem:[%s720 + $0x28] sm:$0xff]
        %v727 = vld [vmem:[%s720 + $0x30] sm:$0xff]
        %v728 = vld [vmem:[%s720 + $0x38] sm:$0xff]
        %729 = vmatprep.subr.mxu0 %v722
        %730 = vmatpush1.msra.mxu0 %v721
        %731 = vmatprep.subr.mxu0 %v724
        %732 = vmatpush1.msra.mxu0 %v723
        %733 = vmatprep.subr.mxu0 %v726
        %734 = vmatpush1.msra.mxu0 %v725
        %735 = vmatprep.subr.mxu0 %v728
        %736 = vmatpush1.msra.mxu0 %v727
        %737 = vmatprep.subr.mxu0 0.0
        %738 = vmatpush1.msra.mxu0 0.0
        %739 = vmatprep.subr.mxu0 0.0
        %740 = vmatpush1.msra.mxu0 0.0
        %741 = vmatprep.subr.mxu0 0.0
        %742 = vmatpush1.msra.mxu0 0.0
        %743 = vmatprep.subr.mxu0 0.0
        %744 = vmatpush1.msra.mxu0 0.0
        %745 = vmatprep.subr.mxu0 0.0
        %746 = vmatpush1.msra.mxu0 0.0
        %747 = vmatprep.subr.mxu0 0.0
        %748 = vmatpush1.msra.mxu0 0.0
        %749 = vmatprep.subr.mxu0 0.0
        %750 = vmatpush1.msra.mxu0 0.0
        %751 = vmatprep.subr.mxu0 0.0
        %752 = vmatpush1.msra.mxu0 0.0
        %753 = vmatprep.subr.mxu0 0.0
        %754 = vmatpush1.msra.mxu0 0.0
        %755 = vmatprep.subr.mxu0 0.0
        %756 = vmatpush1.msra.mxu0 0.0
        %757 = vmatprep.subr.mxu0 0.0
        %758 = vmatpush1.msra.mxu0 0.0
        %759 = vmatprep.subr.mxu0 0.0
        %760 = vmatpush1.msra.mxu0 0.0
        %761 = vmatprep.subr.mxu0 0.0
        %762 = vmatpush1.msra.mxu0 0.0
        %763 = vmatprep.subr.mxu0 0.0
        %764 = vmatpush1.msra.mxu0 0.0
        %765 = vmatprep.subr.mxu0 0.0
        %766 = vmatpush1.msra.mxu0 0.0
        %767 = vmatprep.subr.mxu0 0.0
        %768 = vmatpush1.msra.mxu0 0.0
        %769 = vmatprep.subr.mxu0 0.0
        %770 = vmatpush1.msra.mxu0 0.0
        %771 = vmatprep.subr.mxu0 0.0
        %772 = vmatpush1.msra.mxu0 0.0
        %773 = vmatprep.subr.mxu0 0.0
        %774 = vmatpush1.msra.mxu0 0.0
        %775 = vmatprep.subr.mxu0 0.0
        %776 = vmatpush1.msra.mxu0 0.0
        %777 = vmatprep.subr.mxu0 0.0
        %778 = vmatpush1.msra.mxu0 0.0
        %779 = vmatprep.subr.mxu0 0.0
        %780 = vmatpush1.msra.mxu0 0.0
        %781 = vmatprep.subr.mxu0 0.0
        %782 = vmatpush1.msra.mxu0 0.0
        %783 = vmatprep.subr.mxu0 0.0
        %784 = vmatpush1.msra.mxu0 0.0
        %785 = vmatprep.subr.mxu0 0.0
        %786 = vmatpush1.msra.mxu0 0.0
        %787 = vmatprep.subr.mxu0 0.0
        %788 = vmatpush1.msra.mxu0 0.0
        %789 = vmatprep.subr.mxu0 0.0
        %790 = vmatpush1.msra.mxu0 0.0
        %791 = vmatprep.subr.mxu0 0.0
        %792 = vmatpush1.msra.mxu0 0.0
        %793 = vmatprep.mubr.f32.mxu0 0.0
        %794 = vmatmul.mubr.f32.gmra.mrb[0].mxu0 %v444
        %v795 = vpop.f32.mrb[0].mxu0
        %v796 = vadd.f32 %v344, %v795
        %v797 = vpop.f32.mrb[0].mxu0
        %v798 = vadd.f32 %v344, %v797
        %799 = vmatprep.mubr.f32.mxu0 0.0
        %800 = vmatmul.mubr.f32.gmra.mrb[0].mxu0 %v447
        %v801 = vpop.f32.mrb[0].mxu0
        %v802 = vadd.f32 %v349, %v801
        %v803 = vpop.f32.mrb[0].mxu0
        %v804 = vadd.f32 %v349, %v803
        %805 = vmatprep.mubr.f32.mxu0 0.0
        %806 = vmatmul.mubr.f32.gmra.mrb[0].mxu0 %v450
        %v807 = vpop.f32.mrb[0].mxu0
        %v808 = vadd.f32 %v354, %v807
        %v809 = vpop.f32.mrb[0].mxu0
        %v810 = vadd.f32 %v354, %v809
        %811 = vmatprep.mubr.f32.mxu0 0.0
        %812 = vmatmul.mubr.f32.gmra.mrb[0].mxu0 %v453
        %v813 = vpop.f32.mrb[0].mxu0
        %v814 = vadd.f32 %v359, %v813
        %v815 = vpop.f32.mrb[0].mxu0
        %v816 = vadd.f32 %v359, %v815
        %817 = vmatprep.mubr.f32.mxu0 0.0
        %818 = vmatmul.mubr.f32.gmra.mrb[0].mxu0 %v456
        %v819 = vpop.f32.mrb[0].mxu0
        %v820 = vadd.f32 %v364, %v819
        %v821 = vpop.f32.mrb[0].mxu0
        %v822 = vadd.f32 %v364, %v821
        %823 = vmatprep.mubr.f32.mxu0 0.0
        %824 = vmatmul.mubr.f32.gmra.mrb[0].mxu0 %v459
        %v825 = vpop.f32.mrb[0].mxu0
        %v826 = vadd.f32 %v369, %v825
        %v827 = vpop.f32.mrb[0].mxu0
        %v828 = vadd.f32 %v369, %v827
        %829 = vmatprep.mubr.f32.mxu0 0.0
        %830 = vmatmul.mubr.f32.gmra.mrb[0].mxu0 %v462
        %v831 = vpop.f32.mrb[0].mxu0
        %v832 = vadd.f32 %v374, %v831
        %v833 = vpop.f32.mrb[0].mxu0
        %v834 = vadd.f32 %v374, %v833
        %835 = vmatprep.mubr.f32.mxu0 0.0
        %836 = vmatmul.mubr.f32.gmra.mrb[0].mxu0 %v465
        %v837 = vpop.f32.mrb[0].mxu0
        %v838 = vadd.f32 %v379, %v837
        %v839 = vpop.f32.mrb[0].mxu0
        %v840 = vadd.f32 %v379, %v839
        %841 = vmatprep.mubr.f32.mxu0 0.0
        %842 = vmatmul.mubr.f32.gmra.mrb[0].mxu0 %v468
        %v843 = vpop.f32.mrb[0].mxu0
        %v844 = vadd.f32 %v384, %v843
        %v845 = vpop.f32.mrb[0].mxu0
        %v846 = vadd.f32 %v384, %v845
        %847 = vmatprep.mubr.f32.mxu0 0.0
        %848 = vmatmul.mubr.f32.gmra.mrb[0].mxu0 %v471
        %v849 = vpop.f32.mrb[0].mxu0
        %v850 = vadd.f32 %v389, %v849
        %v851 = vpop.f32.mrb[0].mxu0
        %v852 = vadd.f32 %v389, %v851
        %853 = vmatprep.mubr.f32.mxu0 0.0
        %854 = vmatmul.mubr.f32.gmra.mrb[0].mxu0 %v474
        %v855 = vpop.f32.mrb[0].mxu0
        %v856 = vadd.f32 %v394, %v855
        %v857 = vpop.f32.mrb[0].mxu0
        %v858 = vadd.f32 %v394, %v857
        %859 = vmatprep.mubr.f32.mxu0 0.0
        %860 = vmatmul.mubr.f32.gmra.mrb[0].mxu0 %v477
        %v861 = vpop.f32.mrb[0].mxu0
        %v862 = vadd.f32 %v399, %v861
        %v863 = vpop.f32.mrb[0].mxu0
        %v864 = vadd.f32 %v399, %v863
        %865 = vdwg.mxu0
        %v867 = vsel %vm442, %v316, 0
        %v870 = vsel %vm442, %v317, 0
        %v873 = vsel %vm442, %v318, 0
        %v876 = vsel %vm442, %v319, 0
        %v879 = vsel %vm442, %v320, 0
        %v882 = vsel %vm442, %v321, 0
        %v885 = vsel %vm442, %v322, 0
        %v888 = vsel %vm442, %v323, 0
        %v891 = vsel %vm442, %v324, 0
        %v894 = vsel %vm442, %v325, 0
        %v897 = vsel %vm442, %v326, 0
        %v900 = vsel %vm442, %v327, 0
        %902 = vmatprep.subr.mxu0 %v713
        %903 = vmatpush1.msra.mxu0 %v712
        %904 = vmatprep.subr.mxu0 %v715
        %905 = vmatpush1.msra.mxu0 %v714
        %906 = vmatprep.subr.mxu0 %v717
        %907 = vmatpush1.msra.mxu0 %v716
        %908 = vmatprep.subr.mxu0 %v719
        %909 = vmatpush1.msra.mxu0 %v718
        %910 = vmatprep.subr.mxu0 0.0
        %911 = vmatpush1.msra.mxu0 0.0
        %912 = vmatprep.subr.mxu0 0.0
        %913 = vmatpush1.msra.mxu0 0.0
        %914 = vmatprep.subr.mxu0 0.0
        %915 = vmatpush1.msra.mxu0 0.0
        %916 = vmatprep.subr.mxu0 0.0
        %917 = vmatpush1.msra.mxu0 0.0
        %918 = vmatprep.subr.mxu0 0.0
        %919 = vmatpush1.msra.mxu0 0.0
        %920 = vmatprep.subr.mxu0 0.0
        %921 = vmatpush1.msra.mxu0 0.0
        %922 = vmatprep.subr.mxu0 0.0
        %923 = vmatpush1.msra.mxu0 0.0
        %924 = vmatprep.subr.mxu0 0.0
        %925 = vmatpush1.msra.mxu0 0.0
        %926 = vmatprep.subr.mxu0 0.0
        %927 = vmatpush1.msra.mxu0 0.0
        %928 = vmatprep.subr.mxu0 0.0
        %929 = vmatpush1.msra.mxu0 0.0
        %930 = vmatprep.subr.mxu0 0.0
        %931 = vmatpush1.msra.mxu0 0.0
        %932 = vmatprep.subr.mxu0 0.0
        %933 = vmatpush1.msra.mxu0 0.0
        %934 = vmatprep.subr.mxu0 0.0
        %935 = vmatpush1.msra.mxu0 0.0
        %936 = vmatprep.subr.mxu0 0.0
        %937 = vmatpush1.msra.mxu0 0.0
        %938 = vmatprep.subr.mxu0 0.0
        %939 = vmatpush1.msra.mxu0 0.0
        %940 = vmatprep.subr.mxu0 0.0
        %941 = vmatpush1.msra.mxu0 0.0
        %942 = vmatprep.subr.mxu0 0.0
        %943 = vmatpush1.msra.mxu0 0.0
        %944 = vmatprep.subr.mxu0 0.0
        %945 = vmatpush1.msra.mxu0 0.0
        %946 = vmatprep.subr.mxu0 0.0
        %947 = vmatpush1.msra.mxu0 0.0
        %948 = vmatprep.subr.mxu0 0.0
        %949 = vmatpush1.msra.mxu0 0.0
        %950 = vmatprep.subr.mxu0 0.0
        %951 = vmatpush1.msra.mxu0 0.0
        %952 = vmatprep.subr.mxu0 0.0
        %953 = vmatpush1.msra.mxu0 0.0
        %954 = vmatprep.subr.mxu0 0.0
        %955 = vmatpush1.msra.mxu0 0.0
        %956 = vmatprep.subr.mxu0 0.0
        %957 = vmatpush1.msra.mxu0 0.0
        %958 = vmatprep.subr.mxu0 0.0
        %959 = vmatpush1.msra.mxu0 0.0
        %960 = vmatprep.subr.mxu0 0.0
        %961 = vmatpush1.msra.mxu0 0.0
        %962 = vmatprep.subr.mxu0 0.0
        %963 = vmatpush1.msra.mxu0 0.0
        %964 = vmatprep.subr.mxu0 0.0
        %965 = vmatpush1.msra.mxu0 0.0
        %966 = vmatprep.mubr.f32.mxu0 0.0
        %967 = vmatmul.mubr.f32.gmra.mrb[0].mxu0 %v867
        %v968 = vpop.f32.mrb[0].mxu0
        %v969 = vadd.f32 0.0, %v968
        %v970 = vpop.f32.mrb[0].mxu0
        %v971 = vadd.f32 0.0, %v970
        %972 = vmatprep.mubr.f32.mxu0 0.0
        %973 = vmatmul.mubr.f32.gmra.mrb[0].mxu0 %v870
        %v974 = vpop.f32.mrb[0].mxu0
        %v975 = vadd.f32 0.0, %v974
        %v976 = vpop.f32.mrb[0].mxu0
        %v977 = vadd.f32 0.0, %v976
        %978 = vmatprep.mubr.f32.mxu0 0.0
        %979 = vmatmul.mubr.f32.gmra.mrb[0].mxu0 %v873
        %v980 = vpop.f32.mrb[0].mxu0
        %v981 = vadd.f32 0.0, %v980
        %v982 = vpop.f32.mrb[0].mxu0
        %v983 = vadd.f32 0.0, %v982
        %984 = vmatprep.mubr.f32.mxu0 0.0
        %985 = vmatmul.mubr.f32.gmra.mrb[0].mxu0 %v876
        %v986 = vpop.f32.mrb[0].mxu0
        %v987 = vadd.f32 0.0, %v986
        %v988 = vpop.f32.mrb[0].mxu0
        %v989 = vadd.f32 0.0, %v988
        %990 = vmatprep.mubr.f32.mxu0 0.0
        %991 = vmatmul.mubr.f32.gmra.mrb[0].mxu0 %v879
        %v992 = vpop.f32.mrb[0].mxu0
        %v993 = vadd.f32 0.0, %v992
        %v994 = vpop.f32.mrb[0].mxu0
        %v995 = vadd.f32 0.0, %v994
        %996 = vmatprep.mubr.f32.mxu0 0.0
        %997 = vmatmul.mubr.f32.gmra.mrb[0].mxu0 %v882
        %v998 = vpop.f32.mrb[0].mxu0
        %v999 = vadd.f32 0.0, %v998
        %v1000 = vpop.f32.mrb[0].mxu0
        %v1001 = vadd.f32 0.0, %v1000
        %1002 = vmatprep.mubr.f32.mxu0 0.0
        %1003 = vmatmul.mubr.f32.gmra.mrb[0].mxu0 %v885
        %v1004 = vpop.f32.mrb[0].mxu0
        %v1005 = vadd.f32 0.0, %v1004
        %v1006 = vpop.f32.mrb[0].mxu0
        %v1007 = vadd.f32 0.0, %v1006
        %1008 = vmatprep.mubr.f32.mxu0 0.0
        %1009 = vmatmul.mubr.f32.gmra.mrb[0].mxu0 %v888
        %v1010 = vpop.f32.mrb[0].mxu0
        %v1011 = vadd.f32 0.0, %v1010
        %v1012 = vpop.f32.mrb[0].mxu0
        %v1013 = vadd.f32 0.0, %v1012
        %1014 = vmatprep.mubr.f32.mxu0 0.0
        %1015 = vmatmul.mubr.f32.gmra.mrb[0].mxu0 %v891
        %v1016 = vpop.f32.mrb[0].mxu0
        %v1017 = vadd.f32 0.0, %v1016
        %v1018 = vpop.f32.mrb[0].mxu0
        %v1019 = vadd.f32 0.0, %v1018
        %1020 = vmatprep.mubr.f32.mxu0 0.0
        %1021 = vmatmul.mubr.f32.gmra.mrb[0].mxu0 %v894
        %v1022 = vpop.f32.mrb[0].mxu0
        %v1023 = vadd.f32 0.0, %v1022
        %v1024 = vpop.f32.mrb[0].mxu0
        %v1025 = vadd.f32 0.0, %v1024
        %1026 = vmatprep.mubr.f32.mxu0 0.0
        %1027 = vmatmul.mubr.f32.gmra.mrb[0].mxu0 %v897
        %v1028 = vpop.f32.mrb[0].mxu0
        %v1029 = vadd.f32 0.0, %v1028
        %v1030 = vpop.f32.mrb[0].mxu0
        %v1031 = vadd.f32 0.0, %v1030
        %1032 = vmatprep.mubr.f32.mxu0 0.0
        %1033 = vmatmul.mubr.f32.gmra.mrb[0].mxu0 %v900
        %v1034 = vpop.f32.mrb[0].mxu0
        %v1035 = vadd.f32 0.0, %v1034
        %v1036 = vpop.f32.mrb[0].mxu0
        %v1037 = vadd.f32 0.0, %v1036
        %1038 = vdwg.mxu0
        %v1039 = vadd.f32 %v796, %v969
        %v1040 = vadd.f32 %v798, %v971
        %v1041 = vadd.f32 %v802, %v975
        %v1042 = vadd.f32 %v804, %v977
        %v1043 = vadd.f32 %v808, %v981
        %v1044 = vadd.f32 %v810, %v983
        %v1045 = vadd.f32 %v814, %v987
        %v1046 = vadd.f32 %v816, %v989
        %v1047 = vmul.f32 %v1039, 0.5
        %v1048 = vmul.f32 %v1040, 0.5
        %v1049 = vmul.f32 %v1041, 0.5
        %v1050 = vmul.f32 %v1042, 0.5
        %v1051 = vmul.f32 %v1043, 0.5
        %v1052 = vmul.f32 %v1044, 0.5
        %v1053 = vmul.f32 %v1045, 0.5
        %v1054 = vmul.f32 %v1046, 0.5
        %v1055 = vtanh.pop %v1047
        %v1056 = vtanh.pop %v1048
        %v1057 = vtanh.pop %v1049
        %v1058 = vtanh.pop %v1050
        %v1059 = vtanh.pop %v1051
        %v1060 = vtanh.pop %v1052
        %v1061 = vtanh.pop %v1053
        %v1062 = vtanh.pop %v1054
        %v1063 = vmul.f32 %v1055, 0.5
        %v1064 = vmul.f32 %v1056, 0.5
        %v1065 = vmul.f32 %v1057, 0.5
        %v1066 = vmul.f32 %v1058, 0.5
        %v1067 = vmul.f32 %v1059, 0.5
        %v1068 = vmul.f32 %v1060, 0.5
        %v1069 = vmul.f32 %v1061, 0.5
        %v1070 = vmul.f32 %v1062, 0.5
        %v1071 = vadd.f32 %v1063, 0.5
        %v1072 = vadd.f32 %v1064, 0.5
        %v1073 = vadd.f32 %v1065, 0.5
        %v1074 = vadd.f32 %v1066, 0.5
        %v1075 = vadd.f32 %v1067, 0.5
        %v1076 = vadd.f32 %v1068, 0.5
        %v1077 = vadd.f32 %v1069, 0.5
        %v1078 = vadd.f32 %v1070, 0.5
        %v1079 = vadd.f32 %v820, %v993
        %v1080 = vadd.f32 %v822, %v995
        %v1081 = vadd.f32 %v826, %v999
        %v1082 = vadd.f32 %v828, %v1001
        %v1083 = vadd.f32 %v832, %v1005
        %v1084 = vadd.f32 %v834, %v1007
        %v1085 = vadd.f32 %v838, %v1011
        %v1086 = vadd.f32 %v840, %v1013
        %v1087 = vmul.f32 %v1079, 0.5
        %v1088 = vmul.f32 %v1080, 0.5
        %v1089 = vmul.f32 %v1081, 0.5
        %v1090 = vmul.f32 %v1082, 0.5
        %v1091 = vmul.f32 %v1083, 0.5
        %v1092 = vmul.f32 %v1084, 0.5
        %v1093 = vmul.f32 %v1085, 0.5
        %v1094 = vmul.f32 %v1086, 0.5
        %v1095 = vtanh.pop %v1087
        %v1096 = vtanh.pop %v1088
        %v1097 = vtanh.pop %v1089
        %v1098 = vtanh.pop %v1090
        %v1099 = vtanh.pop %v1091
        %v1100 = vtanh.pop %v1092
        %v1101 = vtanh.pop %v1093
        %v1102 = vtanh.pop %v1094
        %v1103 = vmul.f32 %v1095, 0.5
        %v1104 = vmul.f32 %v1096, 0.5
        %v1105 = vmul.f32 %v1097, 0.5
        %v1106 = vmul.f32 %v1098, 0.5
        %v1107 = vmul.f32 %v1099, 0.5
        %v1108 = vmul.f32 %v1100, 0.5
        %v1109 = vmul.f32 %v1101, 0.5
        %v1110 = vmul.f32 %v1102, 0.5
        %v1111 = vadd.f32 %v1103, 0.5
        %v1112 = vadd.f32 %v1104, 0.5
        %v1113 = vadd.f32 %v1105, 0.5
        %v1114 = vadd.f32 %v1106, 0.5
        %v1115 = vadd.f32 %v1107, 0.5
        %v1116 = vadd.f32 %v1108, 0.5
        %v1117 = vadd.f32 %v1109, 0.5
        %v1118 = vadd.f32 %v1110, 0.5
        %v1119 = vadd.f32 %v1017, %v408
        %v1120 = vadd.f32 %v1019, %v408
        %v1121 = vadd.f32 %v1023, %v413
        %v1122 = vadd.f32 %v1025, %v413
        %v1123 = vadd.f32 %v1029, %v418
        %v1124 = vadd.f32 %v1031, %v418
        %v1125 = vadd.f32 %v1035, %v423
        %v1126 = vadd.f32 %v1037, %v423
        %v1127 = vmul.f32 %v1071, %v1119
        %v1128 = vmul.f32 %v1072, %v1120
        %v1129 = vmul.f32 %v1073, %v1121
        %v1130 = vmul.f32 %v1074, %v1122
        %v1131 = vmul.f32 %v1075, %v1123
        %v1132 = vmul.f32 %v1076, %v1124
        %v1133 = vmul.f32 %v1077, %v1125
        %v1134 = vmul.f32 %v1078, %v1126
        %v1135 = vadd.f32 %v844, %v1127
        %v1136 = vadd.f32 %v846, %v1128
        %v1137 = vadd.f32 %v850, %v1129
        %v1138 = vadd.f32 %v852, %v1130
        %v1139 = vadd.f32 %v856, %v1131
        %v1140 = vadd.f32 %v858, %v1132
        %v1141 = vadd.f32 %v862, %v1133
        %v1142 = vadd.f32 %v864, %v1134
        %v1143 = vtanh.pop %v1135
        %v1144 = vtanh.pop %v1136
        %v1145 = vtanh.pop %v1137
        %v1146 = vtanh.pop %v1138
        %v1147 = vtanh.pop %v1139
        %v1148 = vtanh.pop %v1140
        %v1149 = vtanh.pop %v1141
        %v1150 = vtanh.pop %v1142
        %v1151 = vsub.f32 1.0, %v1111
        %v1152 = vsub.f32 1.0, %v1112
        %v1153 = vsub.f32 1.0, %v1113
        %v1154 = vsub.f32 1.0, %v1114
        %v1155 = vsub.f32 1.0, %v1115
        %v1156 = vsub.f32 1.0, %v1116
        %v1157 = vsub.f32 1.0, %v1117
        %v1158 = vsub.f32 1.0, %v1118
        %v1159 = vmul.f32 %v1151, %v1143
        %v1160 = vmul.f32 %v1152, %v1144
        %v1161 = vmul.f32 %v1153, %v1145
        %v1162 = vmul.f32 %v1154, %v1146
        %v1163 = vmul.f32 %v1155, %v1147
        %v1164 = vmul.f32 %v1156, %v1148
        %v1165 = vmul.f32 %v1157, %v1149
        %v1166 = vmul.f32 %v1158, %v1150
        %v1167 = vmul.f32 %v1111, %v712
        %v1168 = vmul.f32 %v1112, %v713
        %v1169 = vmul.f32 %v1113, %v714
        %v1170 = vmul.f32 %v1114, %v715
        %v1171 = vmul.f32 %v1115, %v716
        %v1172 = vmul.f32 %v1116, %v717
        %v1173 = vmul.f32 %v1117, %v718
        %v1174 = vmul.f32 %v1118, %v719
        %v1175 = vadd.f32 %v1159, %v1167
        %v1176 = vadd.f32 %v1160, %v1168
        %v1177 = vadd.f32 %v1161, %v1169
        %v1178 = vadd.f32 %v1162, %v1170
        %v1179 = vadd.f32 %v1163, %v1171
        %v1180 = vadd.f32 %v1164, %v1172
        %v1181 = vadd.f32 %v1165, %v1173
        %v1182 = vadd.f32 %v1166, %v1174
        %s1183 = scalar_lea.vmem %s267, 128 [#allocation2]
        %v1184 = vld [vmem:[%s1183] sm:$0xff]
        %v1185 = vld [vmem:[%s1183 + $0x8] sm:$0xff]
        %v1186 = vld [vmem:[%s1183 + $0x10] sm:$0xff]
        %v1187 = vld [vmem:[%s1183 + $0x18] sm:$0xff]
        %v1188 = vld [vmem:[%s1183 + $0x20] sm:$0xff]
        %v1189 = vld [vmem:[%s1183 + $0x28] sm:$0xff]
        %v1190 = vld [vmem:[%s1183 + $0x30] sm:$0xff]
        %v1191 = vld [vmem:[%s1183 + $0x38] sm:$0xff]
        %1192 = vmatprep.subr.mxu0 %v1185
        %1193 = vmatpush1.msra.mxu0 %v1184
        %1194 = vmatprep.subr.mxu0 %v1187
        %1195 = vmatpush1.msra.mxu0 %v1186
        %1196 = vmatprep.subr.mxu0 %v1189
        %1197 = vmatpush1.msra.mxu0 %v1188
        %1198 = vmatprep.subr.mxu0 %v1191
        %1199 = vmatpush1.msra.mxu0 %v1190
        %1200 = vmatprep.subr.mxu0 0.0
        %1201 = vmatpush1.msra.mxu0 0.0
        %1202 = vmatprep.subr.mxu0 0.0
        %1203 = vmatpush1.msra.mxu0 0.0
        %1204 = vmatprep.subr.mxu0 0.0
        %1205 = vmatpush1.msra.mxu0 0.0
        %1206 = vmatprep.subr.mxu0 0.0
        %1207 = vmatpush1.msra.mxu0 0.0
        %1208 = vmatprep.subr.mxu0 0.0
        %1209 = vmatpush1.msra.mxu0 0.0
        %1210 = vmatprep.subr.mxu0 0.0
        %1211 = vmatpush1.msra.mxu0 0.0
        %1212 = vmatprep.subr.mxu0 0.0
        %1213 = vmatpush1.msra.mxu0 0.0
        %1214 = vmatprep.subr.mxu0 0.0
        %1215 = vmatpush1.msra.mxu0 0.0
        %1216 = vmatprep.subr.mxu0 0.0
        %1217 = vmatpush1.msra.mxu0 0.0
        %1218 = vmatprep.subr.mxu0 0.0
        %1219 = vmatpush1.msra.mxu0 0.0
        %1220 = vmatprep.subr.mxu0 0.0
        %1221 = vmatpush1.msra.mxu0 0.0
        %1222 = vmatprep.subr.mxu0 0.0
        %1223 = vmatpush1.msra.mxu0 0.0
        %1224 = vmatprep.subr.mxu0 0.0
        %1225 = vmatpush1.msra.mxu0 0.0
        %1226 = vmatprep.subr.mxu0 0.0
        %1227 = vmatpush1.msra.mxu0 0.0
        %1228 = vmatprep.subr.mxu0 0.0
        %1229 = vmatpush1.msra.mxu0 0.0
        %1230 = vmatprep.subr.mxu0 0.0
        %1231 = vmatpush1.msra.mxu0 0.0
        %1232 = vmatprep.subr.mxu0 0.0
        %1233 = vmatpush1.msra.mxu0 0.0
        %1234 = vmatprep.subr.mxu0 0.0
        %1235 = vmatpush1.msra.mxu0 0.0
        %1236 = vmatprep.subr.mxu0 0.0
        %1237 = vmatpush1.msra.mxu0 0.0
        %1238 = vmatprep.subr.mxu0 0.0
        %1239 = vmatpush1.msra.mxu0 0.0
        %1240 = vmatprep.subr.mxu0 0.0
        %1241 = vmatpush1.msra.mxu0 0.0
        %1242 = vmatprep.subr.mxu0 0.0
        %1243 = vmatpush1.msra.mxu0 0.0
        %1244 = vmatprep.subr.mxu0 0.0
        %1245 = vmatpush1.msra.mxu0 0.0
        %1246 = vmatprep.subr.mxu0 0.0
        %1247 = vmatpush1.msra.mxu0 0.0
        %1248 = vmatprep.subr.mxu0 0.0
        %1249 = vmatpush1.msra.mxu0 0.0
        %1250 = vmatprep.subr.mxu0 0.0
        %1251 = vmatpush1.msra.mxu0 0.0
        %1252 = vmatprep.subr.mxu0 0.0
        %1253 = vmatpush1.msra.mxu0 0.0
        %1254 = vmatprep.subr.mxu0 0.0
        %1255 = vmatpush1.msra.mxu0 0.0
        %1256 = vmatprep.mubr.f32.mxu0 0.0
        %1257 = vmatmul.mubr.f32.gmra.mrb[0].mxu0 %v444
        %v1258 = vpop.f32.mrb[0].mxu0
        %v1259 = vadd.f32 %v344, %v1258
        %v1260 = vpop.f32.mrb[0].mxu0
        %v1261 = vadd.f32 %v344, %v1260
        %1262 = vmatprep.mubr.f32.mxu0 0.0
        %1263 = vmatmul.mubr.f32.gmra.mrb[0].mxu0 %v447
        %v1264 = vpop.f32.mrb[0].mxu0
        %v1265 = vadd.f32 %v349, %v1264
        %v1266 = vpop.f32.mrb[0].mxu0
        %v1267 = vadd.f32 %v349, %v1266
        %1268 = vmatprep.mubr.f32.mxu0 0.0
        %1269 = vmatmul.mubr.f32.gmra.mrb[0].mxu0 %v450
        %v1270 = vpop.f32.mrb[0].mxu0
        %v1271 = vadd.f32 %v354, %v1270
        %v1272 = vpop.f32.mrb[0].mxu0
        %v1273 = vadd.f32 %v354, %v1272
        %1274 = vmatprep.mubr.f32.mxu0 0.0
        %1275 = vmatmul.mubr.f32.gmra.mrb[0].mxu0 %v453
        %v1276 = vpop.f32.mrb[0].mxu0
        %v1277 = vadd.f32 %v359, %v1276
        %v1278 = vpop.f32.mrb[0].mxu0
        %v1279 = vadd.f32 %v359, %v1278
        %1280 = vmatprep.mubr.f32.mxu0 0.0
        %1281 = vmatmul.mubr.f32.gmra.mrb[0].mxu0 %v456
        %v1282 = vpop.f32.mrb[0].mxu0
        %v1283 = vadd.f32 %v364, %v1282
        %v1284 = vpop.f32.mrb[0].mxu0
        %v1285 = vadd.f32 %v364, %v1284
        %1286 = vmatprep.mubr.f32.mxu0 0.0
        %1287 = vmatmul.mubr.f32.gmra.mrb[0].mxu0 %v459
        %v1288 = vpop.f32.mrb[0].mxu0
        %v1289 = vadd.f32 %v369, %v1288
        %v1290 = vpop.f32.mrb[0].mxu0
        %v1291 = vadd.f32 %v369, %v1290
        %1292 = vmatprep.mubr.f32.mxu0 0.0
        %1293 = vmatmul.mubr.f32.gmra.mrb[0].mxu0 %v462
        %v1294 = vpop.f32.mrb[0].mxu0
        %v1295 = vadd.f32 %v374, %v1294
        %v1296 = vpop.f32.mrb[0].mxu0
        %v1297 = vadd.f32 %v374, %v1296
        %1298 = vmatprep.mubr.f32.mxu0 0.0
        %1299 = vmatmul.mubr.f32.gmra.mrb[0].mxu0 %v465
        %v1300 = vpop.f32.mrb[0].mxu0
        %v1301 = vadd.f32 %v379, %v1300
        %v1302 = vpop.f32.mrb[0].mxu0
        %v1303 = vadd.f32 %v379, %v1302
        %1304 = vmatprep.mubr.f32.mxu0 0.0
        %1305 = vmatmul.mubr.f32.gmra.mrb[0].mxu0 %v468
        %v1306 = vpop.f32.mrb[0].mxu0
        %v1307 = vadd.f32 %v384, %v1306
        %v1308 = vpop.f32.mrb[0].mxu0
        %v1309 = vadd.f32 %v384, %v1308
        %1310 = vmatprep.mubr.f32.mxu0 0.0
        %1311 = vmatmul.mubr.f32.gmra.mrb[0].mxu0 %v471
        %v1312 = vpop.f32.mrb[0].mxu0
        %v1313 = vadd.f32 %v389, %v1312
        %v1314 = vpop.f32.mrb[0].mxu0
        %v1315 = vadd.f32 %v389, %v1314
        %1316 = vmatprep.mubr.f32.mxu0 0.0
        %1317 = vmatmul.mubr.f32.gmra.mrb[0].mxu0 %v474
        %v1318 = vpop.f32.mrb[0].mxu0
        %v1319 = vadd.f32 %v394, %v1318
        %v1320 = vpop.f32.mrb[0].mxu0
        %v1321 = vadd.f32 %v394, %v1320
        %1322 = vmatprep.mubr.f32.mxu0 0.0
        %1323 = vmatmul.mubr.f32.gmra.mrb[0].mxu0 %v477
        %v1324 = vpop.f32.mrb[0].mxu0
        %v1325 = vadd.f32 %v399, %v1324
        %v1326 = vpop.f32.mrb[0].mxu0
        %v1327 = vadd.f32 %v399, %v1326
        %1328 = vdwg.mxu0
        %1329 = vmatprep.subr.mxu0 %v1176
        %1330 = vmatpush1.msra.mxu0 %v1175
        %1331 = vmatprep.subr.mxu0 %v1178
        %1332 = vmatpush1.msra.mxu0 %v1177
        %1333 = vmatprep.subr.mxu0 %v1180
        %1334 = vmatpush1.msra.mxu0 %v1179
        %1335 = vmatprep.subr.mxu0 %v1182
        %1336 = vmatpush1.msra.mxu0 %v1181
        %1337 = vmatprep.subr.mxu0 0.0
        %1338 = vmatpush1.msra.mxu0 0.0
        %1339 = vmatprep.subr.mxu0 0.0
        %1340 = vmatpush1.msra.mxu0 0.0
        %1341 = vmatprep.subr.mxu0 0.0
        %1342 = vmatpush1.msra.mxu0 0.0
        %1343 = vmatprep.subr.mxu0 0.0
        %1344 = vmatpush1.msra.mxu0 0.0
        %1345 = vmatprep.subr.mxu0 0.0
        %1346 = vmatpush1.msra.mxu0 0.0
        %1347 = vmatprep.subr.mxu0 0.0
        %1348 = vmatpush1.msra.mxu0 0.0
        %1349 = vmatprep.subr.mxu0 0.0
        %1350 = vmatpush1.msra.mxu0 0.0
        %1351 = vmatprep.subr.mxu0 0.0
        %1352 = vmatpush1.msra.mxu0 0.0
        %1353 = vmatprep.subr.mxu0 0.0
        %1354 = vmatpush1.msra.mxu0 0.0
        %1355 = vmatprep.subr.mxu0 0.0
        %1356 = vmatpush1.msra.mxu0 0.0
        %1357 = vmatprep.subr.mxu0 0.0
        %1358 = vmatpush1.msra.mxu0 0.0
        %1359 = vmatprep.subr.mxu0 0.0
        %1360 = vmatpush1.msra.mxu0 0.0
        %1361 = vmatprep.subr.mxu0 0.0
        %1362 = vmatpush1.msra.mxu0 0.0
        %1363 = vmatprep.subr.mxu0 0.0
        %1364 = vmatpush1.msra.mxu0 0.0
        %1365 = vmatprep.subr.mxu0 0.0
        %1366 = vmatpush1.msra.mxu0 0.0
        %1367 = vmatprep.subr.mxu0 0.0
        %1368 = vmatpush1.msra.mxu0 0.0
        %1369 = vmatprep.subr.mxu0 0.0
        %1370 = vmatpush1.msra.mxu0 0.0
        %1371 = vmatprep.subr.mxu0 0.0
        %1372 = vmatpush1.msra.mxu0 0.0
        %1373 = vmatprep.subr.mxu0 0.0
        %1374 = vmatpush1.msra.mxu0 0.0
        %1375 = vmatprep.subr.mxu0 0.0
        %1376 = vmatpush1.msra.mxu0 0.0
        %1377 = vmatprep.subr.mxu0 0.0
        %1378 = vmatpush1.msra.mxu0 0.0
        %1379 = vmatprep.subr.mxu0 0.0
        %1380 = vmatpush1.msra.mxu0 0.0
        %1381 = vmatprep.subr.mxu0 0.0
        %1382 = vmatpush1.msra.mxu0 0.0
        %1383 = vmatprep.subr.mxu0 0.0
        %1384 = vmatpush1.msra.mxu0 0.0
        %1385 = vmatprep.subr.mxu0 0.0
        %1386 = vmatpush1.msra.mxu0 0.0
        %1387 = vmatprep.subr.mxu0 0.0
        %1388 = vmatpush1.msra.mxu0 0.0
        %1389 = vmatprep.subr.mxu0 0.0
        %1390 = vmatpush1.msra.mxu0 0.0
        %1391 = vmatprep.subr.mxu0 0.0
        %1392 = vmatpush1.msra.mxu0 0.0
        %1393 = vmatprep.mubr.f32.mxu0 0.0
        %1394 = vmatmul.mubr.f32.gmra.mrb[0].mxu0 %v867
        %v1395 = vpop.f32.mrb[0].mxu0
        %v1396 = vadd.f32 0.0, %v1395
        %v1397 = vpop.f32.mrb[0].mxu0
        %v1398 = vadd.f32 0.0, %v1397
        %1399 = vmatprep.mubr.f32.mxu0 0.0
        %1400 = vmatmul.mubr.f32.gmra.mrb[0].mxu0 %v870
        %v1401 = vpop.f32.mrb[0].mxu0
        %v1402 = vadd.f32 0.0, %v1401
        %v1403 = vpop.f32.mrb[0].mxu0
        %v1404 = vadd.f32 0.0, %v1403
        %1405 = vmatprep.mubr.f32.mxu0 0.0
        %1406 = vmatmul.mubr.f32.gmra.mrb[0].mxu0 %v873
        %v1407 = vpop.f32.mrb[0].mxu0
        %v1408 = vadd.f32 0.0, %v1407
        %v1409 = vpop.f32.mrb[0].mxu0
        %v1410 = vadd.f32 0.0, %v1409
        %1411 = vmatprep.mubr.f32.mxu0 0.0
        %1412 = vmatmul.mubr.f32.gmra.mrb[0].mxu0 %v876
        %v1413 = vpop.f32.mrb[0].mxu0
        %v1414 = vadd.f32 0.0, %v1413
        %v1415 = vpop.f32.mrb[0].mxu0
        %v1416 = vadd.f32 0.0, %v1415
        %1417 = vmatprep.mubr.f32.mxu0 0.0
        %1418 = vmatmul.mubr.f32.gmra.mrb[0].mxu0 %v879
        %v1419 = vpop.f32.mrb[0].mxu0
        %v1420 = vadd.f32 0.0, %v1419
        %v1421 = vpop.f32.mrb[0].mxu0
        %v1422 = vadd.f32 0.0, %v1421
        %1423 = vmatprep.mubr.f32.mxu0 0.0
        %1424 = vmatmul.mubr.f32.gmra.mrb[0].mxu0 %v882
        %v1425 = vpop.f32.mrb[0].mxu0
        %v1426 = vadd.f32 0.0, %v1425
        %v1427 = vpop.f32.mrb[0].mxu0
        %v1428 = vadd.f32 0.0, %v1427
        %1429 = vmatprep.mubr.f32.mxu0 0.0
        %1430 = vmatmul.mubr.f32.gmra.mrb[0].mxu0 %v885
        %v1431 = vpop.f32.mrb[0].mxu0
        %v1432 = vadd.f32 0.0, %v1431
        %v1433 = vpop.f32.mrb[0].mxu0
        %v1434 = vadd.f32 0.0, %v1433
        %1435 = vmatprep.mubr.f32.mxu0 0.0
        %1436 = vmatmul.mubr.f32.gmra.mrb[0].mxu0 %v888
        %v1437 = vpop.f32.mrb[0].mxu0
        %v1438 = vadd.f32 0.0, %v1437
        %v1439 = vpop.f32.mrb[0].mxu0
        %v1440 = vadd.f32 0.0, %v1439
        %1441 = vmatprep.mubr.f32.mxu0 0.0
        %1442 = vmatmul.mubr.f32.gmra.mrb[0].mxu0 %v891
        %v1443 = vpop.f32.mrb[0].mxu0
        %v1444 = vadd.f32 0.0, %v1443
        %v1445 = vpop.f32.mrb[0].mxu0
        %v1446 = vadd.f32 0.0, %v1445
        %1447 = vmatprep.mubr.f32.mxu0 0.0
        %1448 = vmatmul.mubr.f32.gmra.mrb[0].mxu0 %v894
        %v1449 = vpop.f32.mrb[0].mxu0
        %v1450 = vadd.f32 0.0, %v1449
        %v1451 = vpop.f32.mrb[0].mxu0
        %v1452 = vadd.f32 0.0, %v1451
        %1453 = vmatprep.mubr.f32.mxu0 0.0
        %1454 = vmatmul.mubr.f32.gmra.mrb[0].mxu0 %v897
        %v1455 = vpop.f32.mrb[0].mxu0
        %v1456 = vadd.f32 0.0, %v1455
        %v1457 = vpop.f32.mrb[0].mxu0
        %v1458 = vadd.f32 0.0, %v1457
        %1459 = vmatprep.mubr.f32.mxu0 0.0
        %1460 = vmatmul.mubr.f32.gmra.mrb[0].mxu0 %v900
        %v1461 = vpop.f32.mrb[0].mxu0
        %v1462 = vadd.f32 0.0, %v1461
        %v1463 = vpop.f32.mrb[0].mxu0
        %v1464 = vadd.f32 0.0, %v1463
        %1465 = vdwg.mxu0
        %v1466 = vadd.f32 %v1259, %v1396
        %v1467 = vadd.f32 %v1261, %v1398
        %v1468 = vadd.f32 %v1265, %v1402
        %v1469 = vadd.f32 %v1267, %v1404
        %v1470 = vadd.f32 %v1271, %v1408
        %v1471 = vadd.f32 %v1273, %v1410
        %v1472 = vadd.f32 %v1277, %v1414
        %v1473 = vadd.f32 %v1279, %v1416
        %v1474 = vmul.f32 %v1466, 0.5
        %v1475 = vmul.f32 %v1467, 0.5
        %v1476 = vmul.f32 %v1468, 0.5
        %v1477 = vmul.f32 %v1469, 0.5
        %v1478 = vmul.f32 %v1470, 0.5
        %v1479 = vmul.f32 %v1471, 0.5
        %v1480 = vmul.f32 %v1472, 0.5
        %v1481 = vmul.f32 %v1473, 0.5
        %v1482 = vtanh.pop %v1474
        %v1483 = vtanh.pop %v1475
        %v1484 = vtanh.pop %v1476
        %v1485 = vtanh.pop %v1477
        %v1486 = vtanh.pop %v1478
        %v1487 = vtanh.pop %v1479
        %v1488 = vtanh.pop %v1480
        %v1489 = vtanh.pop %v1481
        %v1490 = vmul.f32 %v1482, 0.5
        %v1491 = vmul.f32 %v1483, 0.5
        %v1492 = vmul.f32 %v1484, 0.5
        %v1493 = vmul.f32 %v1485, 0.5
        %v1494 = vmul.f32 %v1486, 0.5
        %v1495 = vmul.f32 %v1487, 0.5
        %v1496 = vmul.f32 %v1488, 0.5
        %v1497 = vmul.f32 %v1489, 0.5
        %v1498 = vadd.f32 %v1490, 0.5
        %v1499 = vadd.f32 %v1491, 0.5
        %v1500 = vadd.f32 %v1492, 0.5
        %v1501 = vadd.f32 %v1493, 0.5
        %v1502 = vadd.f32 %v1494, 0.5
        %v1503 = vadd.f32 %v1495, 0.5
        %v1504 = vadd.f32 %v1496, 0.5
        %v1505 = vadd.f32 %v1497, 0.5
        %v1506 = vadd.f32 %v1283, %v1420
        %v1507 = vadd.f32 %v1285, %v1422
        %v1508 = vadd.f32 %v1289, %v1426
        %v1509 = vadd.f32 %v1291, %v1428
        %v1510 = vadd.f32 %v1295, %v1432
        %v1511 = vadd.f32 %v1297, %v1434
        %v1512 = vadd.f32 %v1301, %v1438
        %v1513 = vadd.f32 %v1303, %v1440
        %v1514 = vmul.f32 %v1506, 0.5
        %v1515 = vmul.f32 %v1507, 0.5
        %v1516 = vmul.f32 %v1508, 0.5
        %v1517 = vmul.f32 %v1509, 0.5
        %v1518 = vmul.f32 %v1510, 0.5
        %v1519 = vmul.f32 %v1511, 0.5
        %v1520 = vmul.f32 %v1512, 0.5
        %v1521 = vmul.f32 %v1513, 0.5
        %v1522 = vtanh.pop %v1514
        %v1523 = vtanh.pop %v1515
        %v1524 = vtanh.pop %v1516
        %v1525 = vtanh.pop %v1517
        %v1526 = vtanh.pop %v1518
        %v1527 = vtanh.pop %v1519
        %v1528 = vtanh.pop %v1520
        %v1529 = vtanh.pop %v1521
        %v1530 = vmul.f32 %v1522, 0.5
        %v1531 = vmul.f32 %v1523, 0.5
        %v1532 = vmul.f32 %v1524, 0.5
        %v1533 = vmul.f32 %v1525, 0.5
        %v1534 = vmul.f32 %v1526, 0.5
        %v1535 = vmul.f32 %v1527, 0.5
        %v1536 = vmul.f32 %v1528, 0.5
        %v1537 = vmul.f32 %v1529, 0.5
        %v1538 = vadd.f32 %v1530, 0.5
        %v1539 = vadd.f32 %v1531, 0.5
        %v1540 = vadd.f32 %v1532, 0.5
        %v1541 = vadd.f32 %v1533, 0.5
        %v1542 = vadd.f32 %v1534, 0.5
        %v1543 = vadd.f32 %v1535, 0.5
        %v1544 = vadd.f32 %v1536, 0.5
        %v1545 = vadd.f32 %v1537, 0.5
        %v1546 = vadd.f32 %v1444, %v408
        %v1547 = vadd.f32 %v1446, %v408
        %v1548 = vadd.f32 %v1450, %v413
        %v1549 = vadd.f32 %v1452, %v413
        %v1550 = vadd.f32 %v1456, %v418
        %v1551 = vadd.f32 %v1458, %v418
        %v1552 = vadd.f32 %v1462, %v423
        %v1553 = vadd.f32 %v1464, %v423
        %v1554 = vmul.f32 %v1498, %v1546
        %v1555 = vmul.f32 %v1499, %v1547
        %v1556 = vmul.f32 %v1500, %v1548
        %v1557 = vmul.f32 %v1501, %v1549
        %v1558 = vmul.f32 %v1502, %v1550
        %v1559 = vmul.f32 %v1503, %v1551
        %v1560 = vmul.f32 %v1504, %v1552
        %v1561 = vmul.f32 %v1505, %v1553
        %v1562 = vadd.f32 %v1307, %v1554
        %v1563 = vadd.f32 %v1309, %v1555
        %v1564 = vadd.f32 %v1313, %v1556
        %v1565 = vadd.f32 %v1315, %v1557
        %v1566 = vadd.f32 %v1319, %v1558
        %v1567 = vadd.f32 %v1321, %v1559
        %v1568 = vadd.f32 %v1325, %v1560
        %v1569 = vadd.f32 %v1327, %v1561
        %v1570 = vtanh.pop %v1562
        %v1571 = vtanh.pop %v1563
        %v1572 = vtanh.pop %v1564
        %v1573 = vtanh.pop %v1565
        %v1574 = vtanh.pop %v1566
        %v1575 = vtanh.pop %v1567
        %v1576 = vtanh.pop %v1568
        %v1577 = vtanh.pop %v1569
        %v1578 = vsub.f32 1.0, %v1538
        %v1579 = vsub.f32 1.0, %v1539
        %v1580 = vsub.f32 1.0, %v1540
        %v1581 = vsub.f32 1.0, %v1541
        %v1582 = vsub.f32 1.0, %v1542
        %v1583 = vsub.f32 1.0, %v1543
        %v1584 = vsub.f32 1.0, %v1544
        %v1585 = vsub.f32 1.0, %v1545
        %v1586 = vmul.f32 %v1578, %v1570
        %v1587 = vmul.f32 %v1579, %v1571
        %v1588 = vmul.f32 %v1580, %v1572
        %v1589 = vmul.f32 %v1581, %v1573
        %v1590 = vmul.f32 %v1582, %v1574
        %v1591 = vmul.f32 %v1583, %v1575
        %v1592 = vmul.f32 %v1584, %v1576
        %v1593 = vmul.f32 %v1585, %v1577
        %v1594 = vmul.f32 %v1538, %v1175
        %v1595 = vmul.f32 %v1539, %v1176
        %v1596 = vmul.f32 %v1540, %v1177
        %v1597 = vmul.f32 %v1541, %v1178
        %v1598 = vmul.f32 %v1542, %v1179
        %v1599 = vmul.f32 %v1543, %v1180
        %v1600 = vmul.f32 %v1544, %v1181
        %v1601 = vmul.f32 %v1545, %v1182
        %v1602 = vadd.f32 %v1586, %v1594
        %v1603 = vadd.f32 %v1587, %v1595
        %v1604 = vadd.f32 %v1588, %v1596
        %v1605 = vadd.f32 %v1589, %v1597
        %v1606 = vadd.f32 %v1590, %v1598
        %v1607 = vadd.f32 %v1591, %v1599
        %v1608 = vadd.f32 %v1592, %v1600
        %v1609 = vadd.f32 %v1593, %v1601
        %s1610 = scalar_lea.vmem %s267, 192 [#allocation2]
        %v1611 = vld [vmem:[%s1610] sm:$0xff]
        %v1612 = vld [vmem:[%s1610 + $0x8] sm:$0xff]
        %v1613 = vld [vmem:[%s1610 + $0x10] sm:$0xff]
        %v1614 = vld [vmem:[%s1610 + $0x18] sm:$0xff]
        %v1615 = vld [vmem:[%s1610 + $0x20] sm:$0xff]
        %v1616 = vld [vmem:[%s1610 + $0x28] sm:$0xff]
        %v1617 = vld [vmem:[%s1610 + $0x30] sm:$0xff]
        %v1618 = vld [vmem:[%s1610 + $0x38] sm:$0xff]
        %1619 = vmatprep.subr.mxu0 %v1612
        %1620 = vmatpush1.msra.mxu0 %v1611
        %1621 = vmatprep.subr.mxu0 %v1614
        %1622 = vmatpush1.msra.mxu0 %v1613
        %1623 = vmatprep.subr.mxu0 %v1616
        %1624 = vmatpush1.msra.mxu0 %v1615
        %1625 = vmatprep.subr.mxu0 %v1618
        %1626 = vmatpush1.msra.mxu0 %v1617
        %1627 = vmatprep.subr.mxu0 0.0
        %1628 = vmatpush1.msra.mxu0 0.0
        %1629 = vmatprep.subr.mxu0 0.0
        %1630 = vmatpush1.msra.mxu0 0.0
        %1631 = vmatprep.subr.mxu0 0.0
        %1632 = vmatpush1.msra.mxu0 0.0
        %1633 = vmatprep.subr.mxu0 0.0
        %1634 = vmatpush1.msra.mxu0 0.0
        %1635 = vmatprep.subr.mxu0 0.0
        %1636 = vmatpush1.msra.mxu0 0.0
        %1637 = vmatprep.subr.mxu0 0.0
        %1638 = vmatpush1.msra.mxu0 0.0
        %1639 = vmatprep.subr.mxu0 0.0
        %1640 = vmatpush1.msra.mxu0 0.0
        %1641 = vmatprep.subr.mxu0 0.0
        %1642 = vmatpush1.msra.mxu0 0.0
        %1643 = vmatprep.subr.mxu0 0.0
        %1644 = vmatpush1.msra.mxu0 0.0
        %1645 = vmatprep.subr.mxu0 0.0
        %1646 = vmatpush1.msra.mxu0 0.0
        %1647 = vmatprep.subr.mxu0 0.0
        %1648 = vmatpush1.msra.mxu0 0.0
        %1649 = vmatprep.subr.mxu0 0.0
        %1650 = vmatpush1.msra.mxu0 0.0
        %1651 = vmatprep.subr.mxu0 0.0
        %1652 = vmatpush1.msra.mxu0 0.0
        %1653 = vmatprep.subr.mxu0 0.0
        %1654 = vmatpush1.msra.mxu0 0.0
        %1655 = vmatprep.subr.mxu0 0.0
        %1656 = vmatpush1.msra.mxu0 0.0
        %1657 = vmatprep.subr.mxu0 0.0
        %1658 = vmatpush1.msra.mxu0 0.0
        %1659 = vmatprep.subr.mxu0 0.0
        %1660 = vmatpush1.msra.mxu0 0.0
        %1661 = vmatprep.subr.mxu0 0.0
        %1662 = vmatpush1.msra.mxu0 0.0
        %1663 = vmatprep.subr.mxu0 0.0
        %1664 = vmatpush1.msra.mxu0 0.0
        %1665 = vmatprep.subr.mxu0 0.0
        %1666 = vmatpush1.msra.mxu0 0.0
        %1667 = vmatprep.subr.mxu0 0.0
        %1668 = vmatpush1.msra.mxu0 0.0
        %1669 = vmatprep.subr.mxu0 0.0
        %1670 = vmatpush1.msra.mxu0 0.0
        %1671 = vmatprep.subr.mxu0 0.0
        %1672 = vmatpush1.msra.mxu0 0.0
        %1673 = vmatprep.subr.mxu0 0.0
        %1674 = vmatpush1.msra.mxu0 0.0
        %1675 = vmatprep.subr.mxu0 0.0
        %1676 = vmatpush1.msra.mxu0 0.0
        %1677 = vmatprep.subr.mxu0 0.0
        %1678 = vmatpush1.msra.mxu0 0.0
        %1679 = vmatprep.subr.mxu0 0.0
        %1680 = vmatpush1.msra.mxu0 0.0
        %1681 = vmatprep.subr.mxu0 0.0
        %1682 = vmatpush1.msra.mxu0 0.0
        %1683 = vmatprep.mubr.f32.mxu0 0.0
        %1684 = vmatmul.mubr.f32.gmra.mrb[0].mxu0 %v444
        %v1685 = vpop.f32.mrb[0].mxu0
        %v1686 = vadd.f32 %v344, %v1685
        %v1687 = vpop.f32.mrb[0].mxu0
        %v1688 = vadd.f32 %v344, %v1687
        %1689 = vmatprep.mubr.f32.mxu0 0.0
        %1690 = vmatmul.mubr.f32.gmra.mrb[0].mxu0 %v447
        %v1691 = vpop.f32.mrb[0].mxu0
        %v1692 = vadd.f32 %v349, %v1691
        %v1693 = vpop.f32.mrb[0].mxu0
        %v1694 = vadd.f32 %v349, %v1693
        %1695 = vmatprep.mubr.f32.mxu0 0.0
        %1696 = vmatmul.mubr.f32.gmra.mrb[0].mxu0 %v450
        %v1697 = vpop.f32.mrb[0].mxu0
        %v1698 = vadd.f32 %v354, %v1697
        %v1699 = vpop.f32.mrb[0].mxu0
        %v1700 = vadd.f32 %v354, %v1699
        %1701 = vmatprep.mubr.f32.mxu0 0.0
        %1702 = vmatmul.mubr.f32.gmra.mrb[0].mxu0 %v453
        %v1703 = vpop.f32.mrb[0].mxu0
        %v1704 = vadd.f32 %v359, %v1703
        %v1705 = vpop.f32.mrb[0].mxu0
        %v1706 = vadd.f32 %v359, %v1705
        %1707 = vmatprep.mubr.f32.mxu0 0.0
        %1708 = vmatmul.mubr.f32.gmra.mrb[0].mxu0 %v456
        %v1709 = vpop.f32.mrb[0].mxu0
        %v1710 = vadd.f32 %v364, %v1709
        %v1711 = vpop.f32.mrb[0].mxu0
        %v1712 = vadd.f32 %v364, %v1711
        %1713 = vmatprep.mubr.f32.mxu0 0.0
        %1714 = vmatmul.mubr.f32.gmra.mrb[0].mxu0 %v459
        %v1715 = vpop.f32.mrb[0].mxu0
        %v1716 = vadd.f32 %v369, %v1715
        %v1717 = vpop.f32.mrb[0].mxu0
        %v1718 = vadd.f32 %v369, %v1717
        %1719 = vmatprep.mubr.f32.mxu0 0.0
        %1720 = vmatmul.mubr.f32.gmra.mrb[0].mxu0 %v462
        %v1721 = vpop.f32.mrb[0].mxu0
        %v1722 = vadd.f32 %v374, %v1721
        %v1723 = vpop.f32.mrb[0].mxu0
        %v1724 = vadd.f32 %v374, %v1723
        %1725 = vmatprep.mubr.f32.mxu0 0.0
        %1726 = vmatmul.mubr.f32.gmra.mrb[0].mxu0 %v465
        %v1727 = vpop.f32.mrb[0].mxu0
        %v1728 = vadd.f32 %v379, %v1727
        %v1729 = vpop.f32.mrb[0].mxu0
        %v1730 = vadd.f32 %v379, %v1729
        %1731 = vmatprep.mubr.f32.mxu0 0.0
        %1732 = vmatmul.mubr.f32.gmra.mrb[0].mxu0 %v468
        %v1733 = vpop.f32.mrb[0].mxu0
        %v1734 = vadd.f32 %v384, %v1733
        %v1735 = vpop.f32.mrb[0].mxu0
        %v1736 = vadd.f32 %v384, %v1735
        %1737 = vmatprep.mubr.f32.mxu0 0.0
        %1738 = vmatmul.mubr.f32.gmra.mrb[0].mxu0 %v471
        %v1739 = vpop.f32.mrb[0].mxu0
        %v1740 = vadd.f32 %v389, %v1739
        %v1741 = vpop.f32.mrb[0].mxu0
        %v1742 = vadd.f32 %v389, %v1741
        %1743 = vmatprep.mubr.f32.mxu0 0.0
        %1744 = vmatmul.mubr.f32.gmra.mrb[0].mxu0 %v474
        %v1745 = vpop.f32.mrb[0].mxu0
        %v1746 = vadd.f32 %v394, %v1745
        %v1747 = vpop.f32.mrb[0].mxu0
        %v1748 = vadd.f32 %v394, %v1747
        %1749 = vmatprep.mubr.f32.mxu0 0.0
        %1750 = vmatmul.mubr.f32.gmra.mrb[0].mxu0 %v477
        %v1751 = vpop.f32.mrb[0].mxu0
        %v1752 = vadd.f32 %v399, %v1751
        %v1753 = vpop.f32.mrb[0].mxu0
        %v1754 = vadd.f32 %v399, %v1753
        %1755 = vdwg.mxu0
        %1756 = vmatprep.subr.mxu0 %v1603
        %1757 = vmatpush1.msra.mxu0 %v1602
        %1758 = vmatprep.subr.mxu0 %v1605
        %1759 = vmatpush1.msra.mxu0 %v1604
        %1760 = vmatprep.subr.mxu0 %v1607
        %1761 = vmatpush1.msra.mxu0 %v1606
        %1762 = vmatprep.subr.mxu0 %v1609
        %1763 = vmatpush1.msra.mxu0 %v1608
        %1764 = vmatprep.subr.mxu0 0.0
        %1765 = vmatpush1.msra.mxu0 0.0
        %1766 = vmatprep.subr.mxu0 0.0
        %1767 = vmatpush1.msra.mxu0 0.0
        %1768 = vmatprep.subr.mxu0 0.0
        %1769 = vmatpush1.msra.mxu0 0.0
        %1770 = vmatprep.subr.mxu0 0.0
        %1771 = vmatpush1.msra.mxu0 0.0
        %1772 = vmatprep.subr.mxu0 0.0
        %1773 = vmatpush1.msra.mxu0 0.0
        %1774 = vmatprep.subr.mxu0 0.0
        %1775 = vmatpush1.msra.mxu0 0.0
        %1776 = vmatprep.subr.mxu0 0.0
        %1777 = vmatpush1.msra.mxu0 0.0
        %1778 = vmatprep.subr.mxu0 0.0
        %1779 = vmatpush1.msra.mxu0 0.0
        %1780 = vmatprep.subr.mxu0 0.0
        %1781 = vmatpush1.msra.mxu0 0.0
        %1782 = vmatprep.subr.mxu0 0.0
        %1783 = vmatpush1.msra.mxu0 0.0
        %1784 = vmatprep.subr.mxu0 0.0
        %1785 = vmatpush1.msra.mxu0 0.0
        %1786 = vmatprep.subr.mxu0 0.0
        %1787 = vmatpush1.msra.mxu0 0.0
        %1788 = vmatprep.subr.mxu0 0.0
        %1789 = vmatpush1.msra.mxu0 0.0
        %1790 = vmatprep.subr.mxu0 0.0
        %1791 = vmatpush1.msra.mxu0 0.0
        %1792 = vmatprep.subr.mxu0 0.0
        %1793 = vmatpush1.msra.mxu0 0.0
        %1794 = vmatprep.subr.mxu0 0.0
        %1795 = vmatpush1.msra.mxu0 0.0
        %1796 = vmatprep.subr.mxu0 0.0
        %1797 = vmatpush1.msra.mxu0 0.0
        %1798 = vmatprep.subr.mxu0 0.0
        %1799 = vmatpush1.msra.mxu0 0.0
        %1800 = vmatprep.subr.mxu0 0.0
        %1801 = vmatpush1.msra.mxu0 0.0
        %1802 = vmatprep.subr.mxu0 0.0
        %1803 = vmatpush1.msra.mxu0 0.0
        %1804 = vmatprep.subr.mxu0 0.0
        %1805 = vmatpush1.msra.mxu0 0.0
        %1806 = vmatprep.subr.mxu0 0.0
        %1807 = vmatpush1.msra.mxu0 0.0
        %1808 = vmatprep.subr.mxu0 0.0
        %1809 = vmatpush1.msra.mxu0 0.0
        %1810 = vmatprep.subr.mxu0 0.0
        %1811 = vmatpush1.msra.mxu0 0.0
        %1812 = vmatprep.subr.mxu0 0.0
        %1813 = vmatpush1.msra.mxu0 0.0
        %1814 = vmatprep.subr.mxu0 0.0
        %1815 = vmatpush1.msra.mxu0 0.0
        %1816 = vmatprep.subr.mxu0 0.0
        %1817 = vmatpush1.msra.mxu0 0.0
        %1818 = vmatprep.subr.mxu0 0.0
        %1819 = vmatpush1.msra.mxu0 0.0
        %1820 = vmatprep.mubr.f32.mxu0 0.0
        %1821 = vmatmul.mubr.f32.gmra.mrb[0].mxu0 %v867
        %v1822 = vpop.f32.mrb[0].mxu0
        %v1823 = vadd.f32 0.0, %v1822
        %v1824 = vpop.f32.mrb[0].mxu0
        %v1825 = vadd.f32 0.0, %v1824
        %1826 = vmatprep.mubr.f32.mxu0 0.0
        %1827 = vmatmul.mubr.f32.gmra.mrb[0].mxu0 %v870
        %v1828 = vpop.f32.mrb[0].mxu0
        %v1829 = vadd.f32 0.0, %v1828
        %v1830 = vpop.f32.mrb[0].mxu0
        %v1831 = vadd.f32 0.0, %v1830
        %1832 = vmatprep.mubr.f32.mxu0 0.0
        %1833 = vmatmul.mubr.f32.gmra.mrb[0].mxu0 %v873
        %v1834 = vpop.f32.mrb[0].mxu0
        %v1835 = vadd.f32 0.0, %v1834
        %v1836 = vpop.f32.mrb[0].mxu0
        %v1837 = vadd.f32 0.0, %v1836
        %1838 = vmatprep.mubr.f32.mxu0 0.0
        %1839 = vmatmul.mubr.f32.gmra.mrb[0].mxu0 %v876
        %v1840 = vpop.f32.mrb[0].mxu0
        %v1841 = vadd.f32 0.0, %v1840
        %v1842 = vpop.f32.mrb[0].mxu0
        %v1843 = vadd.f32 0.0, %v1842
        %1844 = vmatprep.mubr.f32.mxu0 0.0
        %1845 = vmatmul.mubr.f32.gmra.mrb[0].mxu0 %v879
        %v1846 = vpop.f32.mrb[0].mxu0
        %v1847 = vadd.f32 0.0, %v1846
        %v1848 = vpop.f32.mrb[0].mxu0
        %v1849 = vadd.f32 0.0, %v1848
        %1850 = vmatprep.mubr.f32.mxu0 0.0
        %1851 = vmatmul.mubr.f32.gmra.mrb[0].mxu0 %v882
        %v1852 = vpop.f32.mrb[0].mxu0
        %v1853 = vadd.f32 0.0, %v1852
        %v1854 = vpop.f32.mrb[0].mxu0
        %v1855 = vadd.f32 0.0, %v1854
        %1856 = vmatprep.mubr.f32.mxu0 0.0
        %1857 = vmatmul.mubr.f32.gmra.mrb[0].mxu0 %v885
        %v1858 = vpop.f32.mrb[0].mxu0
        %v1859 = vadd.f32 0.0, %v1858
        %v1860 = vpop.f32.mrb[0].mxu0
        %v1861 = vadd.f32 0.0, %v1860
        %1862 = vmatprep.mubr.f32.mxu0 0.0
        %1863 = vmatmul.mubr.f32.gmra.mrb[0].mxu0 %v888
        %v1864 = vpop.f32.mrb[0].mxu0
        %v1865 = vadd.f32 0.0, %v1864
        %v1866 = vpop.f32.mrb[0].mxu0
        %v1867 = vadd.f32 0.0, %v1866
        %1868 = vmatprep.mubr.f32.mxu0 0.0
        %1869 = vmatmul.mubr.f32.gmra.mrb[0].mxu0 %v891
        %v1870 = vpop.f32.mrb[0].mxu0
        %v1871 = vadd.f32 0.0, %v1870
        %v1872 = vpop.f32.mrb[0].mxu0
        %v1873 = vadd.f32 0.0, %v1872
        %1874 = vmatprep.mubr.f32.mxu0 0.0
        %1875 = vmatmul.mubr.f32.gmra.mrb[0].mxu0 %v894
        %v1876 = vpop.f32.mrb[0].mxu0
        %v1877 = vadd.f32 0.0, %v1876
        %v1878 = vpop.f32.mrb[0].mxu0
        %v1879 = vadd.f32 0.0, %v1878
        %1880 = vmatprep.mubr.f32.mxu0 0.0
        %1881 = vmatmul.mubr.f32.gmra.mrb[0].mxu0 %v897
        %v1882 = vpop.f32.mrb[0].mxu0
        %v1883 = vadd.f32 0.0, %v1882
        %v1884 = vpop.f32.mrb[0].mxu0
        %v1885 = vadd.f32 0.0, %v1884
        %1886 = vmatprep.mubr.f32.mxu0 0.0
        %1887 = vmatmul.mubr.f32.gmra.mrb[0].mxu0 %v900
        %v1888 = vpop.f32.mrb[0].mxu0
        %v1889 = vadd.f32 0.0, %v1888
        %v1890 = vpop.f32.mrb[0].mxu0
        %v1891 = vadd.f32 0.0, %v1890
        %1892 = vdwg.mxu0
        %v1893 = vadd.f32 %v1686, %v1823
        %v1894 = vadd.f32 %v1688, %v1825
        %v1895 = vadd.f32 %v1692, %v1829
        %v1896 = vadd.f32 %v1694, %v1831
        %v1897 = vadd.f32 %v1698, %v1835
        %v1898 = vadd.f32 %v1700, %v1837
        %v1899 = vadd.f32 %v1704, %v1841
        %v1900 = vadd.f32 %v1706, %v1843
        %v1901 = vmul.f32 %v1893, 0.5
        %v1902 = vmul.f32 %v1894, 0.5
        %v1903 = vmul.f32 %v1895, 0.5
        %v1904 = vmul.f32 %v1896, 0.5
        %v1905 = vmul.f32 %v1897, 0.5
        %v1906 = vmul.f32 %v1898, 0.5
        %v1907 = vmul.f32 %v1899, 0.5
        %v1908 = vmul.f32 %v1900, 0.5
        %v1909 = vtanh.pop %v1901
        %v1910 = vtanh.pop %v1902
        %v1911 = vtanh.pop %v1903
        %v1912 = vtanh.pop %v1904
        %v1913 = vtanh.pop %v1905
        %v1914 = vtanh.pop %v1906
        %v1915 = vtanh.pop %v1907
        %v1916 = vtanh.pop %v1908
        %v1917 = vmul.f32 %v1909, 0.5
        %v1918 = vmul.f32 %v1910, 0.5
        %v1919 = vmul.f32 %v1911, 0.5
        %v1920 = vmul.f32 %v1912, 0.5
        %v1921 = vmul.f32 %v1913, 0.5
        %v1922 = vmul.f32 %v1914, 0.5
        %v1923 = vmul.f32 %v1915, 0.5
        %v1924 = vmul.f32 %v1916, 0.5
        %v1925 = vadd.f32 %v1917, 0.5
        %v1926 = vadd.f32 %v1918, 0.5
        %v1927 = vadd.f32 %v1919, 0.5
        %v1928 = vadd.f32 %v1920, 0.5
        %v1929 = vadd.f32 %v1921, 0.5
        %v1930 = vadd.f32 %v1922, 0.5
        %v1931 = vadd.f32 %v1923, 0.5
        %v1932 = vadd.f32 %v1924, 0.5
        %v1933 = vadd.f32 %v1710, %v1847
        %v1934 = vadd.f32 %v1712, %v1849
        %v1935 = vadd.f32 %v1716, %v1853
        %v1936 = vadd.f32 %v1718, %v1855
        %v1937 = vadd.f32 %v1722, %v1859
        %v1938 = vadd.f32 %v1724, %v1861
        %v1939 = vadd.f32 %v1728, %v1865
        %v1940 = vadd.f32 %v1730, %v1867
        %v1941 = vmul.f32 %v1933, 0.5
        %v1942 = vmul.f32 %v1934, 0.5
        %v1943 = vmul.f32 %v1935, 0.5
        %v1944 = vmul.f32 %v1936, 0.5
        %v1945 = vmul.f32 %v1937, 0.5
        %v1946 = vmul.f32 %v1938, 0.5
        %v1947 = vmul.f32 %v1939, 0.5
        %v1948 = vmul.f32 %v1940, 0.5
        %v1949 = vtanh.pop %v1941
        %v1950 = vtanh.pop %v1942
        %v1951 = vtanh.pop %v1943
        %v1952 = vtanh.pop %v1944
        %v1953 = vtanh.pop %v1945
        %v1954 = vtanh.pop %v1946
        %v1955 = vtanh.pop %v1947
        %v1956 = vtanh.pop %v1948
        %v1957 = vmul.f32 %v1949, 0.5
        %v1958 = vmul.f32 %v1950, 0.5
        %v1959 = vmul.f32 %v1951, 0.5
        %v1960 = vmul.f32 %v1952, 0.5
        %v1961 = vmul.f32 %v1953, 0.5
        %v1962 = vmul.f32 %v1954, 0.5
        %v1963 = vmul.f32 %v1955, 0.5
        %v1964 = vmul.f32 %v1956, 0.5
        %v1965 = vadd.f32 %v1957, 0.5
        %v1966 = vadd.f32 %v1958, 0.5
        %v1967 = vadd.f32 %v1959, 0.5
        %v1968 = vadd.f32 %v1960, 0.5
        %v1969 = vadd.f32 %v1961, 0.5
        %v1970 = vadd.f32 %v1962, 0.5
        %v1971 = vadd.f32 %v1963, 0.5
        %v1972 = vadd.f32 %v1964, 0.5
        %v1973 = vadd.f32 %v1871, %v408
        %v1974 = vadd.f32 %v1873, %v408
        %v1975 = vadd.f32 %v1877, %v413
        %v1976 = vadd.f32 %v1879, %v413
        %v1977 = vadd.f32 %v1883, %v418
        %v1978 = vadd.f32 %v1885, %v418
        %v1979 = vadd.f32 %v1889, %v423
        %v1980 = vadd.f32 %v1891, %v423
        %v1981 = vmul.f32 %v1925, %v1973
        %v1982 = vmul.f32 %v1926, %v1974
        %v1983 = vmul.f32 %v1927, %v1975
        %v1984 = vmul.f32 %v1928, %v1976
        %v1985 = vmul.f32 %v1929, %v1977
        %v1986 = vmul.f32 %v1930, %v1978
        %v1987 = vmul.f32 %v1931, %v1979
        %v1988 = vmul.f32 %v1932, %v1980
        %v1989 = vadd.f32 %v1734, %v1981
        %v1990 = vadd.f32 %v1736, %v1982
        %v1991 = vadd.f32 %v1740, %v1983
        %v1992 = vadd.f32 %v1742, %v1984
        %v1993 = vadd.f32 %v1746, %v1985
        %v1994 = vadd.f32 %v1748, %v1986
        %v1995 = vadd.f32 %v1752, %v1987
        %v1996 = vadd.f32 %v1754, %v1988
        %v1997 = vtanh.pop %v1989
        %v1998 = vtanh.pop %v1990
        %v1999 = vtanh.pop %v1991
        %v2000 = vtanh.pop %v1992
        %v2001 = vtanh.pop %v1993
        %v2002 = vtanh.pop %v1994
        %v2003 = vtanh.pop %v1995
        %v2004 = vtanh.pop %v1996
        %v2005 = vsub.f32 1.0, %v1965
        %v2006 = vsub.f32 1.0, %v1966
        %v2007 = vsub.f32 1.0, %v1967
        %v2008 = vsub.f32 1.0, %v1968
        %v2009 = vsub.f32 1.0, %v1969
        %v2010 = vsub.f32 1.0, %v1970
        %v2011 = vsub.f32 1.0, %v1971
        %v2012 = vsub.f32 1.0, %v1972
        %v2013 = vmul.f32 %v2005, %v1997
        %v2014 = vmul.f32 %v2006, %v1998
        %v2015 = vmul.f32 %v2007, %v1999
        %v2016 = vmul.f32 %v2008, %v2000
        %v2017 = vmul.f32 %v2009, %v2001
        %v2018 = vmul.f32 %v2010, %v2002
        %v2019 = vmul.f32 %v2011, %v2003
        %v2020 = vmul.f32 %v2012, %v2004
        %v2021 = vmul.f32 %v1965, %v1602
        %v2022 = vmul.f32 %v1966, %v1603
        %v2023 = vmul.f32 %v1967, %v1604
        %v2024 = vmul.f32 %v1968, %v1605
        %v2025 = vmul.f32 %v1969, %v1606
        %v2026 = vmul.f32 %v1970, %v1607
        %v2027 = vmul.f32 %v1971, %v1608
        %v2028 = vmul.f32 %v1972, %v1609
        %v2029 = vadd.f32 %v2013, %v2021
        %v2030 = vadd.f32 %v2014, %v2022
        %v2031 = vadd.f32 %v2015, %v2023
        %v2032 = vadd.f32 %v2016, %v2024
        %v2033 = vadd.f32 %v2017, %v2025
        %v2034 = vadd.f32 %v2018, %v2026
        %v2035 = vadd.f32 %v2019, %v2027
        %v2036 = vadd.f32 %v2020, %v2028
        %s2037 = scalar_lea.vmem %s267, 256 [#allocation2]
        %v2038 = vld [vmem:[%s2037] sm:$0xff]
        %v2039 = vld [vmem:[%s2037 + $0x8] sm:$0xff]
        %v2040 = vld [vmem:[%s2037 + $0x10] sm:$0xff]
        %v2041 = vld [vmem:[%s2037 + $0x18] sm:$0xff]
        %v2042 = vld [vmem:[%s2037 + $0x20] sm:$0xff]
        %v2043 = vld [vmem:[%s2037 + $0x28] sm:$0xff]
        %v2044 = vld [vmem:[%s2037 + $0x30] sm:$0xff]
        %v2045 = vld [vmem:[%s2037 + $0x38] sm:$0xff]
        %2046 = vmatprep.subr.mxu0 %v2039
        %2047 = vmatpush1.msra.mxu0 %v2038
        %2048 = vmatprep.subr.mxu0 %v2041
        %2049 = vmatpush1.msra.mxu0 %v2040
        %2050 = vmatprep.subr.mxu0 %v2043
        %2051 = vmatpush1.msra.mxu0 %v2042
        %2052 = vmatprep.subr.mxu0 %v2045
        %2053 = vmatpush1.msra.mxu0 %v2044
        %2054 = vmatprep.subr.mxu0 0.0
        %2055 = vmatpush1.msra.mxu0 0.0
        %2056 = vmatprep.subr.mxu0 0.0
        %2057 = vmatpush1.msra.mxu0 0.0
        %2058 = vmatprep.subr.mxu0 0.0
        %2059 = vmatpush1.msra.mxu0 0.0
        %2060 = vmatprep.subr.mxu0 0.0
        %2061 = vmatpush1.msra.mxu0 0.0
        %2062 = vmatprep.subr.mxu0 0.0
        %2063 = vmatpush1.msra.mxu0 0.0
        %2064 = vmatprep.subr.mxu0 0.0
        %2065 = vmatpush1.msra.mxu0 0.0
        %2066 = vmatprep.subr.mxu0 0.0
        %2067 = vmatpush1.msra.mxu0 0.0
        %2068 = vmatprep.subr.mxu0 0.0
        %2069 = vmatpush1.msra.mxu0 0.0
        %2070 = vmatprep.subr.mxu0 0.0
        %2071 = vmatpush1.msra.mxu0 0.0
        %2072 = vmatprep.subr.mxu0 0.0
        %2073 = vmatpush1.msra.mxu0 0.0
        %2074 = vmatprep.subr.mxu0 0.0
        %2075 = vmatpush1.msra.mxu0 0.0
        %2076 = vmatprep.subr.mxu0 0.0
        %2077 = vmatpush1.msra.mxu0 0.0
        %2078 = vmatprep.subr.mxu0 0.0
        %2079 = vmatpush1.msra.mxu0 0.0
        %2080 = vmatprep.subr.mxu0 0.0
        %2081 = vmatpush1.msra.mxu0 0.0
        %2082 = vmatprep.subr.mxu0 0.0
        %2083 = vmatpush1.msra.mxu0 0.0
        %2084 = vmatprep.subr.mxu0 0.0
        %2085 = vmatpush1.msra.mxu0 0.0
        %2086 = vmatprep.subr.mxu0 0.0
        %2087 = vmatpush1.msra.mxu0 0.0
        %2088 = vmatprep.subr.mxu0 0.0
        %2089 = vmatpush1.msra.mxu0 0.0
        %2090 = vmatprep.subr.mxu0 0.0
        %2091 = vmatpush1.msra.mxu0 0.0
        %2092 = vmatprep.subr.mxu0 0.0
        %2093 = vmatpush1.msra.mxu0 0.0
        %2094 = vmatprep.subr.mxu0 0.0
        %2095 = vmatpush1.msra.mxu0 0.0
        %2096 = vmatprep.subr.mxu0 0.0
        %2097 = vmatpush1.msra.mxu0 0.0
        %2098 = vmatprep.subr.mxu0 0.0
        %2099 = vmatpush1.msra.mxu0 0.0
        %2100 = vmatprep.subr.mxu0 0.0
        %2101 = vmatpush1.msra.mxu0 0.0
        %2102 = vmatprep.subr.mxu0 0.0
        %2103 = vmatpush1.msra.mxu0 0.0
        %2104 = vmatprep.subr.mxu0 0.0
        %2105 = vmatpush1.msra.mxu0 0.0
        %2106 = vmatprep.subr.mxu0 0.0
        %2107 = vmatpush1.msra.mxu0 0.0
        %2108 = vmatprep.subr.mxu0 0.0
        %2109 = vmatpush1.msra.mxu0 0.0
        %2110 = vmatprep.mubr.f32.mxu0 0.0
        %2111 = vmatmul.mubr.f32.gmra.mrb[0].mxu0 %v444
        %v2112 = vpop.f32.mrb[0].mxu0
        %v2113 = vadd.f32 %v344, %v2112
        %v2114 = vpop.f32.mrb[0].mxu0
        %v2115 = vadd.f32 %v344, %v2114
        %2116 = vmatprep.mubr.f32.mxu0 0.0
        %2117 = vmatmul.mubr.f32.gmra.mrb[0].mxu0 %v447
        %v2118 = vpop.f32.mrb[0].mxu0
        %v2119 = vadd.f32 %v349, %v2118
        %v2120 = vpop.f32.mrb[0].mxu0
        %v2121 = vadd.f32 %v349, %v2120
        %2122 = vmatprep.mubr.f32.mxu0 0.0
        %2123 = vmatmul.mubr.f32.gmra.mrb[0].mxu0 %v450
        %v2124 = vpop.f32.mrb[0].mxu0
        %v2125 = vadd.f32 %v354, %v2124
        %v2126 = vpop.f32.mrb[0].mxu0
        %v2127 = vadd.f32 %v354, %v2126
        %2128 = vmatprep.mubr.f32.mxu0 0.0
        %2129 = vmatmul.mubr.f32.gmra.mrb[0].mxu0 %v453
        %v2130 = vpop.f32.mrb[0].mxu0
        %v2131 = vadd.f32 %v359, %v2130
        %v2132 = vpop.f32.mrb[0].mxu0
        %v2133 = vadd.f32 %v359, %v2132
        %2134 = vmatprep.mubr.f32.mxu0 0.0
        %2135 = vmatmul.mubr.f32.gmra.mrb[0].mxu0 %v456
        %v2136 = vpop.f32.mrb[0].mxu0
        %v2137 = vadd.f32 %v364, %v2136
        %v2138 = vpop.f32.mrb[0].mxu0
        %v2139 = vadd.f32 %v364, %v2138
        %2140 = vmatprep.mubr.f32.mxu0 0.0
        %2141 = vmatmul.mubr.f32.gmra.mrb[0].mxu0 %v459
        %v2142 = vpop.f32.mrb[0].mxu0
        %v2143 = vadd.f32 %v369, %v2142
        %v2144 = vpop.f32.mrb[0].mxu0
        %v2145 = vadd.f32 %v369, %v2144
        %2146 = vmatprep.mubr.f32.mxu0 0.0
        %2147 = vmatmul.mubr.f32.gmra.mrb[0].mxu0 %v462
        %v2148 = vpop.f32.mrb[0].mxu0
        %v2149 = vadd.f32 %v374, %v2148
        %v2150 = vpop.f32.mrb[0].mxu0
        %v2151 = vadd.f32 %v374, %v2150
        %2152 = vmatprep.mubr.f32.mxu0 0.0
        %2153 = vmatmul.mubr.f32.gmra.mrb[0].mxu0 %v465
        %v2154 = vpop.f32.mrb[0].mxu0
        %v2155 = vadd.f32 %v379, %v2154
        %v2156 = vpop.f32.mrb[0].mxu0
        %v2157 = vadd.f32 %v379, %v2156
        %2158 = vmatprep.mubr.f32.mxu0 0.0
        %2159 = vmatmul.mubr.f32.gmra.mrb[0].mxu0 %v468
        %v2160 = vpop.f32.mrb[0].mxu0
        %v2161 = vadd.f32 %v384, %v2160
        %v2162 = vpop.f32.mrb[0].mxu0
        %v2163 = vadd.f32 %v384, %v2162
        %2164 = vmatprep.mubr.f32.mxu0 0.0
        %2165 = vmatmul.mubr.f32.gmra.mrb[0].mxu0 %v471
        %v2166 = vpop.f32.mrb[0].mxu0
        %v2167 = vadd.f32 %v389, %v2166
        %v2168 = vpop.f32.mrb[0].mxu0
        %v2169 = vadd.f32 %v389, %v2168
        %2170 = vmatprep.mubr.f32.mxu0 0.0
        %2171 = vmatmul.mubr.f32.gmra.mrb[0].mxu0 %v474
        %v2172 = vpop.f32.mrb[0].mxu0
        %v2173 = vadd.f32 %v394, %v2172
        %v2174 = vpop.f32.mrb[0].mxu0
        %v2175 = vadd.f32 %v394, %v2174
        %2176 = vmatprep.mubr.f32.mxu0 0.0
        %2177 = vmatmul.mubr.f32.gmra.mrb[0].mxu0 %v477
        %v2178 = vpop.f32.mrb[0].mxu0
        %v2179 = vadd.f32 %v399, %v2178
        %v2180 = vpop.f32.mrb[0].mxu0
        %v2181 = vadd.f32 %v399, %v2180
        %2182 = vdwg.mxu0
        %2183 = vmatprep.subr.mxu0 %v2030
        %2184 = vmatpush1.msra.mxu0 %v2029
        %2185 = vmatprep.subr.mxu0 %v2032
        %2186 = vmatpush1.msra.mxu0 %v2031
        %2187 = vmatprep.subr.mxu0 %v2034
        %2188 = vmatpush1.msra.mxu0 %v2033
        %2189 = vmatprep.subr.mxu0 %v2036
        %2190 = vmatpush1.msra.mxu0 %v2035
        %2191 = vmatprep.subr.mxu0 0.0
        %2192 = vmatpush1.msra.mxu0 0.0
        %2193 = vmatprep.subr.mxu0 0.0
        %2194 = vmatpush1.msra.mxu0 0.0
        %2195 = vmatprep.subr.mxu0 0.0
        %2196 = vmatpush1.msra.mxu0 0.0
        %2197 = vmatprep.subr.mxu0 0.0
        %2198 = vmatpush1.msra.mxu0 0.0
        %2199 = vmatprep.subr.mxu0 0.0
        %2200 = vmatpush1.msra.mxu0 0.0
        %2201 = vmatprep.subr.mxu0 0.0
        %2202 = vmatpush1.msra.mxu0 0.0
        %2203 = vmatprep.subr.mxu0 0.0
        %2204 = vmatpush1.msra.mxu0 0.0
        %2205 = vmatprep.subr.mxu0 0.0
        %2206 = vmatpush1.msra.mxu0 0.0
        %2207 = vmatprep.subr.mxu0 0.0
        %2208 = vmatpush1.msra.mxu0 0.0
        %2209 = vmatprep.subr.mxu0 0.0
        %2210 = vmatpush1.msra.mxu0 0.0
        %2211 = vmatprep.subr.mxu0 0.0
        %2212 = vmatpush1.msra.mxu0 0.0
        %2213 = vmatprep.subr.mxu0 0.0
        %2214 = vmatpush1.msra.mxu0 0.0
        %2215 = vmatprep.subr.mxu0 0.0
        %2216 = vmatpush1.msra.mxu0 0.0
        %2217 = vmatprep.subr.mxu0 0.0
        %2218 = vmatpush1.msra.mxu0 0.0
        %2219 = vmatprep.subr.mxu0 0.0
        %2220 = vmatpush1.msra.mxu0 0.0
        %2221 = vmatprep.subr.mxu0 0.0
        %2222 = vmatpush1.msra.mxu0 0.0
        %2223 = vmatprep.subr.mxu0 0.0
        %2224 = vmatpush1.msra.mxu0 0.0
        %2225 = vmatprep.subr.mxu0 0.0
        %2226 = vmatpush1.msra.mxu0 0.0
        %2227 = vmatprep.subr.mxu0 0.0
        %2228 = vmatpush1.msra.mxu0 0.0
        %2229 = vmatprep.subr.mxu0 0.0
        %2230 = vmatpush1.msra.mxu0 0.0
        %2231 = vmatprep.subr.mxu0 0.0
        %2232 = vmatpush1.msra.mxu0 0.0
        %2233 = vmatprep.subr.mxu0 0.0
        %2234 = vmatpush1.msra.mxu0 0.0
        %2235 = vmatprep.subr.mxu0 0.0
        %2236 = vmatpush1.msra.mxu0 0.0
        %2237 = vmatprep.subr.mxu0 0.0
        %2238 = vmatpush1.msra.mxu0 0.0
        %2239 = vmatprep.subr.mxu0 0.0
        %2240 = vmatpush1.msra.mxu0 0.0
        %2241 = vmatprep.subr.mxu0 0.0
        %2242 = vmatpush1.msra.mxu0 0.0
        %2243 = vmatprep.subr.mxu0 0.0
        %2244 = vmatpush1.msra.mxu0 0.0
        %2245 = vmatprep.subr.mxu0 0.0
        %2246 = vmatpush1.msra.mxu0 0.0
        %2247 = vmatprep.mubr.f32.mxu0 0.0
        %2248 = vmatmul.mubr.f32.gmra.mrb[0].mxu0 %v867
        %v2249 = vpop.f32.mrb[0].mxu0
        %v2250 = vadd.f32 0.0, %v2249
        %v2251 = vpop.f32.mrb[0].mxu0
        %v2252 = vadd.f32 0.0, %v2251
        %2253 = vmatprep.mubr.f32.mxu0 0.0
        %2254 = vmatmul.mubr.f32.gmra.mrb[0].mxu0 %v870
        %v2255 = vpop.f32.mrb[0].mxu0
        %v2256 = vadd.f32 0.0, %v2255
        %v2257 = vpop.f32.mrb[0].mxu0
        %v2258 = vadd.f32 0.0, %v2257
        %2259 = vmatprep.mubr.f32.mxu0 0.0
        %2260 = vmatmul.mubr.f32.gmra.mrb[0].mxu0 %v873
        %v2261 = vpop.f32.mrb[0].mxu0
        %v2262 = vadd.f32 0.0, %v2261
        %v2263 = vpop.f32.mrb[0].mxu0
        %v2264 = vadd.f32 0.0, %v2263
        %2265 = vmatprep.mubr.f32.mxu0 0.0
        %2266 = vmatmul.mubr.f32.gmra.mrb[0].mxu0 %v876
        %v2267 = vpop.f32.mrb[0].mxu0
        %v2268 = vadd.f32 0.0, %v2267
        %v2269 = vpop.f32.mrb[0].mxu0
        %v2270 = vadd.f32 0.0, %v2269
        %2271 = vmatprep.mubr.f32.mxu0 0.0
        %2272 = vmatmul.mubr.f32.gmra.mrb[0].mxu0 %v879
        %v2273 = vpop.f32.mrb[0].mxu0
        %v2274 = vadd.f32 0.0, %v2273
        %v2275 = vpop.f32.mrb[0].mxu0
        %v2276 = vadd.f32 0.0, %v2275
        %2277 = vmatprep.mubr.f32.mxu0 0.0
        %2278 = vmatmul.mubr.f32.gmra.mrb[0].mxu0 %v882
        %v2279 = vpop.f32.mrb[0].mxu0
        %v2280 = vadd.f32 0.0, %v2279
        %v2281 = vpop.f32.mrb[0].mxu0
        %v2282 = vadd.f32 0.0, %v2281
        %2283 = vmatprep.mubr.f32.mxu0 0.0
        %2284 = vmatmul.mubr.f32.gmra.mrb[0].mxu0 %v885
        %v2285 = vpop.f32.mrb[0].mxu0
        %v2286 = vadd.f32 0.0, %v2285
        %v2287 = vpop.f32.mrb[0].mxu0
        %v2288 = vadd.f32 0.0, %v2287
        %2289 = vmatprep.mubr.f32.mxu0 0.0
        %2290 = vmatmul.mubr.f32.gmra.mrb[0].mxu0 %v888
        %v2291 = vpop.f32.mrb[0].mxu0
        %v2292 = vadd.f32 0.0, %v2291
        %v2293 = vpop.f32.mrb[0].mxu0
        %v2294 = vadd.f32 0.0, %v2293
        %2295 = vmatprep.mubr.f32.mxu0 0.0
        %2296 = vmatmul.mubr.f32.gmra.mrb[0].mxu0 %v891
        %v2297 = vpop.f32.mrb[0].mxu0
        %v2298 = vadd.f32 0.0, %v2297
        %v2299 = vpop.f32.mrb[0].mxu0
        %v2300 = vadd.f32 0.0, %v2299
        %2301 = vmatprep.mubr.f32.mxu0 0.0
        %2302 = vmatmul.mubr.f32.gmra.mrb[0].mxu0 %v894
        %v2303 = vpop.f32.mrb[0].mxu0
        %v2304 = vadd.f32 0.0, %v2303
        %v2305 = vpop.f32.mrb[0].mxu0
        %v2306 = vadd.f32 0.0, %v2305
        %2307 = vmatprep.mubr.f32.mxu0 0.0
        %2308 = vmatmul.mubr.f32.gmra.mrb[0].mxu0 %v897
        %v2309 = vpop.f32.mrb[0].mxu0
        %v2310 = vadd.f32 0.0, %v2309
        %v2311 = vpop.f32.mrb[0].mxu0
        %v2312 = vadd.f32 0.0, %v2311
        %2313 = vmatprep.mubr.f32.mxu0 0.0
        %2314 = vmatmul.mubr.f32.gmra.mrb[0].mxu0 %v900
        %v2315 = vpop.f32.mrb[0].mxu0
        %v2316 = vadd.f32 0.0, %v2315
        %v2317 = vpop.f32.mrb[0].mxu0
        %v2318 = vadd.f32 0.0, %v2317
        %2319 = vdwg.mxu0
        %v2320 = vadd.f32 %v2113, %v2250
        %v2321 = vadd.f32 %v2115, %v2252
        %v2322 = vadd.f32 %v2119, %v2256
        %v2323 = vadd.f32 %v2121, %v2258
        %v2324 = vadd.f32 %v2125, %v2262
        %v2325 = vadd.f32 %v2127, %v2264
        %v2326 = vadd.f32 %v2131, %v2268
        %v2327 = vadd.f32 %v2133, %v2270
        %v2328 = vmul.f32 %v2320, 0.5
        %v2329 = vmul.f32 %v2321, 0.5
        %v2330 = vmul.f32 %v2322, 0.5
        %v2331 = vmul.f32 %v2323, 0.5
        %v2332 = vmul.f32 %v2324, 0.5
        %v2333 = vmul.f32 %v2325, 0.5
        %v2334 = vmul.f32 %v2326, 0.5
        %v2335 = vmul.f32 %v2327, 0.5
        %v2336 = vtanh.pop %v2328
        %v2337 = vtanh.pop %v2329
        %v2338 = vtanh.pop %v2330
        %v2339 = vtanh.pop %v2331
        %v2340 = vtanh.pop %v2332
        %v2341 = vtanh.pop %v2333
        %v2342 = vtanh.pop %v2334
        %v2343 = vtanh.pop %v2335
        %v2344 = vmul.f32 %v2336, 0.5
        %v2345 = vmul.f32 %v2337, 0.5
        %v2346 = vmul.f32 %v2338, 0.5
        %v2347 = vmul.f32 %v2339, 0.5
        %v2348 = vmul.f32 %v2340, 0.5
        %v2349 = vmul.f32 %v2341, 0.5
        %v2350 = vmul.f32 %v2342, 0.5
        %v2351 = vmul.f32 %v2343, 0.5
        %v2352 = vadd.f32 %v2344, 0.5
        %v2353 = vadd.f32 %v2345, 0.5
        %v2354 = vadd.f32 %v2346, 0.5
        %v2355 = vadd.f32 %v2347, 0.5
        %v2356 = vadd.f32 %v2348, 0.5
        %v2357 = vadd.f32 %v2349, 0.5
        %v2358 = vadd.f32 %v2350, 0.5
        %v2359 = vadd.f32 %v2351, 0.5
        %v2360 = vadd.f32 %v2137, %v2274
        %v2361 = vadd.f32 %v2139, %v2276
        %v2362 = vadd.f32 %v2143, %v2280
        %v2363 = vadd.f32 %v2145, %v2282
        %v2364 = vadd.f32 %v2149, %v2286
        %v2365 = vadd.f32 %v2151, %v2288
        %v2366 = vadd.f32 %v2155, %v2292
        %v2367 = vadd.f32 %v2157, %v2294
        %v2368 = vmul.f32 %v2360, 0.5
        %v2369 = vmul.f32 %v2361, 0.5
        %v2370 = vmul.f32 %v2362, 0.5
        %v2371 = vmul.f32 %v2363, 0.5
        %v2372 = vmul.f32 %v2364, 0.5
        %v2373 = vmul.f32 %v2365, 0.5
        %v2374 = vmul.f32 %v2366, 0.5
        %v2375 = vmul.f32 %v2367, 0.5
        %v2376 = vtanh.pop %v2368
        %v2377 = vtanh.pop %v2369
        %v2378 = vtanh.pop %v2370
        %v2379 = vtanh.pop %v2371
        %v2380 = vtanh.pop %v2372
        %v2381 = vtanh.pop %v2373
        %v2382 = vtanh.pop %v2374
        %v2383 = vtanh.pop %v2375
        %v2384 = vmul.f32 %v2376, 0.5
        %v2385 = vmul.f32 %v2377, 0.5
        %v2386 = vmul.f32 %v2378, 0.5
        %v2387 = vmul.f32 %v2379, 0.5
        %v2388 = vmul.f32 %v2380, 0.5
        %v2389 = vmul.f32 %v2381, 0.5
        %v2390 = vmul.f32 %v2382, 0.5
        %v2391 = vmul.f32 %v2383, 0.5
        %v2392 = vadd.f32 %v2384, 0.5
        %v2393 = vadd.f32 %v2385, 0.5
        %v2394 = vadd.f32 %v2386, 0.5
        %v2395 = vadd.f32 %v2387, 0.5
        %v2396 = vadd.f32 %v2388, 0.5
        %v2397 = vadd.f32 %v2389, 0.5
        %v2398 = vadd.f32 %v2390, 0.5
        %v2399 = vadd.f32 %v2391, 0.5
        %v2400 = vadd.f32 %v2298, %v408
        %v2401 = vadd.f32 %v2300, %v408
        %v2402 = vadd.f32 %v2304, %v413
        %v2403 = vadd.f32 %v2306, %v413
        %v2404 = vadd.f32 %v2310, %v418
        %v2405 = vadd.f32 %v2312, %v418
        %v2406 = vadd.f32 %v2316, %v423
        %v2407 = vadd.f32 %v2318, %v423
        %v2408 = vmul.f32 %v2352, %v2400
        %v2409 = vmul.f32 %v2353, %v2401
        %v2410 = vmul.f32 %v2354, %v2402
        %v2411 = vmul.f32 %v2355, %v2403
        %v2412 = vmul.f32 %v2356, %v2404
        %v2413 = vmul.f32 %v2357, %v2405
        %v2414 = vmul.f32 %v2358, %v2406
        %v2415 = vmul.f32 %v2359, %v2407
        %v2416 = vadd.f32 %v2161, %v2408
        %v2417 = vadd.f32 %v2163, %v2409
        %v2418 = vadd.f32 %v2167, %v2410
        %v2419 = vadd.f32 %v2169, %v2411
        %v2420 = vadd.f32 %v2173, %v2412
        %v2421 = vadd.f32 %v2175, %v2413
        %v2422 = vadd.f32 %v2179, %v2414
        %v2423 = vadd.f32 %v2181, %v2415
        %v2424 = vtanh.pop %v2416
        %v2425 = vtanh.pop %v2417
        %v2426 = vtanh.pop %v2418
        %v2427 = vtanh.pop %v2419
        %v2428 = vtanh.pop %v2420
        %v2429 = vtanh.pop %v2421
        %v2430 = vtanh.pop %v2422
        %v2431 = vtanh.pop %v2423
        %v2432 = vsub.f32 1.0, %v2392
        %v2433 = vsub.f32 1.0, %v2393
        %v2434 = vsub.f32 1.0, %v2394
        %v2435 = vsub.f32 1.0, %v2395
        %v2436 = vsub.f32 1.0, %v2396
        %v2437 = vsub.f32 1.0, %v2397
        %v2438 = vsub.f32 1.0, %v2398
        %v2439 = vsub.f32 1.0, %v2399
        %v2440 = vmul.f32 %v2432, %v2424
        %v2441 = vmul.f32 %v2433, %v2425
        %v2442 = vmul.f32 %v2434, %v2426
        %v2443 = vmul.f32 %v2435, %v2427
        %v2444 = vmul.f32 %v2436, %v2428
        %v2445 = vmul.f32 %v2437, %v2429
        %v2446 = vmul.f32 %v2438, %v2430
        %v2447 = vmul.f32 %v2439, %v2431
        %v2448 = vmul.f32 %v2392, %v2029
        %v2449 = vmul.f32 %v2393, %v2030
        %v2450 = vmul.f32 %v2394, %v2031
        %v2451 = vmul.f32 %v2395, %v2032
        %v2452 = vmul.f32 %v2396, %v2033
        %v2453 = vmul.f32 %v2397, %v2034
        %v2454 = vmul.f32 %v2398, %v2035
        %v2455 = vmul.f32 %v2399, %v2036
        %v2456 = vadd.f32 %v2440, %v2448
        %v2457 = vadd.f32 %v2441, %v2449
        %v2458 = vadd.f32 %v2442, %v2450
        %v2459 = vadd.f32 %v2443, %v2451
        %v2460 = vadd.f32 %v2444, %v2452
        %v2461 = vadd.f32 %v2445, %v2453
        %v2462 = vadd.f32 %v2446, %v2454
        %v2463 = vadd.f32 %v2447, %v2455
        %2465 = vset.pattern.permute.xlu0 0
        %2466 = vperm.xlu0 %2465, %v425
        %v2467 = vpop.permute.xlu0 %2466
        %2470 = vset.pattern.permute.xlu0 0
        %2471 = vperm.xlu0 %2470, %v426
        %v2472 = vpop.permute.xlu0 %2471
        %2475 = vset.pattern.permute.xlu0 0
        %2476 = vperm.xlu0 %2475, %v427
        %v2477 = vpop.permute.xlu0 %2476
        %2480 = vset.pattern.permute.xlu0 0
        %2481 = vperm.xlu0 %2480, %v428
        %v2482 = vpop.permute.xlu0 %2481
        %v2484 = vmul.f32 %v2456, %v2467
        %v2485 = vmul.f32 %v2457, %v2467
        %v2486 = vmul.f32 %v2458, %v2472
        %v2487 = vmul.f32 %v2459, %v2472
        %v2488 = vmul.f32 %v2460, %v2477
        %v2489 = vmul.f32 %v2461, %v2477
        %v2490 = vmul.f32 %v2462, %v2482
        %v2491 = vmul.f32 %v2463, %v2482
        %2493 = vset.pattern.permute.xlu0 0
        %2494 = vperm.xlu0 %2493, %v429
        %v2495 = vpop.permute.xlu0 %2494
        %2498 = vset.pattern.permute.xlu0 0
        %2499 = vperm.xlu0 %2498, %v430
        %v2500 = vpop.permute.xlu0 %2499
        %2503 = vset.pattern.permute.xlu0 0
        %2504 = vperm.xlu0 %2503, %v431
        %v2505 = vpop.permute.xlu0 %2504
        %2508 = vset.pattern.permute.xlu0 0
        %2509 = vperm.xlu0 %2508, %v432
        %v2510 = vpop.permute.xlu0 %2509
        %v2512 = vadd.f32 %v2484, %v2495
        %v2513 = vadd.f32 %v2485, %v2495
        %v2514 = vadd.f32 %v2486, %v2500
        %v2515 = vadd.f32 %v2487, %v2500
        %v2516 = vadd.f32 %v2488, %v2505
        %v2517 = vadd.f32 %v2489, %v2505
        %v2518 = vadd.f32 %v2490, %v2510
        %v2519 = vadd.f32 %v2491, %v2510
        %v2520 = vmax.f32 %v2512, 0.0
        %v2521 = vmax.f32 %v2513, 0.0
        %v2522 = vmax.f32 %v2514, 0.0
        %v2523 = vmax.f32 %v2515, 0.0
        %v2524 = vmax.f32 %v2516, 0.0
        %v2525 = vmax.f32 %v2517, 0.0
        %v2526 = vmax.f32 %v2518, 0.0
        %v2527 = vmax.f32 %v2519, 0.0
        %2528 = vst [vmem:[%s293] sm:$0xff] %v2520
        %2529 = vst [vmem:[%s293 + $0x8] sm:$0xff] %v2521
        %2530 = vst [vmem:[%s293 + $0x10] sm:$0xff] %v2522
        %2531 = vst [vmem:[%s293 + $0x18] sm:$0xff] %v2523
        %2532 = vst [vmem:[%s293 + $0x20] sm:$0xff] %v2524
        %2533 = vst [vmem:[%s293 + $0x28] sm:$0xff] %v2525
        %2534 = vst [vmem:[%s293 + $0x30] sm:$0xff] %v2526
        %2535 = vst [vmem:[%s293 + $0x38] sm:$0xff] %v2527
        %2537 = vset.pattern.permute.xlu0 0
        %2538 = vperm.xlu0 %2537, %v433
        %v2539 = vpop.permute.xlu0 %2538
        %v2542 = vsel %vm442, %v328, 0
        %2544 = vmatprep.subr.mxu0 %v2521
        %2545 = vmatpush1.msra.mxu0 %v2520
        %2546 = vmatprep.subr.mxu0 %v2523
        %2547 = vmatpush1.msra.mxu0 %v2522
        %2548 = vmatprep.subr.mxu0 %v2525
        %2549 = vmatpush1.msra.mxu0 %v2524
        %2550 = vmatprep.subr.mxu0 %v2527
        %2551 = vmatpush1.msra.mxu0 %v2526
        %2552 = vmatprep.subr.mxu0 0.0
        %2553 = vmatpush1.msra.mxu0 0.0
        %2554 = vmatprep.subr.mxu0 0.0
        %2555 = vmatpush1.msra.mxu0 0.0
        %2556 = vmatprep.subr.mxu0 0.0
        %2557 = vmatpush1.msra.mxu0 0.0
        %2558 = vmatprep.subr.mxu0 0.0
        %2559 = vmatpush1.msra.mxu0 0.0
        %2560 = vmatprep.subr.mxu0 0.0
        %2561 = vmatpush1.msra.mxu0 0.0
        %2562 = vmatprep.subr.mxu0 0.0
        %2563 = vmatpush1.msra.mxu0 0.0
        %2564 = vmatprep.subr.mxu0 0.0
        %2565 = vmatpush1.msra.mxu0 0.0
        %2566 = vmatprep.subr.mxu0 0.0
        %2567 = vmatpush1.msra.mxu0 0.0
        %2568 = vmatprep.subr.mxu0 0.0
        %2569 = vmatpush1.msra.mxu0 0.0
        %2570 = vmatprep.subr.mxu0 0.0
        %2571 = vmatpush1.msra.mxu0 0.0
        %2572 = vmatprep.subr.mxu0 0.0
        %2573 = vmatpush1.msra.mxu0 0.0
        %2574 = vmatprep.subr.mxu0 0.0
        %2575 = vmatpush1.msra.mxu0 0.0
        %2576 = vmatprep.subr.mxu0 0.0
        %2577 = vmatpush1.msra.mxu0 0.0
        %2578 = vmatprep.subr.mxu0 0.0
        %2579 = vmatpush1.msra.mxu0 0.0
        %2580 = vmatprep.subr.mxu0 0.0
        %2581 = vmatpush1.msra.mxu0 0.0
        %2582 = vmatprep.subr.mxu0 0.0
        %2583 = vmatpush1.msra.mxu0 0.0
        %2584 = vmatprep.subr.mxu0 0.0
        %2585 = vmatpush1.msra.mxu0 0.0
        %2586 = vmatprep.subr.mxu0 0.0
        %2587 = vmatpush1.msra.mxu0 0.0
        %2588 = vmatprep.subr.mxu0 0.0
        %2589 = vmatpush1.msra.mxu0 0.0
        %2590 = vmatprep.subr.mxu0 0.0
        %2591 = vmatpush1.msra.mxu0 0.0
        %2592 = vmatprep.subr.mxu0 0.0
        %2593 = vmatpush1.msra.mxu0 0.0
        %2594 = vmatprep.subr.mxu0 0.0
        %2595 = vmatpush1.msra.mxu0 0.0
        %2596 = vmatprep.subr.mxu0 0.0
        %2597 = vmatpush1.msra.mxu0 0.0
        %2598 = vmatprep.subr.mxu0 0.0
        %2599 = vmatpush1.msra.mxu0 0.0
        %2600 = vmatprep.subr.mxu0 0.0
        %2601 = vmatpush1.msra.mxu0 0.0
        %2602 = vmatprep.subr.mxu0 0.0
        %2603 = vmatpush1.msra.mxu0 0.0
        %2604 = vmatprep.subr.mxu0 0.0
        %2605 = vmatpush1.msra.mxu0 0.0
        %2606 = vmatprep.subr.mxu0 0.0
        %2607 = vmatpush1.msra.mxu0 0.0
        %2608 = vmatprep.mubr.f32.mxu0 0.0
        %2609 = vmatmul.mubr.f32.gmra.mrb[0].mxu0 %v2542
        %v2610 = vpop.f32.mrb[0].mxu0
        %v2611 = vadd.f32 %v2539, %v2610
        %v2612 = vpop.f32.mrb[0].mxu0
        %v2613 = vadd.f32 %v2539, %v2612
        %2614 = vdwg.mxu0
        %v2617 = vcombine.low %v2611, %v2613
        %2619 = vst [vmem:[%s300] sm:$0xff] %v2617
        %s2620 = sand.u32 %s161, 1
        %s2621 = scalar_lea.sflag [#allocation4], %s2620
        %s2622 = sand.u32 %s161, 1
        %s2623 = smul.addr %s2622, 64
        %s2624 = scalar_lea.vmem [#allocation5], %s2623
        %s2625 = sand.u32 %s189, 1
        %s2626 = scalar_lea.sflag [#allocation7], %s2625
        %s2627 = sand.u32 %s189, 1
        %s2628 = smul.addr %s2627, 8
        %s2629 = scalar_lea.vmem [#allocation6], %s2628
        // Predicated region
        $region45: #{tpu_custom_call.1} parent=39 // pred_check
          %p2630 = pneg %p171
        $region46: #{tpu_custom_call.1} parent=39 // pred_check_branch
          %2632 = sbr.rel (%p2630) target = $region48
        $region47: #{tpu_custom_call.1} parent=39 // pred_region
          %s2633 = smul.u32 2, %s32
          %s2635 = ssub.s32 1024, 1024
          %2636 = vsyncadd %s2621, %s2635
          %s2637 = smul.addr %s31, 8
          %s2638 = sadd.s32 %s2633, %s2637
          %s2639 = smul.addr %s2638, 128
          %s2640 = scalar_lea.hbm %s5, %s2639
          %s2641 = sshll.u32 %s2624, 4
          %s2642 = int_to_ptr.vmem [resolvable:$true] %s2641
          %2647 = dma.vmem_to_hbm [thread:$0]  %s2642, 1024, %s2640, %s2621, 256, 256, 16
        $region48: #{tpu_custom_call.1} parent=39 // pred_fallthru
          _
        // Predicated region
        $region49: #{tpu_custom_call.1} parent=39 // pred_check
          %p2648 = pneg %p199
        $region50: #{tpu_custom_call.1} parent=39 // pred_check_branch
          %2650 = sbr.rel (%p2648) target = $region52
        $region51: #{tpu_custom_call.1} parent=39 // pred_region
          %s2651 = smul.u32 2, %s32
          %s2653 = ssub.s32 128, 128
          %2654 = vsyncadd %s2626, %s2653
          %s2655 = smul.addr %s31, 2
          %s2656 = sadd.s32 %s2651, %s2655
          %s2657 = smul.addr %s2656, 64
          %s2658 = scalar_lea.hbm %s6, %s2657
          %s2660 = sshll.u32 %s2629, 4
          %s2661 = int_to_ptr.vmem [resolvable:$true] %s2660
          %2663 = dma.vmem_to_hbm [thread:$0]  %s2661, 128, %s2658, %s2626
        $region52: #{tpu_custom_call.1} parent=39 // pred_fallthru
          _
      $region40: #{tpu_custom_call.1} parent=5 // pred_fallthru
        _
      %p2664 = scmp.le.s32.totalorder 2, %s22
      // Predicated region
      $region53: #{tpu_custom_call.1} parent=5 // pred_check
        %p2665 = pneg %p2664
      $region54: #{tpu_custom_call.1} parent=5 // pred_check_branch
        %2667 = sbr.rel (%p2665) target = $region56
      $region55: #{tpu_custom_call.1} parent=5 // pred_region
        %s2668 = ssub.s32 %s22, 2
        // Predicated region
        $region57: #{tpu_custom_call.1} parent=55 // pred_check
          %p2669 = pneg %p177
        $region58: #{tpu_custom_call.1} parent=55 // pred_check_branch
          %2671 = sbr.rel (%p2669) target = $region60
        $region59: #{tpu_custom_call.1} parent=55 // pred_region
          %s2672 = sand.u32 %s162, 1
          %s2673 = scalar_lea.sflag [#allocation4], %s2672
          %s2674 = sand.u32 %s162, 1
          %s2675 = smul.addr %s2674, 64
          %s2676 = scalar_lea.vmem [#allocation5], %s2675
          %2677 = dma.done %s2673, 1024
        $region60: #{tpu_custom_call.1} parent=55 // pred_fallthru
          _
        // Predicated region
        $region61: #{tpu_custom_call.1} parent=55 // pred_check
          %p2678 = pneg %p205
        $region62: #{tpu_custom_call.1} parent=55 // pred_check_branch
          %2680 = sbr.rel (%p2678) target = $region64
        $region63: #{tpu_custom_call.1} parent=55 // pred_region
          %s2681 = sand.u32 %s190, 1
          %s2682 = scalar_lea.sflag [#allocation7], %s2681
          %s2683 = sand.u32 %s190, 1
          %s2684 = smul.addr %s2683, 8
          %s2685 = scalar_lea.vmem [#allocation6], %s2684
          %2686 = dma.done %s2682, 128
        $region64: #{tpu_custom_call.1} parent=55 // pred_fallthru
          _
      $region56: #{tpu_custom_call.1} parent=5 // pred_fallthru
        _
    $region6: #{tpu_custom_call.1} parent=1 // loop_footer
      %s26 = sadd.s32 1, %s22
    $region7: #{tpu_custom_call.1} parent=1 // loop_footer_branch
      %21 = sbr.rel target = $region3
    $region8: #{tpu_custom_call.1} parent=1 // loop_exit
      _
    %2687 = vsyncpa [#allocation3], 1
    %s2688 = scalar_lea.sflag [#allocation3], 1
    %2689 = vsyncpa %s2688, 1
    %2690 = vsyncpa [#allocation4], 1
    %s2691 = scalar_lea.sflag [#allocation4], 1
    %2692 = vsyncpa %s2691, 1
    %2693 = vsyncpa [#allocation7], 1
    %s2694 = scalar_lea.sflag [#allocation7], 1
    %2695 = vsyncpa %s2694, 1

</llo_original>
